<compile_context>
chip_gen: v7x
topology: tpu7x:2x2x1
jax: 0.10.0
libtpu: 0.0.40
codegen_flags: <defaults>
</compile_context>

<pallas_src>
import functools

import jax
import jax.numpy as jnp
from jax import lax
from jax.experimental import pallas as pl
from jax.experimental.pallas import tpu as pltpu

NEG = -1.0e30          # "-inf" stand-in that stays NaN-free through exp/log
S_PAD = 128            # extended-target length padded to one lane width
BG1 = 8                # batch rows per kernel-1 grid step (one sublane group)
BG2 = 32               # CTC alpha chains packed per kernel-2 grid step


def _round_up(x, m):
    return ((x + m - 1) // m) * m


def _pick_time_tile(T, vpad):
    # Bound the in-kernel (BG1*tile_t, Vpad) f32 logits temp to ~8 MiB so the
    # 32 MiB VMEM limit holds on every generation (incl. v7x's 64 MiB VMEM).
    cap = (8 * 1024 * 1024) // (BG1 * vpad * 4)
    tile = min(256, max(8, cap), _round_up(T, 8))
    return max(8, (tile // 8) * 8)


def _pick_time_chunk(t_pad, tile_t, target=512):
    # Largest multiple of tile_t <= target that divides T_pad (kernel-2 chunk).
    nt = t_pad // tile_t
    want = max(1, target // tile_t)
    best = 1
    for d in range(1, min(want, nt) + 1):
        if nt % d == 0:
            best = d
    return best * tile_t


# ------------------------------------------------------------------
# Kernel 1: fir_enc (Linear+ReLU) -> encoder (Linear) -> log_softmax LSE
#           -> CTC gather via pre-gathered columns w2g/b2g.
# Grid: (B_pad//BG1, T_pad//tile_t); weights stay resident (constant index_map).
# Output is written time-major: (T_pad, B_pad, S_PAD).
# ------------------------------------------------------------------
def encoder_gather_kernel(x_ref, w1_ref, b1_ref, w2_ref, b2_ref,
                          w2g_ref, b2g_ref, out_ref):
    bg, tile_t, feat = x_ref.shape
    x = x_ref[...].reshape(bg * tile_t, feat).astype(jnp.bfloat16)

    # fir_enc: Linear + ReLU (bf16 MXU, f32 accumulate)
    h = jnp.dot(x, w1_ref[...], preferred_element_type=jnp.float32) + b1_ref[...]
    h = jnp.maximum(h, 0.0)
    hb = h.astype(jnp.bfloat16)

    # encoder logits over the (NEG-padded) vocab, only needed for the LSE.
    logits = jnp.dot(hb, w2_ref[...], preferred_element_type=jnp.float32) + b2_ref[...]
    m = jnp.max(logits, axis=-1, keepdims=True)
    lse = m + jnp.log(jnp.sum(jnp.exp(logits - m), axis=-1, keepdims=True))

    h3 = hb.reshape(bg, tile_t, -1)          # (BG1, tile_t, H)
    lse3 = lse.reshape(bg, tile_t, 1)        # (BG1, tile_t, 1)

    # G[t, b, s] = logp[b, t, ext[b, s]] = h @ w2[:, ext] + b2[ext] - lse.
    # Static per-sample loop; the out_ref[:, i, :] stores interleave the batch
    # onto sublanes, producing the time-major layout kernel 2 consumes.
    for i in range(bg):
        gi = jnp.dot(h3[i], w2g_ref[i], preferred_element_type=jnp.float32)
        out_ref[:, i, :] = gi + b2g_ref[i] - lse3[i]


def run_encoder_gather(x, w1b, b1, w2b, b2n, w2g, b2g, tile_t):
    b_pad, t_pad, feat = x.shape
    hdim = w1b.shape[1]
    vpad = w2b.shape[1]
    nb = b_pad // BG1
    nt = t_pad // tile_t
    return pl.pallas_call(
        encoder_gather_kernel,
        out_shape=jax.ShapeDtypeStruct((t_pad, b_pad, S_PAD), jnp.float32),
        grid=(nb, nt),
        in_specs=[
            pl.BlockSpec((BG1, tile_t, feat), lambda b, t: (b, t, 0)),     # inputs
            pl.BlockSpec((feat, hdim), lambda b, t: (0, 0)),               # w1 (bf16, resident)
            pl.BlockSpec((1, hdim), lambda b, t: (0, 0)),                  # b1
            pl.BlockSpec((hdim, vpad), lambda b, t: (0, 0)),               # w2 (bf16, resident)
            pl.BlockSpec((1, vpad), lambda b, t: (0, 0)),                  # b2 (NEG-padded)
            pl.BlockSpec((BG1, hdim, S_PAD), lambda b, t: (b, 0, 0)),      # gathered w2 cols
            pl.BlockSpec((BG1, 1, S_PAD), lambda b, t: (b, 0, 0)),         # gathered b2
        ],
        out_specs=pl.BlockSpec((tile_t, BG1, S_PAD), lambda b, t: (t, b, 0)),
        compiler_params=pltpu.CompilerParams(
            dimension_semantics=("parallel", "parallel"),
            # explicit (v5e default is only 16 MiB); the tile picker keeps the
            # logits temp bounded so 32 MiB is sufficient by construction.
            vmem_limit_bytes=32 * 1024 * 1024),
    )(x, w1b, b1, w2b, b2n, w2g, b2g)


# ------------------------------------------------------------------
# Kernel 2: CTC alpha recursion, BG2 sequences packed on sublanes per group,
# time chunked on an "arbitrary" grid axis with alpha carried in VMEM scratch.
#   g_ref : (t_chunk, BG2, S_PAD) gathered log-probs, time-major.
# ------------------------------------------------------------------
def ctc_alpha_kernel(gmax_ref, tb_ref, s_ref, ext_ref, g_ref, out_ref,
                     alpha_ref, *, t_chunk):
    gid = pl.program_id(0)
    c = pl.program_id(1)

    idx = lax.broadcasted_iota(jnp.int32, (BG2, S_PAD), 1)
    S = s_ref[...]                                   # (BG2, 1) int32, = 2*len+1
    Tb = tb_ref[...]                                 # (BG2, 1) int32, input lengths
    ext = ext_ref[...].astype(jnp.float32)           # (BG2, S_PAD)
    ext_m2 = pltpu.roll(ext, shift=2, axis=1)        # ext[s-2]
    skip = (jnp.bitwise_and(idx, 1) == 1) & (idx >= 2) & (ext != ext_m2)

    @pl.when(c == 0)
    def _():
        # virtual alpha_{-1}: 0 at s=0, NEG elsewhere (recursion at t=0 then
        # reproduces the standard alpha_0 init).
        alpha_ref[...] = jnp.where(idx == 0, 0.0, NEG)

    t0 = c * t_chunk
    hi = jnp.clip(gmax_ref[gid] - t0, 0, t_chunk)    # dynamic trip count (group max)

    def body(t, alpha):
        gt = g_ref[t]                                # (BG2, S_PAD)
        a1 = jnp.where(idx >= 1, pltpu.roll(alpha, shift=1, axis=1), NEG)
        a2 = jnp.where(skip, pltpu.roll(alpha, shift=2, axis=1), NEG)
        m = jnp.maximum(jnp.maximum(alpha, a1), a2)
        lse = m + jnp.log(jnp.exp(alpha - m) + jnp.exp(a1 - m) + jnp.exp(a2 - m))
        new = jnp.where(idx < S, gt + lse, NEG)
        return jnp.where(t0 + t < Tb, new, alpha)    # freeze rows past their length

    alpha_ref[...] = lax.fori_loop(0, hi, body, alpha_ref[...])

    @pl.when(c == pl.num_programs(1) - 1)
    def _():
        alpha = alpha_ref[...]
        # nll = -logaddexp(alpha[S-1], alpha[S-2])
        sel = (idx == (S - 1)) | (idx == (S - 2))
        am = jnp.where(sel, alpha, NEG)
        m = jnp.max(am, axis=1, keepdims=True)
        nll = -(m + jnp.log(jnp.sum(jnp.exp(am - m), axis=1, keepdims=True)))
        out_ref[...] = jnp.broadcast_to(nll, (BG2, S_PAD))


def run_ctc(g_tbs, ext_pad, in_len, s_len, gmax, t_chunk):
    t_pad, b_pad, _ = g_tbs.shape
    n_groups = b_pad // BG2
    n_chunks = t_pad // t_chunk
    kernel = functools.partial(ctc_alpha_kernel, t_chunk=t_chunk)
    return pl.pallas_call(
        kernel,
        out_shape=jax.ShapeDtypeStruct((b_pad, S_PAD), jnp.float32),
        grid=(n_groups, n_chunks),
        in_specs=[
            pl.BlockSpec(memory_space=pltpu.MemorySpace.SMEM),             # group max len
            pl.BlockSpec((BG2, 1), lambda g, c: (g, 0)),                   # input lengths
            pl.BlockSpec((BG2, 1), lambda g, c: (g, 0)),                   # 2*len+1
            pl.BlockSpec((BG2, S_PAD), lambda g, c: (g, 0)),               # ext labels
            pl.BlockSpec((t_chunk, BG2, S_PAD), lambda g, c: (c, g, 0)),   # gathered logp chunk
        ],
        out_specs=pl.BlockSpec((BG2, S_PAD), lambda g, c: (g, 0)),
        scratch_shapes=[pltpu.VMEM((BG2, S_PAD), jnp.float32)],            # alpha carry
        compiler_params=pltpu.CompilerParams(
            dimension_semantics=("parallel", "arbitrary"),
            vmem_limit_bytes=32 * 1024 * 1024),
    )(gmax, in_len, s_len, ext_pad, g_tbs)


# ------------------------------------------------------------------
# VideoModel.forward equivalent
# ------------------------------------------------------------------
def video_model_ctc_loss(params, inputs, inputs_length, targets, targets_length):
    B, T, F = inputs.shape
    H = params["w1"].shape[1]
    V = params["w2"].shape[1]
    Lmax = targets.shape[1]
    assert 2 * Lmax + 1 <= S_PAD, "extended target length exceeds S_PAD"

    # Pad vocab to a lane multiple; padded lanes get bias=NEG so they
    # exp-underflow out of the LSE (no in-kernel lane mask needed).
    Vpad = _round_up(V, 128)
    w2p = jnp.pad(params["w2"], ((0, 0), (0, Vpad - V)))
    b2n = jnp.pad(params["b2"], ((0, 0), (0, Vpad - V)), constant_values=NEG)

    # Weights to bf16 once (kernel matmuls run bf16 MXU with f32 accumulate).
    w1b = params["w1"].astype(jnp.bfloat16)
    w2b = w2p.astype(jnp.bfloat16)
    b1 = params["b1"]

    # Pad batch to BG2 (also a multiple of BG1) and time to the tile.
    B_pad = _round_up(max(B, BG2), BG2)
    tile_t = _pick_time_tile(T, Vpad)
    T_pad = _round_up(T, tile_t)
    x = jnp.pad(inputs, ((0, B_pad - B), (0, T_pad - T), (0, 0)))

    # blank(=0)-interleaved extended targets  (B_pad, S_PAD) int32
    tgt = jnp.pad(targets.astype(jnp.int32), ((0, B_pad - B), (0, 0)))
    ext = jnp.zeros((B_pad, S_PAD), jnp.int32)
    ext = ext.at[:, 1:2 * Lmax + 1:2].set(tgt)

    # Pre-gathered encoder columns / biases for the CTC gather (replaces the
    # in-kernel one-hot matmul over the whole vocab).
    w2g = jnp.swapaxes(jnp.take(w2b, ext, axis=1), 0, 1)      # (B_pad, H, S_PAD) bf16
    b2g = jnp.take(params["b2"][0], ext, axis=0)[:, None, :]  # (B_pad, 1, S_PAD) f32

    # Kernel 1: fused encoder + gather, time-major output (no XLA transpose).
    g_tbs = run_encoder_gather(x, w1b, b1, w2b, b2n, w2g, b2g, tile_t)

    # Kernel 2: CTC alpha recursion.
    in_len = jnp.pad(inputs_length.astype(jnp.int32), (0, B_pad - B), constant_values=1)
    s_len = jnp.pad((2 * targets_length + 1).astype(jnp.int32), (0, B_pad - B),
                    constant_values=1)
    gmax = jnp.max(in_len.reshape(B_pad // BG2, BG2), axis=1)  # (n_groups,)
    t_chunk = _pick_time_chunk(T_pad, tile_t)

    nll = run_ctc(g_tbs, ext, in_len[:, None], s_len[:, None], gmax, t_chunk)[:B, 0]

    # F.ctc_loss default reduction='mean': per-sample nll / target_length, batch mean.
    # (clamped to >=1 to avoid inf/NaN for zero-length targets)
    denom = jnp.maximum(targets_length.astype(jnp.float32), 1.0)
    return jnp.mean(nll / denom)


if __name__ == "__main__":
    key = jax.random.PRNGKey(0)
    B, T, F, H, V, Lmax = 2, 16, 32, 32, 16, 6
    k1, k2, k3, k4 = jax.random.split(key, 4)

    inputs = jax.random.normal(k1, (B, T, F), jnp.float32)
    inputs_length = jnp.array([T, T - 4], jnp.int32)
    targets = jax.random.randint(k2, (B, Lmax), 1, V, dtype=jnp.int32)   # labels in [1, V)
    targets_length = jnp.array([Lmax, Lmax - 1], jnp.int32)

    params = {
        "w1": 0.1 * jax.random.normal(k3, (F, H), jnp.float32),
        "b1": jnp.zeros((1, H), jnp.float32),
        "w2": 0.1 * jax.random.normal(k4, (H, V), jnp.float32),
        "b2": jnp.zeros((1, V), jnp.float32),
    }

    loss = jax.jit(video_model_ctc_loss)(params, inputs, inputs_length,
                                         targets, targets_length)
    loss = jax.block_until_ready(loss)
    assert bool(jnp.isfinite(loss)), f"non-finite CTC loss: {loss}"
    print("KERNEL_OK")
</pallas_src>

<mosaic_0001>
module attributes {stable_mosaic.version = 11 : i64} {
  func.func @encoder_gather_kernel(%arg0: i32, %arg1: i32, %arg2: memref<8x16x32xf32, #tpu.memory_space<vmem>>, %arg3: memref<32x32xbf16, #tpu.memory_space<vmem>>, %arg4: memref<1x32xf32, #tpu.memory_space<vmem>>, %arg5: memref<32x128xbf16, #tpu.memory_space<vmem>>, %arg6: memref<1x128xf32, #tpu.memory_space<vmem>>, %arg7: memref<8x32x128xbf16, #tpu.memory_space<vmem>>, %arg8: memref<8x1x128xf32, #tpu.memory_space<vmem>>, %arg9: memref<16x8x128xf32, #tpu.memory_space<vmem>>) attributes {dimension_semantics = [#tpu.dimension_semantics<parallel>, #tpu.dimension_semantics<parallel>], iteration_bounds = array<i64: 4, 1>, scalar_prefetch = 0 : i64, scratch_operands = 0 : i64, tpu.core_type = #tpu.core_type<tc>, window_params = [{transform_indices = @transform_0, window_bounds = array<i64: 8, 16, 32>}, {pipeline_mode = #tpu.pipeline_mode<synchronous>, transform_indices = @transform_1, window_bounds = array<i64: 32, 32>}, {pipeline_mode = #tpu.pipeline_mode<synchronous>, transform_indices = @transform_2, window_bounds = array<i64: 1, 32>}, {pipeline_mode = #tpu.pipeline_mode<synchronous>, transform_indices = @transform_3, window_bounds = array<i64: 32, 128>}, {pipeline_mode = #tpu.pipeline_mode<synchronous>, transform_indices = @transform_4, window_bounds = array<i64: 1, 128>}, {transform_indices = @transform_5, window_bounds = array<i64: 8, 32, 128>}, {transform_indices = @transform_6, window_bounds = array<i64: 8, 1, 128>}, {transform_indices = @transform_7, window_bounds = array<i64: 16, 8, 128>}]} {
    %c0 = arith.constant 0 : index
    %c0_0 = arith.constant 0 : index
    %c0_1 = arith.constant 0 : index
    %0 = vector.load %arg2[%c0, %c0_0, %c0_1] : memref<8x16x32xf32, #tpu.memory_space<vmem>>, vector<8x16x32xf32>
    %1 = vector.shape_cast %0 : vector<8x16x32xf32> to vector<128x32xf32>
    %2 = arith.truncf %1 : vector<128x32xf32> to vector<128x32xbf16>
    %c0_2 = arith.constant 0 : index
    %c0_3 = arith.constant 0 : index
    %3 = vector.load %arg3[%c0_2, %c0_3] : memref<32x32xbf16, #tpu.memory_space<vmem>>, vector<32x32xbf16>
    %cst = arith.constant dense<0.000000e+00> : vector<128x32xf32>
    %4 = tpu.matmul %2, %3, %cst {dimension_numbers = #tpu.dot_dimension_numbers<[1], [0], [0], [1], [0, 0, 1, 1], [], []>} : vector<128x32xbf16>, vector<32x32xbf16>, vector<128x32xf32> -> vector<128x32xf32>
    %c0_4 = arith.constant 0 : index
    %c0_5 = arith.constant 0 : index
    %5 = vector.load %arg4[%c0_4, %c0_5] : memref<1x32xf32, #tpu.memory_space<vmem>>, vector<1x32xf32>
    %6 = vector.broadcast %5 : vector<1x32xf32> to vector<128x32xf32>
    %7 = arith.addf %4, %6 : vector<128x32xf32>
    %cst_6 = arith.constant 0.000000e+00 : f32
    %8 = vector.broadcast %cst_6 : f32 to vector<128x32xf32>
    %9 = arith.maximumf %7, %8 : vector<128x32xf32>
    %10 = arith.truncf %9 : vector<128x32xf32> to vector<128x32xbf16>
    %c0_7 = arith.constant 0 : index
    %c0_8 = arith.constant 0 : index
    %11 = vector.load %arg5[%c0_7, %c0_8] : memref<32x128xbf16, #tpu.memory_space<vmem>>, vector<32x128xbf16>
    %cst_9 = arith.constant dense<0.000000e+00> : vector<128x128xf32>
    %12 = tpu.matmul %10, %11, %cst_9 {dimension_numbers = #tpu.dot_dimension_numbers<[1], [0], [0], [1], [0, 0, 1, 1], [], []>} : vector<128x32xbf16>, vector<32x128xbf16>, vector<128x128xf32> -> vector<128x128xf32>
    %c0_10 = arith.constant 0 : index
    %c0_11 = arith.constant 0 : index
    %13 = vector.load %arg6[%c0_10, %c0_11] : memref<1x128xf32, #tpu.memory_space<vmem>>, vector<1x128xf32>
    %14 = vector.broadcast %13 : vector<1x128xf32> to vector<128x128xf32>
    %15 = arith.addf %12, %14 : vector<128x128xf32>
    %cst_12 = arith.constant dense<0xFF800000> : vector<128xf32>
    %16 = vector.multi_reduction <maximumf>, %15, %cst_12 [1] : vector<128x128xf32> to vector<128xf32>
    %17 = vector.shape_cast %16 : vector<128xf32> to vector<128x1xf32>
    %18 = vector.broadcast %17 : vector<128x1xf32> to vector<128x128xf32>
    %19 = arith.subf %15, %18 : vector<128x128xf32>
    %20 = math.exp %19 : vector<128x128xf32>
    %cst_13 = arith.constant dense<0.000000e+00> : vector<128xf32>
    %21 = vector.multi_reduction <add>, %20, %cst_13 [1] : vector<128x128xf32> to vector<128xf32>
    %22 = vector.shape_cast %21 : vector<128xf32> to vector<128x1xf32>
    %23 = math.log %22 : vector<128x1xf32>
    %24 = arith.addf %17, %23 : vector<128x1xf32>
    %25 = vector.shape_cast %10 : vector<128x32xbf16> to vector<8x16x32xbf16>
    %26 = vector.shape_cast %24 : vector<128x1xf32> to vector<8x16x1xf32>
    %27 = vector.extract_strided_slice %25 {offsets = [0, 0, 0], sizes = [1, 16, 32], strides = [1, 1, 1]} : vector<8x16x32xbf16> to vector<1x16x32xbf16>
    %28 = vector.shape_cast %27 : vector<1x16x32xbf16> to vector<16x32xbf16>
    %c0_14 = arith.constant 0 : index
    %c0_15 = arith.constant 0 : index
    %c0_16 = arith.constant 0 : index
    %29 = vector.load %arg7[%c0_14, %c0_15, %c0_16] : memref<8x32x128xbf16, #tpu.memory_space<vmem>>, vector<1x32x128xbf16>
    %30 = vector.shape_cast %29 : vector<1x32x128xbf16> to vector<32x128xbf16>
    %cst_17 = arith.constant dense<0.000000e+00> : vector<16x128xf32>
    %31 = tpu.matmul %28, %30, %cst_17 {dimension_numbers = #tpu.dot_dimension_numbers<[1], [0], [0], [1], [0, 0, 1, 1], [], []>} : vector<16x32xbf16>, vector<32x128xbf16>, vector<16x128xf32> -> vector<16x128xf32>
    %c0_18 = arith.constant 0 : index
    %c0_19 = arith.constant 0 : index
    %c0_20 = arith.constant 0 : index
    %32 = vector.load %arg8[%c0_18, %c0_19, %c0_20] : memref<8x1x128xf32, #tpu.memory_space<vmem>>, vector<1x1x128xf32>
    %33 = vector.shape_cast %32 : vector<1x1x128xf32> to vector<1x128xf32>
    %34 = vector.broadcast %33 : vector<1x128xf32> to vector<16x128xf32>
    %35 = arith.addf %31, %34 : vector<16x128xf32>
    %36 = vector.extract_strided_slice %26 {offsets = [0, 0, 0], sizes = [1, 16, 1], strides = [1, 1, 1]} : vector<8x16x1xf32> to vector<1x16x1xf32>
    %37 = vector.shape_cast %36 : vector<1x16x1xf32> to vector<16x1xf32>
    %38 = vector.broadcast %37 : vector<16x1xf32> to vector<16x128xf32>
    %39 = arith.subf %35, %38 : vector<16x128xf32>
    %c0_21 = arith.constant 0 : index
    %c0_22 = arith.constant 0 : index
    %c0_23 = arith.constant 0 : index
    %40 = vector.load %arg9[%c0_21, %c0_22, %c0_23] : memref<16x8x128xf32, #tpu.memory_space<vmem>>, vector<16x1x128xf32>
    %41 = vector.shape_cast %40 : vector<16x1x128xf32> to vector<16x128xf32>
    %42 = vector.shape_cast %39 : vector<16x128xf32> to vector<16x1x128xf32>
    tpu.vector_store %arg9[%c0_21, %c0_22, %c0_23], %42 {strides = array<i32>} : memref<16x8x128xf32, #tpu.memory_space<vmem>>, vector<16x1x128xf32>,
    %43 = vector.extract_strided_slice %25 {offsets = [1, 0, 0], sizes = [1, 16, 32], strides = [1, 1, 1]} : vector<8x16x32xbf16> to vector<1x16x32xbf16>
    %44 = vector.shape_cast %43 : vector<1x16x32xbf16> to vector<16x32xbf16>
    %c1 = arith.constant 1 : index
    %c0_24 = arith.constant 0 : index
    %c0_25 = arith.constant 0 : index
    %45 = vector.load %arg7[%c1, %c0_24, %c0_25] : memref<8x32x128xbf16, #tpu.memory_space<vmem>>, vector<1x32x128xbf16>
    %46 = vector.shape_cast %45 : vector<1x32x128xbf16> to vector<32x128xbf16>
    %cst_26 = arith.constant dense<0.000000e+00> : vector<16x128xf32>
    %47 = tpu.matmul %44, %46, %cst_26 {dimension_numbers = #tpu.dot_dimension_numbers<[1], [0], [0], [1], [0, 0, 1, 1], [], []>} : vector<16x32xbf16>, vector<32x128xbf16>, vector<16x128xf32> -> vector<16x128xf32>
    %c1_27 = arith.constant 1 : index
    %c0_28 = arith.constant 0 : index
    %c0_29 = arith.constant 0 : index
    %48 = vector.load %arg8[%c1_27, %c0_28, %c0_29] : memref<8x1x128xf32, #tpu.memory_space<vmem>>, vector<1x1x128xf32>
    %49 = vector.shape_cast %48 : vector<1x1x128xf32> to vector<1x128xf32>
    %50 = vector.broadcast %49 : vector<1x128xf32> to vector<16x128xf32>
    %51 = arith.addf %47, %50 : vector<16x128xf32>
    %52 = vector.extract_strided_slice %26 {offsets = [1, 0, 0], sizes = [1, 16, 1], strides = [1, 1, 1]} : vector<8x16x1xf32> to vector<1x16x1xf32>
    %53 = vector.shape_cast %52 : vector<1x16x1xf32> to vector<16x1xf32>
    %54 = vector.broadcast %53 : vector<16x1xf32> to vector<16x128xf32>
    %55 = arith.subf %51, %54 : vector<16x128xf32>
    %c0_30 = arith.constant 0 : index
    %c1_31 = arith.constant 1 : index
    %c0_32 = arith.constant 0 : index
    %56 = vector.load %arg9[%c0_30, %c1_31, %c0_32] : memref<16x8x128xf32, #tpu.memory_space<vmem>>, vector<16x1x128xf32>
    %57 = vector.shape_cast %56 : vector<16x1x128xf32> to vector<16x128xf32>
    %58 = vector.shape_cast %55 : vector<16x128xf32> to vector<16x1x128xf32>
    tpu.vector_store %arg9[%c0_30, %c1_31, %c0_32], %58 {strides = array<i32>} : memref<16x8x128xf32, #tpu.memory_space<vmem>>, vector<16x1x128xf32>,
    %59 = vector.extract_strided_slice %25 {offsets = [2, 0, 0], sizes = [1, 16, 32], strides = [1, 1, 1]} : vector<8x16x32xbf16> to vector<1x16x32xbf16>
    %60 = vector.shape_cast %59 : vector<1x16x32xbf16> to vector<16x32xbf16>
    %c2 = arith.constant 2 : index
    %c0_33 = arith.constant 0 : index
    %c0_34 = arith.constant 0 : index
    %61 = vector.load %arg7[%c2, %c0_33, %c0_34] : memref<8x32x128xbf16, #tpu.memory_space<vmem>>, vector<1x32x128xbf16>
    %62 = vector.shape_cast %61 : vector<1x32x128xbf16> to vector<32x128xbf16>
    %cst_35 = arith.constant dense<0.000000e+00> : vector<16x128xf32>
    %63 = tpu.matmul %60, %62, %cst_35 {dimension_numbers = #tpu.dot_dimension_numbers<[1], [0], [0], [1], [0, 0, 1, 1], [], []>} : vector<16x32xbf16>, vector<32x128xbf16>, vector<16x128xf32> -> vector<16x128xf32>
    %c2_36 = arith.constant 2 : index
    %c0_37 = arith.constant 0 : index
    %c0_38 = arith.constant 0 : index
    %64 = vector.load %arg8[%c2_36, %c0_37, %c0_38] : memref<8x1x128xf32, #tpu.memory_space<vmem>>, vector<1x1x128xf32>
    %65 = vector.shape_cast %64 : vector<1x1x128xf32> to vector<1x128xf32>
    %66 = vector.broadcast %65 : vector<1x128xf32> to vector<16x128xf32>
    %67 = arith.addf %63, %66 : vector<16x128xf32>
    %68 = vector.extract_strided_slice %26 {offsets = [2, 0, 0], sizes = [1, 16, 1], strides = [1, 1, 1]} : vector<8x16x1xf32> to vector<1x16x1xf32>
    %69 = vector.shape_cast %68 : vector<1x16x1xf32> to vector<16x1xf32>
    %70 = vector.broadcast %69 : vector<16x1xf32> to vector<16x128xf32>
    %71 = arith.subf %67, %70 : vector<16x128xf32>
    %c0_39 = arith.constant 0 : index
    %c2_40 = arith.constant 2 : index
    %c0_41 = arith.constant 0 : index
    %72 = vector.load %arg9[%c0_39, %c2_40, %c0_41] : memref<16x8x128xf32, #tpu.memory_space<vmem>>, vector<16x1x128xf32>
    %73 = vector.shape_cast %72 : vector<16x1x128xf32> to vector<16x128xf32>
    %74 = vector.shape_cast %71 : vector<16x128xf32> to vector<16x1x128xf32>
    tpu.vector_store %arg9[%c0_39, %c2_40, %c0_41], %74 {strides = array<i32>} : memref<16x8x128xf32, #tpu.memory_space<vmem>>, vector<16x1x128xf32>,
    %75 = vector.extract_strided_slice %25 {offsets = [3, 0, 0], sizes = [1, 16, 32], strides = [1, 1, 1]} : vector<8x16x32xbf16> to vector<1x16x32xbf16>
    %76 = vector.shape_cast %75 : vector<1x16x32xbf16> to vector<16x32xbf16>
    %c3 = arith.constant 3 : index
    %c0_42 = arith.constant 0 : index
    %c0_43 = arith.constant 0 : index
    %77 = vector.load %arg7[%c3, %c0_42, %c0_43] : memref<8x32x128xbf16, #tpu.memory_space<vmem>>, vector<1x32x128xbf16>
    %78 = vector.shape_cast %77 : vector<1x32x128xbf16> to vector<32x128xbf16>
    %cst_44 = arith.constant dense<0.000000e+00> : vector<16x128xf32>
    %79 = tpu.matmul %76, %78, %cst_44 {dimension_numbers = #tpu.dot_dimension_numbers<[1], [0], [0], [1], [0, 0, 1, 1], [], []>} : vector<16x32xbf16>, vector<32x128xbf16>, vector<16x128xf32> -> vector<16x128xf32>
    %c3_45 = arith.constant 3 : index
    %c0_46 = arith.constant 0 : index
    %c0_47 = arith.constant 0 : index
    %80 = vector.load %arg8[%c3_45, %c0_46, %c0_47] : memref<8x1x128xf32, #tpu.memory_space<vmem>>, vector<1x1x128xf32>
    %81 = vector.shape_cast %80 : vector<1x1x128xf32> to vector<1x128xf32>
    %82 = vector.broadcast %81 : vector<1x128xf32> to vector<16x128xf32>
    %83 = arith.addf %79, %82 : vector<16x128xf32>
    %84 = vector.extract_strided_slice %26 {offsets = [3, 0, 0], sizes = [1, 16, 1], strides = [1, 1, 1]} : vector<8x16x1xf32> to vector<1x16x1xf32>
    %85 = vector.shape_cast %84 : vector<1x16x1xf32> to vector<16x1xf32>
    %86 = vector.broadcast %85 : vector<16x1xf32> to vector<16x128xf32>
    %87 = arith.subf %83, %86 : vector<16x128xf32>
    %c0_48 = arith.constant 0 : index
    %c3_49 = arith.constant 3 : index
    %c0_50 = arith.constant 0 : index
    %88 = vector.load %arg9[%c0_48, %c3_49, %c0_50] : memref<16x8x128xf32, #tpu.memory_space<vmem>>, vector<16x1x128xf32>
    %89 = vector.shape_cast %88 : vector<16x1x128xf32> to vector<16x128xf32>
    %90 = vector.shape_cast %87 : vector<16x128xf32> to vector<16x1x128xf32>
    tpu.vector_store %arg9[%c0_48, %c3_49, %c0_50], %90 {strides = array<i32>} : memref<16x8x128xf32, #tpu.memory_space<vmem>>, vector<16x1x128xf32>,
    %91 = vector.extract_strided_slice %25 {offsets = [4, 0, 0], sizes = [1, 16, 32], strides = [1, 1, 1]} : vector<8x16x32xbf16> to vector<1x16x32xbf16>
    %92 = vector.shape_cast %91 : vector<1x16x32xbf16> to vector<16x32xbf16>
    %c4 = arith.constant 4 : index
    %c0_51 = arith.constant 0 : index
    %c0_52 = arith.constant 0 : index
    %93 = vector.load %arg7[%c4, %c0_51, %c0_52] : memref<8x32x128xbf16, #tpu.memory_space<vmem>>, vector<1x32x128xbf16>
    %94 = vector.shape_cast %93 : vector<1x32x128xbf16> to vector<32x128xbf16>
    %cst_53 = arith.constant dense<0.000000e+00> : vector<16x128xf32>
    %95 = tpu.matmul %92, %94, %cst_53 {dimension_numbers = #tpu.dot_dimension_numbers<[1], [0], [0], [1], [0, 0, 1, 1], [], []>} : vector<16x32xbf16>, vector<32x128xbf16>, vector<16x128xf32> -> vector<16x128xf32>
    %c4_54 = arith.constant 4 : index
    %c0_55 = arith.constant 0 : index
    %c0_56 = arith.constant 0 : index
    %96 = vector.load %arg8[%c4_54, %c0_55, %c0_56] : memref<8x1x128xf32, #tpu.memory_space<vmem>>, vector<1x1x128xf32>
    %97 = vector.shape_cast %96 : vector<1x1x128xf32> to vector<1x128xf32>
    %98 = vector.broadcast %97 : vector<1x128xf32> to vector<16x128xf32>
    %99 = arith.addf %95, %98 : vector<16x128xf32>
    %100 = vector.extract_strided_slice %26 {offsets = [4, 0, 0], sizes = [1, 16, 1], strides = [1, 1, 1]} : vector<8x16x1xf32> to vector<1x16x1xf32>
    %101 = vector.shape_cast %100 : vector<1x16x1xf32> to vector<16x1xf32>
    %102 = vector.broadcast %101 : vector<16x1xf32> to vector<16x128xf32>
    %103 = arith.subf %99, %102 : vector<16x128xf32>
    %c0_57 = arith.constant 0 : index
    %c4_58 = arith.constant 4 : index
    %c0_59 = arith.constant 0 : index
    %104 = vector.load %arg9[%c0_57, %c4_58, %c0_59] : memref<16x8x128xf32, #tpu.memory_space<vmem>>, vector<16x1x128xf32>
    %105 = vector.shape_cast %104 : vector<16x1x128xf32> to vector<16x128xf32>
    %106 = vector.shape_cast %103 : vector<16x128xf32> to vector<16x1x128xf32>
    tpu.vector_store %arg9[%c0_57, %c4_58, %c0_59], %106 {strides = array<i32>} : memref<16x8x128xf32, #tpu.memory_space<vmem>>, vector<16x1x128xf32>,
    %107 = vector.extract_strided_slice %25 {offsets = [5, 0, 0], sizes = [1, 16, 32], strides = [1, 1, 1]} : vector<8x16x32xbf16> to vector<1x16x32xbf16>
    %108 = vector.shape_cast %107 : vector<1x16x32xbf16> to vector<16x32xbf16>
    %c5 = arith.constant 5 : index
    %c0_60 = arith.constant 0 : index
    %c0_61 = arith.constant 0 : index
    %109 = vector.load %arg7[%c5, %c0_60, %c0_61] : memref<8x32x128xbf16, #tpu.memory_space<vmem>>, vector<1x32x128xbf16>
    %110 = vector.shape_cast %109 : vector<1x32x128xbf16> to vector<32x128xbf16>
    %cst_62 = arith.constant dense<0.000000e+00> : vector<16x128xf32>
    %111 = tpu.matmul %108, %110, %cst_62 {dimension_numbers = #tpu.dot_dimension_numbers<[1], [0], [0], [1], [0, 0, 1, 1], [], []>} : vector<16x32xbf16>, vector<32x128xbf16>, vector<16x128xf32> -> vector<16x128xf32>
    %c5_63 = arith.constant 5 : index
    %c0_64 = arith.constant 0 : index
    %c0_65 = arith.constant 0 : index
    %112 = vector.load %arg8[%c5_63, %c0_64, %c0_65] : memref<8x1x128xf32, #tpu.memory_space<vmem>>, vector<1x1x128xf32>
    %113 = vector.shape_cast %112 : vector<1x1x128xf32> to vector<1x128xf32>
    %114 = vector.broadcast %113 : vector<1x128xf32> to vector<16x128xf32>
    %115 = arith.addf %111, %114 : vector<16x128xf32>
    %116 = vector.extract_strided_slice %26 {offsets = [5, 0, 0], sizes = [1, 16, 1], strides = [1, 1, 1]} : vector<8x16x1xf32> to vector<1x16x1xf32>
    %117 = vector.shape_cast %116 : vector<1x16x1xf32> to vector<16x1xf32>
    %118 = vector.broadcast %117 : vector<16x1xf32> to vector<16x128xf32>
    %119 = arith.subf %115, %118 : vector<16x128xf32>
    %c0_66 = arith.constant 0 : index
    %c5_67 = arith.constant 5 : index
    %c0_68 = arith.constant 0 : index
    %120 = vector.load %arg9[%c0_66, %c5_67, %c0_68] : memref<16x8x128xf32, #tpu.memory_space<vmem>>, vector<16x1x128xf32>
    %121 = vector.shape_cast %120 : vector<16x1x128xf32> to vector<16x128xf32>
    %122 = vector.shape_cast %119 : vector<16x128xf32> to vector<16x1x128xf32>
    tpu.vector_store %arg9[%c0_66, %c5_67, %c0_68], %122 {strides = array<i32>} : memref<16x8x128xf32, #tpu.memory_space<vmem>>, vector<16x1x128xf32>,
    %123 = vector.extract_strided_slice %25 {offsets = [6, 0, 0], sizes = [1, 16, 32], strides = [1, 1, 1]} : vector<8x16x32xbf16> to vector<1x16x32xbf16>
    %124 = vector.shape_cast %123 : vector<1x16x32xbf16> to vector<16x32xbf16>
    %c6 = arith.constant 6 : index
    %c0_69 = arith.constant 0 : index
    %c0_70 = arith.constant 0 : index
    %125 = vector.load %arg7[%c6, %c0_69, %c0_70] : memref<8x32x128xbf16, #tpu.memory_space<vmem>>, vector<1x32x128xbf16>
    %126 = vector.shape_cast %125 : vector<1x32x128xbf16> to vector<32x128xbf16>
    %cst_71 = arith.constant dense<0.000000e+00> : vector<16x128xf32>
    %127 = tpu.matmul %124, %126, %cst_71 {dimension_numbers = #tpu.dot_dimension_numbers<[1], [0], [0], [1], [0, 0, 1, 1], [], []>} : vector<16x32xbf16>, vector<32x128xbf16>, vector<16x128xf32> -> vector<16x128xf32>
    %c6_72 = arith.constant 6 : index
    %c0_73 = arith.constant 0 : index
    %c0_74 = arith.constant 0 : index
    %128 = vector.load %arg8[%c6_72, %c0_73, %c0_74] : memref<8x1x128xf32, #tpu.memory_space<vmem>>, vector<1x1x128xf32>
    %129 = vector.shape_cast %128 : vector<1x1x128xf32> to vector<1x128xf32>
    %130 = vector.broadcast %129 : vector<1x128xf32> to vector<16x128xf32>
    %131 = arith.addf %127, %130 : vector<16x128xf32>
    %132 = vector.extract_strided_slice %26 {offsets = [6, 0, 0], sizes = [1, 16, 1], strides = [1, 1, 1]} : vector<8x16x1xf32> to vector<1x16x1xf32>
    %133 = vector.shape_cast %132 : vector<1x16x1xf32> to vector<16x1xf32>
    %134 = vector.broadcast %133 : vector<16x1xf32> to vector<16x128xf32>
    %135 = arith.subf %131, %134 : vector<16x128xf32>
    %c0_75 = arith.constant 0 : index
    %c6_76 = arith.constant 6 : index
    %c0_77 = arith.constant 0 : index
    %136 = vector.load %arg9[%c0_75, %c6_76, %c0_77] : memref<16x8x128xf32, #tpu.memory_space<vmem>>, vector<16x1x128xf32>
    %137 = vector.shape_cast %136 : vector<16x1x128xf32> to vector<16x128xf32>
    %138 = vector.shape_cast %135 : vector<16x128xf32> to vector<16x1x128xf32>
    tpu.vector_store %arg9[%c0_75, %c6_76, %c0_77], %138 {strides = array<i32>} : memref<16x8x128xf32, #tpu.memory_space<vmem>>, vector<16x1x128xf32>,
    %139 = vector.extract_strided_slice %25 {offsets = [7, 0, 0], sizes = [1, 16, 32], strides = [1, 1, 1]} : vector<8x16x32xbf16> to vector<1x16x32xbf16>
    %140 = vector.shape_cast %139 : vector<1x16x32xbf16> to vector<16x32xbf16>
    %c7 = arith.constant 7 : index
    %c0_78 = arith.constant 0 : index
    %c0_79 = arith.constant 0 : index
    %141 = vector.load %arg7[%c7, %c0_78, %c0_79] : memref<8x32x128xbf16, #tpu.memory_space<vmem>>, vector<1x32x128xbf16>
    %142 = vector.shape_cast %141 : vector<1x32x128xbf16> to vector<32x128xbf16>
    %cst_80 = arith.constant dense<0.000000e+00> : vector<16x128xf32>
    %143 = tpu.matmul %140, %142, %cst_80 {dimension_numbers = #tpu.dot_dimension_numbers<[1], [0], [0], [1], [0, 0, 1, 1], [], []>} : vector<16x32xbf16>, vector<32x128xbf16>, vector<16x128xf32> -> vector<16x128xf32>
    %c7_81 = arith.constant 7 : index
    %c0_82 = arith.constant 0 : index
    %c0_83 = arith.constant 0 : index
    %144 = vector.load %arg8[%c7_81, %c0_82, %c0_83] : memref<8x1x128xf32, #tpu.memory_space<vmem>>, vector<1x1x128xf32>
    %145 = vector.shape_cast %144 : vector<1x1x128xf32> to vector<1x128xf32>
    %146 = vector.broadcast %145 : vector<1x128xf32> to vector<16x128xf32>
    %147 = arith.addf %143, %146 : vector<16x128xf32>
    %148 = vector.extract_strided_slice %26 {offsets = [7, 0, 0], sizes = [1, 16, 1], strides = [1, 1, 1]} : vector<8x16x1xf32> to vector<1x16x1xf32>
    %149 = vector.shape_cast %148 : vector<1x16x1xf32> to vector<16x1xf32>
    %150 = vector.broadcast %149 : vector<16x1xf32> to vector<16x128xf32>
    %151 = arith.subf %147, %150 : vector<16x128xf32>
    %c0_84 = arith.constant 0 : index
    %c7_85 = arith.constant 7 : index
    %c0_86 = arith.constant 0 : index
    %152 = vector.load %arg9[%c0_84, %c7_85, %c0_86] : memref<16x8x128xf32, #tpu.memory_space<vmem>>, vector<16x1x128xf32>
    %153 = vector.shape_cast %152 : vector<16x1x128xf32> to vector<16x128xf32>
    %154 = vector.shape_cast %151 : vector<16x128xf32> to vector<16x1x128xf32>
    tpu.vector_store %arg9[%c0_84, %c7_85, %c0_86], %154 {strides = array<i32>} : memref<16x8x128xf32, #tpu.memory_space<vmem>>, vector<16x1x128xf32>,
    return
  }
  func.func @transform_0(%arg0: i32, %arg1: i32) -> (i32, i32, i32) {
    %c0_i32 = arith.constant 0 : i32
    %c0_i32_0 = arith.constant 0 : i32
    return %arg0, %arg1, %c0_i32 : i32, i32, i32
  }
  func.func @transform_1(%arg0: i32, %arg1: i32) -> (i32, i32) {
    %c0_i32 = arith.constant 0 : i32
    %c0_i32_0 = arith.constant 0 : i32
    %c0_i32_1 = arith.constant 0 : i32
    return %c0_i32, %c0_i32_0 : i32, i32
  }
  func.func @transform_2(%arg0: i32, %arg1: i32) -> (i32, i32) {
    %c0_i32 = arith.constant 0 : i32
    %c0_i32_0 = arith.constant 0 : i32
    %c0_i32_1 = arith.constant 0 : i32
    return %c0_i32, %c0_i32_0 : i32, i32
  }
  func.func @transform_3(%arg0: i32, %arg1: i32) -> (i32, i32) {
    %c0_i32 = arith.constant 0 : i32
    %c0_i32_0 = arith.constant 0 : i32
    %c0_i32_1 = arith.constant 0 : i32
    return %c0_i32, %c0_i32_0 : i32, i32
  }
  func.func @transform_4(%arg0: i32, %arg1: i32) -> (i32, i32) {
    %c0_i32 = arith.constant 0 : i32
    %c0_i32_0 = arith.constant 0 : i32
    %c0_i32_1 = arith.constant 0 : i32
    return %c0_i32, %c0_i32_0 : i32, i32
  }
  func.func @transform_5(%arg0: i32, %arg1: i32) -> (i32, i32, i32) {
    %c0_i32 = arith.constant 0 : i32
    %c0_i32_0 = arith.constant 0 : i32
    %c0_i32_1 = arith.constant 0 : i32
    return %arg0, %c0_i32, %c0_i32_0 : i32, i32, i32
  }
  func.func @transform_6(%arg0: i32, %arg1: i32) -> (i32, i32, i32) {
    %c0_i32 = arith.constant 0 : i32
    %c0_i32_0 = arith.constant 0 : i32
    %c0_i32_1 = arith.constant 0 : i32
    return %arg0, %c0_i32, %c0_i32_0 : i32, i32, i32
  }
  func.func @transform_7(%arg0: i32, %arg1: i32) -> (i32, i32, i32) {
    %c0_i32 = arith.constant 0 : i32
    %c0_i32_0 = arith.constant 0 : i32
    return %arg1, %arg0, %c0_i32 : i32, i32, i32
  }
}

module attributes {stable_mosaic.version = 11 : i64} {
  func.func @ctc_alpha_kernel(%arg0: i32, %arg1: i32, %arg2: memref<1xi32, #tpu.memory_space<smem>>, %arg3: memref<32x1xi32, #tpu.memory_space<vmem>>, %arg4: memref<32x1xi32, #tpu.memory_space<vmem>>, %arg5: memref<32x128xi32, #tpu.memory_space<vmem>>, %arg6: memref<16x32x128xf32, #tpu.memory_space<vmem>>, %arg7: memref<32x128xf32, #tpu.memory_space<vmem>>, %arg8: memref<32x128xf32, #tpu.memory_space<vmem>>) attributes {dimension_semantics = [#tpu.dimension_semantics<parallel>, #tpu.dimension_semantics<arbitrary>], iteration_bounds = array<i64: 1, 1>, scalar_prefetch = 0 : i64, scratch_operands = 1 : i64, tpu.core_type = #tpu.core_type<tc>, window_params = [{transform_indices = @transform_0, window_bounds = array<i64: 1>}, {transform_indices = @transform_1, window_bounds = array<i64: 32, 1>}, {transform_indices = @transform_2, window_bounds = array<i64: 32, 1>}, {transform_indices = @transform_3, window_bounds = array<i64: 32, 128>}, {transform_indices = @transform_4, window_bounds = array<i64: 16, 32, 128>}, {transform_indices = @transform_5, window_bounds = array<i64: 32, 128>}]} {
    %0 = tpu.iota {dimensions = array<i32: 1>} : vector<32x128xi32>
    %c0 = arith.constant 0 : index
    %c0_0 = arith.constant 0 : index
    %1 = vector.load %arg4[%c0, %c0_0] : memref<32x1xi32, #tpu.memory_space<vmem>>, vector<32x1xi32>
    %c0_1 = arith.constant 0 : index
    %c0_2 = arith.constant 0 : index
    %2 = vector.load %arg3[%c0_1, %c0_2] : memref<32x1xi32, #tpu.memory_space<vmem>>, vector<32x1xi32>
    %c0_3 = arith.constant 0 : index
    %c0_4 = arith.constant 0 : index
    %3 = vector.load %arg5[%c0_3, %c0_4] : memref<32x128xi32, #tpu.memory_space<vmem>>, vector<32x128xi32>
    %4 = arith.sitofp %3 : vector<32x128xi32> to vector<32x128xf32>
    %c2_i32 = arith.constant 2 : i32
    %5 = tpu.dynamic_rotate %4 by %c2_i32 dim 1 : vector<32x128xf32>, i32 -> vector<32x128xf32>
    %c1_i32 = arith.constant 1 : i32
    %6 = vector.broadcast %c1_i32 : i32 to vector<32x128xi32>
    %7 = arith.andi %0, %6 : vector<32x128xi32>
    %c1_i32_5 = arith.constant 1 : i32
    %8 = vector.broadcast %c1_i32_5 : i32 to vector<32x128xi32>
    %9 = arith.cmpi eq, %7, %8 : vector<32x128xi32>
    %c2_i32_6 = arith.constant 2 : i32
    %10 = vector.broadcast %c2_i32_6 : i32 to vector<32x128xi32>
    %11 = arith.cmpi sge, %0, %10 : vector<32x128xi32>
    %12 = arith.andi %9, %11 : vector<32x128xi1>
    %13 = arith.cmpf one, %4, %5 : vector<32x128xf32>
    %14 = arith.andi %12, %13 : vector<32x128xi1>
    %c0_i32 = arith.constant 0 : i32
    %15 = arith.cmpi eq, %arg1, %c0_i32 : i32
    %16 = arith.extui %15 : i1 to i32
    %c0_i32_7 = arith.constant 0 : i32
    %17 = arith.cmpi ne, %16, %c0_i32_7 : i32
    scf.if %17 {
      %c0_i32_18 = arith.constant 0 : i32
      %32 = vector.broadcast %c0_i32_18 : i32 to vector<32x128xi32>
      %33 = arith.cmpi eq, %0, %32 : vector<32x128xi32>
      %cst = arith.constant 0.000000e+00 : f32
      %cst_19 = arith.constant -1.000000e+30 : f32
      %34 = vector.broadcast %cst : f32 to vector<32x128xf32>
      %35 = vector.broadcast %cst_19 : f32 to vector<32x128xf32>
      %36 = arith.select %33, %34, %35 : vector<32x128xi1>, vector<32x128xf32>
      %c0_20 = arith.constant 0 : index
      %c0_21 = arith.constant 0 : index
      %37 = vector.load %arg8[%c0_20, %c0_21] : memref<32x128xf32, #tpu.memory_space<vmem>>, vector<32x128xf32>
      tpu.vector_store %arg8[%c0_20, %c0_21], %36 {strides = array<i32>} : memref<32x128xf32, #tpu.memory_space<vmem>>, vector<32x128xf32>,
    } else {
    }
    %c16_i32 = arith.constant 16 : i32
    %18 = arith.muli %arg1, %c16_i32 : i32
    %19 = arith.index_cast %arg0 : i32 to index
    %20 = memref.load %arg2[%19] : memref<1xi32, #tpu.memory_space<smem>>
    %21 = arith.subi %20, %18 : i32
    %c0_i32_8 = arith.constant 0 : i32
    %c16_i32_9 = arith.constant 16 : i32
    %22 = arith.maxsi %c0_i32_8, %21 : i32
    %23 = arith.minsi %c16_i32_9, %22 : i32
    %c0_10 = arith.constant 0 : index
    %c0_11 = arith.constant 0 : index
    %24 = vector.load %arg8[%c0_10, %c0_11] : memref<32x128xf32, #tpu.memory_space<vmem>>, vector<32x128xf32>
    %c0_i32_12 = arith.constant 0 : i32
    %25 = arith.subi %23, %c0_i32_12 : i32
    %26 = arith.addi %c0_i32_12, %25 : i32
    %c1_i32_13 = arith.constant 1 : i32
    %27 = scf.for %arg9 = %c0_i32_12 to %26 step %c1_i32_13 iter_args(%arg10 = %24) -> (vector<32x128xf32>)  : i32 {
      %32 = arith.index_cast %arg9 : i32 to index
      %c0_18 = arith.constant 0 : index
      %c0_19 = arith.constant 0 : index
      %33 = vector.load %arg6[%32, %c0_18, %c0_19] : memref<16x32x128xf32, #tpu.memory_space<vmem>>, vector<1x32x128xf32>
      %34 = vector.shape_cast %33 : vector<1x32x128xf32> to vector<32x128xf32>
      %c1_i32_20 = arith.constant 1 : i32
      %35 = vector.broadcast %c1_i32_20 : i32 to vector<32x128xi32>
      %36 = arith.cmpi sge, %0, %35 : vector<32x128xi32>
      %c1_i32_21 = arith.constant 1 : i32
      %37 = tpu.dynamic_rotate %arg10 by %c1_i32_21 dim 1 : vector<32x128xf32>, i32 -> vector<32x128xf32>
      %cst = arith.constant -1.000000e+30 : f32
      %38 = vector.broadcast %cst : f32 to vector<32x128xf32>
      %39 = arith.select %36, %37, %38 : vector<32x128xi1>, vector<32x128xf32>
      %c2_i32_22 = arith.constant 2 : i32
      %40 = tpu.dynamic_rotate %arg10 by %c2_i32_22 dim 1 : vector<32x128xf32>, i32 -> vector<32x128xf32>
      %cst_23 = arith.constant -1.000000e+30 : f32
      %41 = vector.broadcast %cst_23 : f32 to vector<32x128xf32>
      %42 = arith.select %14, %40, %41 : vector<32x128xi1>, vector<32x128xf32>
      %43 = arith.maximumf %arg10, %39 : vector<32x128xf32>
      %44 = arith.maximumf %43, %42 : vector<32x128xf32>
      %45 = arith.subf %arg10, %44 : vector<32x128xf32>
      %46 = math.exp %45 : vector<32x128xf32>
      %47 = arith.subf %39, %44 : vector<32x128xf32>
      %48 = math.exp %47 : vector<32x128xf32>
      %49 = arith.addf %46, %48 : vector<32x128xf32>
      %50 = arith.subf %42, %44 : vector<32x128xf32>
      %51 = math.exp %50 : vector<32x128xf32>
      %52 = arith.addf %49, %51 : vector<32x128xf32>
      %53 = math.log %52 : vector<32x128xf32>
      %54 = arith.addf %44, %53 : vector<32x128xf32>
      %55 = vector.broadcast %1 : vector<32x1xi32> to vector<32x128xi32>
      %56 = arith.cmpi slt, %0, %55 : vector<32x128xi32>
      %57 = arith.addf %34, %54 : vector<32x128xf32>
      %cst_24 = arith.constant -1.000000e+30 : f32
      %58 = vector.broadcast %cst_24 : f32 to vector<32x128xf32>
      %59 = arith.select %56, %57, %58 : vector<32x128xi1>, vector<32x128xf32>
      %60 = arith.addi %18, %arg9 : i32
      %61 = vector.broadcast %60 : i32 to vector<32x1xi32>
      %62 = arith.cmpi slt, %61, %2 : vector<32x1xi32>
      %63 = vector.shape_cast %62 : vector<32x1xi1> to vector<32x1xi1>
      %64 = vector.broadcast %63 : vector<32x1xi1> to vector<32x128xi1>
      %65 = arith.select %64, %59, %arg10 : vector<32x128xi1>, vector<32x128xf32>
      scf.yield %65 : vector<32x128xf32>
    }
    %c0_14 = arith.constant 0 : index
    %c0_15 = arith.constant 0 : index
    %28 = vector.load %arg8[%c0_14, %c0_15] : memref<32x128xf32, #tpu.memory_space<vmem>>, vector<32x128xf32>
    tpu.vector_store %arg8[%c0_14, %c0_15], %27 {strides = array<i32>} : memref<32x128xf32, #tpu.memory_space<vmem>>, vector<32x128xf32>,
    %c0_i32_16 = arith.constant 0 : i32
    %29 = arith.cmpi eq, %arg1, %c0_i32_16 : i32
    %30 = arith.extui %29 : i1 to i32
    %c0_i32_17 = arith.constant 0 : i32
    %31 = arith.cmpi ne, %30, %c0_i32_17 : i32
    scf.if %31 {
      %c0_18 = arith.constant 0 : index
      %c0_19 = arith.constant 0 : index
      %32 = vector.load %arg8[%c0_18, %c0_19] : memref<32x128xf32, #tpu.memory_space<vmem>>, vector<32x128xf32>
      %c1_i32_20 = arith.constant 1 : i32
      %33 = vector.broadcast %c1_i32_20 : i32 to vector<32x1xi32>
      %34 = arith.subi %1, %33 : vector<32x1xi32>
      %35 = vector.broadcast %34 : vector<32x1xi32> to vector<32x128xi32>
      %36 = arith.cmpi eq, %0, %35 : vector<32x128xi32>
      %c2_i32_21 = arith.constant 2 : i32
      %37 = vector.broadcast %c2_i32_21 : i32 to vector<32x1xi32>
      %38 = arith.subi %1, %37 : vector<32x1xi32>
      %39 = vector.broadcast %38 : vector<32x1xi32> to vector<32x128xi32>
      %40 = arith.cmpi eq, %0, %39 : vector<32x128xi32>
      %41 = arith.ori %36, %40 : vector<32x128xi1>
      %cst = arith.constant -1.000000e+30 : f32
      %42 = vector.broadcast %cst : f32 to vector<32x128xf32>
      %43 = arith.select %41, %32, %42 : vector<32x128xi1>, vector<32x128xf32>
      %cst_22 = arith.constant dense<0xFF800000> : vector<32xf32>
      %44 = vector.multi_reduction <maximumf>, %43, %cst_22 [1] : vector<32x128xf32> to vector<32xf32>
      %45 = vector.shape_cast %44 : vector<32xf32> to vector<32x1xf32>
      %46 = vector.broadcast %45 : vector<32x1xf32> to vector<32x128xf32>
      %47 = arith.subf %43, %46 : vector<32x128xf32>
      %48 = math.exp %47 : vector<32x128xf32>
      %cst_23 = arith.constant dense<0.000000e+00> : vector<32xf32>
      %49 = vector.multi_reduction <add>, %48, %cst_23 [1] : vector<32x128xf32> to vector<32xf32>
      %50 = vector.shape_cast %49 : vector<32xf32> to vector<32x1xf32>
      %51 = math.log %50 : vector<32x1xf32>
      %52 = arith.addf %45, %51 : vector<32x1xf32>
      %cst_24 = arith.constant 0.000000e+00 : f32
      %53 = vector.broadcast %cst_24 : f32 to vector<32x1xf32>
      %54 = arith.subf %53, %52 : vector<32x1xf32>
      %55 = vector.shape_cast %54 : vector<32x1xf32> to vector<32x1xf32>
      %56 = vector.broadcast %55 : vector<32x1xf32> to vector<32x128xf32>
      %c0_25 = arith.constant 0 : index
      %c0_26 = arith.constant 0 : index
      %57 = vector.load %arg7[%c0_25, %c0_26] : memref<32x128xf32, #tpu.memory_space<vmem>>, vector<32x128xf32>
      tpu.vector_store %arg7[%c0_25, %c0_26], %56 {strides = array<i32>} : memref<32x128xf32, #tpu.memory_space<vmem>>, vector<32x128xf32>,
    } else {
    }
    return
  }
  func.func @transform_0(%arg0: i32, %arg1: i32) -> i32 {
    %c0_i32 = arith.constant 0 : i32
    %c0_i32_0 = arith.constant 0 : i32
    return %c0_i32 : i32
  }
  func.func @transform_1(%arg0: i32, %arg1: i32) -> (i32, i32) {
    %c0_i32 = arith.constant 0 : i32
    %c0_i32_0 = arith.constant 0 : i32
    return %arg0, %c0_i32 : i32, i32
  }
  func.func @transform_2(%arg0: i32, %arg1: i32) -> (i32, i32) {
    %c0_i32 = arith.constant 0 : i32
    %c0_i32_0 = arith.constant 0 : i32
    return %arg0, %c0_i32 : i32, i32
  }
  func.func @transform_3(%arg0: i32, %arg1: i32) -> (i32, i32) {
    %c0_i32 = arith.constant 0 : i32
    %c0_i32_0 = arith.constant 0 : i32
    return %arg0, %c0_i32 : i32, i32
  }
  func.func @transform_4(%arg0: i32, %arg1: i32) -> (i32, i32, i32) {
    %c0_i32 = arith.constant 0 : i32
    %c0_i32_0 = arith.constant 0 : i32
    return %arg1, %arg0, %c0_i32 : i32, i32, i32
  }
  func.func @transform_5(%arg0: i32, %arg1: i32) -> (i32, i32) {
    %c0_i32 = arith.constant 0 : i32
    %c0_i32_0 = arith.constant 0 : i32
    return %arg0, %c0_i32 : i32, i32
  }
}

</mosaic_0001>

<llo_original>
// kernel: video_model_ctc_loss.3
$region0: #{video_model_ctc_loss.3}
  #allocation0 [shape = 'u32[]', space=smem, size = 0x4, offset = 0x4, fixed_abs, tag = 'smem constant byte address 0x4 - core index']
  #allocation1 [shape = 'u32[144,128]{1,0:T(1,128)}', space=vmem, size = 0x12000, scoped, tag = 'internal scratch']
  #allocation2 [shape = 'f32[32,128]{1,0:T(8,128)}', space=vmem, size = 0x4000, scoped, tag = 'scratch operand']
  #allocation3 [shape = 's32[1]{0:T(128)S(6)}', space=smem, size = 0x200, scoped, tag = 'scoped memory for video_model_ctc_loss.3']
  %s0 = inlined_call_operand.<no memory space> [shape: s32[1], index: 0, kind: input, shape index: {}]
  %s1 = inlined_call_operand.vmem [shape: s32[32,1], index: 1, kind: input, shape index: {}]
  %s2 = inlined_call_operand.vmem [shape: s32[32,1], index: 2, kind: input, shape index: {}]
  %s3 = inlined_call_operand.vmem [shape: s32[32,128], index: 3, kind: input, shape index: {}]
  %s4 = inlined_call_operand.vmem [shape: f32[16,32,128], index: 4, kind: input, shape index: {}]
  %s5 = inlined_call_operand.vmem [shape: f32[32,128], index: 5, kind: output, shape index: {}]
  %s6 = sld [smem:[#allocation0]]
  $region45: #{video_model_ctc_loss.3} parent=0
    _
  %s8 = ssub.s32 1, %s6
  %s9 = scalar_select 0, %s8, %s6
  %10 = sst [smem:[#allocation3]] %s0
  // Predicated region
  $region2: #{video_model_ctc_loss.3} parent=0 // pred_check
    _
  $region3: #{video_model_ctc_loss.3} parent=0 // pred_check_branch
    %12 = sbr.rel (0) target = $region5
  $region4: #{video_model_ctc_loss.3} parent=0 // pred_region
    _
  $region5: #{video_model_ctc_loss.3} parent=0 // pred_fallthru
    _
  // Predicated region
  $region6: #{video_model_ctc_loss.3} parent=0 // pred_check
    _
  $region7: #{video_model_ctc_loss.3} parent=0 // pred_check_branch
    %14 = sbr.rel (0) target = $region9
  $region8: #{video_model_ctc_loss.3} parent=0 // pred_region
    _
  $region9: #{video_model_ctc_loss.3} parent=0 // pred_fallthru
    _
  // Predicated region
  $region10: #{video_model_ctc_loss.3} parent=0 // pred_check
    _
  $region11: #{video_model_ctc_loss.3} parent=0 // pred_check_branch
    %16 = sbr.rel (0) target = $region13
  $region12: #{video_model_ctc_loss.3} parent=0 // pred_region
    _
  $region13: #{video_model_ctc_loss.3} parent=0 // pred_fallthru
    _
  // Predicated region
  $region14: #{video_model_ctc_loss.3} parent=0 // pred_check
    _
  $region15: #{video_model_ctc_loss.3} parent=0 // pred_check_branch
    %18 = sbr.rel (0) target = $region17
  $region16: #{video_model_ctc_loss.3} parent=0 // pred_region
    _
  $region17: #{video_model_ctc_loss.3} parent=0 // pred_fallthru
    _
  // Predicated region
  $region18: #{video_model_ctc_loss.3} parent=0 // pred_check
    _
  $region19: #{video_model_ctc_loss.3} parent=0 // pred_check_branch
    %20 = sbr.rel (0) target = $region21
  $region20: #{video_model_ctc_loss.3} parent=0 // pred_region
    _
  $region21: #{video_model_ctc_loss.3} parent=0 // pred_fallthru
    _
  %v21 = vlaneseq
  %v22 = vand.u32 %v21, 127
  %v23 = vld [vmem:[%s2] sm:$0xff]
  %v24 = vld [vmem:[%s2 + $0x8] sm:$0xff]
  %v25 = vld [vmem:[%s2 + $0x10] sm:$0xff]
  %v26 = vld [vmem:[%s2 + $0x18] sm:$0xff]
  %v27 = vld [vmem:[%s1] sm:$0xff]
  %v28 = vld [vmem:[%s1 + $0x8] sm:$0xff]
  %v29 = vld [vmem:[%s1 + $0x10] sm:$0xff]
  %v30 = vld [vmem:[%s1 + $0x18] sm:$0xff]
  %v31 = vld [vmem:[%s3] sm:$0xff]
  %v32 = vld [vmem:[%s3 + $0x8] sm:$0xff]
  %v33 = vld [vmem:[%s3 + $0x10] sm:$0xff]
  %v34 = vld [vmem:[%s3 + $0x18] sm:$0xff]
  %v35 = vcvt.s32.f32 %v31
  %v36 = vcvt.s32.f32 %v32
  %v37 = vcvt.s32.f32 %v33
  %v38 = vcvt.s32.f32 %v34
  %39 = vrot.lane.b32.xlu0 %v35, 2
  %v40 = vpop.permute.xlu0 %39
  %41 = vrot.lane.b32.xlu0 %v36, 2
  %v42 = vpop.permute.xlu0 %41
  %43 = vrot.lane.b32.xlu0 %v37, 2
  %v44 = vpop.permute.xlu0 %43
  %45 = vrot.lane.b32.xlu0 %v38, 2
  %v46 = vpop.permute.xlu0 %45
  %v47 = vand.u32 %v22, 1
  %vm48 = vcmp.eq.s32.totalorder %v47, 1
  %vm49 = vcmp.ge.s32.totalorder %v22, 2
  %vm50 = vmand %vm48, %vm49
  %vm51 = vcmp.ne.f32.partialorder %v35, %v40
  %vm52 = vcmp.ne.f32.partialorder %v36, %v42
  %vm53 = vcmp.ne.f32.partialorder %v37, %v44
  %vm54 = vcmp.ne.f32.partialorder %v38, %v46
  %vm55 = vmand %vm50, %vm51
  %vm56 = vmand %vm50, %vm52
  %vm57 = vmand %vm50, %vm53
  %vm58 = vmand %vm50, %vm54
  %p59 = scmp.eq.s32.totalorder 0, 0
  // Predicated region
  $region22: #{video_model_ctc_loss.3} parent=0 // pred_check
    %p60 = pneg %p59
  $region23: #{video_model_ctc_loss.3} parent=0 // pred_check_branch
    %62 = sbr.rel (%p60) target = $region25
  $region24: #{video_model_ctc_loss.3} parent=0 // pred_region
    %vm63 = vcmp.eq.s32.totalorder %v22, 0
    %v64 = vsel %vm63, 0.0, -1e+30
    %65 = vst [vmem:[#allocation2] sm:$0xff] %v64
    %66 = vst [vmem:[#allocation2 + $0x8] sm:$0xff] %v64
    %67 = vst [vmem:[#allocation2 + $0x10] sm:$0xff] %v64
    %68 = vst [vmem:[#allocation2 + $0x18] sm:$0xff] %v64
  $region25: #{video_model_ctc_loss.3} parent=0 // pred_fallthru
    _
  %s69 = smul.u32 0, 16
  %s70 = sld [smem:[#allocation3]]
  %s71 = ssub.s32 %s70, %s69
  %p72 = scmp.gt.s32.totalorder %s71, 0
  %s73 = scalar_select %p72, %s71, 0
  %p74 = scmp.lt.s32.totalorder %s73, 16
  %s75 = scalar_select %p74, %s73, 16
  %v76 = vld [vmem:[#allocation2] sm:$0xff]
  %v77 = vld [vmem:[#allocation2 + $0x8] sm:$0xff]
  %v78 = vld [vmem:[#allocation2 + $0x10] sm:$0xff]
  %v79 = vld [vmem:[#allocation2 + $0x18] sm:$0xff]
  // While loop
  $region26: #{video_model_ctc_loss.3} parent=0 // loop_pre_header
    _
  $region27: #{video_model_ctc_loss.3} parent=0 // loop_header
    %s81 = sphi 0, %s83
    %p82 = scmp.ge.s32.totalorder %s81, %s75
    %v86 = vphi %v76, %v235
    %v87 = vphi %v77, %v236
    %v88 = vphi %v78, %v237
    %v89 = vphi %v79, %v238
  $region28: #{video_model_ctc_loss.3} parent=0 // loop_header_branch
    %85 = sbr.rel (%p82) target = $region32
  $region29: #{video_model_ctc_loss.3} parent=0 // loop_body
    %s90 = smul.u32 %s81, 32
    %s91 = scalar_lea.vmem %s4, %s90
    %v92 = vld [vmem:[%s91] sm:$0xff]
    %v93 = vld [vmem:[%s91 + $0x8] sm:$0xff]
    %v94 = vld [vmem:[%s91 + $0x10] sm:$0xff]
    %v95 = vld [vmem:[%s91 + $0x18] sm:$0xff]
    %vm96 = vcmp.ge.s32.totalorder %v22, 1
    %97 = vrot.lane.b32.xlu0 %v86, 1
    %v98 = vpop.permute.xlu0 %97
    %99 = vrot.lane.b32.xlu0 %v87, 1
    %v100 = vpop.permute.xlu0 %99
    %101 = vrot.lane.b32.xlu0 %v88, 1
    %v102 = vpop.permute.xlu0 %101
    %103 = vrot.lane.b32.xlu0 %v89, 1
    %v104 = vpop.permute.xlu0 %103
    %v105 = vsel %vm96, %v98, -1e+30
    %v106 = vsel %vm96, %v100, -1e+30
    %v107 = vsel %vm96, %v102, -1e+30
    %v108 = vsel %vm96, %v104, -1e+30
    %109 = vrot.lane.b32.xlu0 %v86, 2
    %v110 = vpop.permute.xlu0 %109
    %111 = vrot.lane.b32.xlu0 %v87, 2
    %v112 = vpop.permute.xlu0 %111
    %113 = vrot.lane.b32.xlu0 %v88, 2
    %v114 = vpop.permute.xlu0 %113
    %115 = vrot.lane.b32.xlu0 %v89, 2
    %v116 = vpop.permute.xlu0 %115
    %v117 = vsel %vm55, %v110, -1e+30
    %v118 = vsel %vm56, %v112, -1e+30
    %v119 = vsel %vm57, %v114, -1e+30
    %v120 = vsel %vm58, %v116, -1e+30
    %v121 = vmax.f32 %v86, %v105
    %v122 = vmax.f32 %v87, %v106
    %v123 = vmax.f32 %v88, %v107
    %v124 = vmax.f32 %v89, %v108
    %v125 = vmax.f32 %v121, %v117
    %v126 = vmax.f32 %v122, %v118
    %v127 = vmax.f32 %v123, %v119
    %v128 = vmax.f32 %v124, %v120
    %v129 = vsub.f32 %v86, %v125
    %v130 = vsub.f32 %v87, %v126
    %v131 = vsub.f32 %v88, %v127
    %v132 = vsub.f32 %v89, %v128
    %v133 = vmul.f32 %v129, 1.442695
    %v134 = vpow.pop %v133
    %v135 = vmul.f32 %v130, 1.442695
    %v136 = vpow.pop %v135
    %v137 = vmul.f32 %v131, 1.442695
    %v138 = vpow.pop %v137
    %v139 = vmul.f32 %v132, 1.442695
    %v140 = vpow.pop %v139
    %v141 = vsub.f32 %v105, %v125
    %v142 = vsub.f32 %v106, %v126
    %v143 = vsub.f32 %v107, %v127
    %v144 = vsub.f32 %v108, %v128
    %v145 = vmul.f32 %v141, 1.442695
    %v146 = vpow.pop %v145
    %v147 = vmul.f32 %v142, 1.442695
    %v148 = vpow.pop %v147
    %v149 = vmul.f32 %v143, 1.442695
    %v150 = vpow.pop %v149
    %v151 = vmul.f32 %v144, 1.442695
    %v152 = vpow.pop %v151
    %v153 = vadd.f32 %v134, %v146
    %v154 = vadd.f32 %v136, %v148
    %v155 = vadd.f32 %v138, %v150
    %v156 = vadd.f32 %v140, %v152
    %v157 = vsub.f32 %v117, %v125
    %v158 = vsub.f32 %v118, %v126
    %v159 = vsub.f32 %v119, %v127
    %v160 = vsub.f32 %v120, %v128
    %v161 = vmul.f32 %v157, 1.442695
    %v162 = vpow.pop %v161
    %v163 = vmul.f32 %v158, 1.442695
    %v164 = vpow.pop %v163
    %v165 = vmul.f32 %v159, 1.442695
    %v166 = vpow.pop %v165
    %v167 = vmul.f32 %v160, 1.442695
    %v168 = vpow.pop %v167
    %v169 = vadd.f32 %v153, %v162
    %v170 = vadd.f32 %v154, %v164
    %v171 = vadd.f32 %v155, %v166
    %v172 = vadd.f32 %v156, %v168
    %v173 = vlog2.pop %v169
    %v174 = vmul.f32 %v173, 0.6931472
    %v175 = vlog2.pop %v170
    %v176 = vmul.f32 %v175, 0.6931472
    %v177 = vlog2.pop %v171
    %v178 = vmul.f32 %v177, 0.6931472
    %v179 = vlog2.pop %v172
    %v180 = vmul.f32 %v179, 0.6931472
    %v181 = vadd.f32 %v125, %v174
    %v182 = vadd.f32 %v126, %v176
    %v183 = vadd.f32 %v127, %v178
    %v184 = vadd.f32 %v128, %v180
    %185 = vset.pattern.permute.xlu0 0
    %186 = vperm.xlu0 %185, %v23
    %v187 = vpop.permute.xlu0 %186
    %188 = vset.pattern.permute.xlu0 0
    %189 = vperm.xlu0 %188, %v24
    %v190 = vpop.permute.xlu0 %189
    %191 = vset.pattern.permute.xlu0 0
    %192 = vperm.xlu0 %191, %v25
    %v193 = vpop.permute.xlu0 %192
    %194 = vset.pattern.permute.xlu0 0
    %195 = vperm.xlu0 %194, %v26
    %v196 = vpop.permute.xlu0 %195
    %vm197 = vcmp.lt.s32.totalorder %v22, %v187
    %vm198 = vcmp.lt.s32.totalorder %v22, %v190
    %vm199 = vcmp.lt.s32.totalorder %v22, %v193
    %vm200 = vcmp.lt.s32.totalorder %v22, %v196
    %v201 = vadd.f32 %v92, %v181
    %v202 = vadd.f32 %v93, %v182
    %v203 = vadd.f32 %v94, %v183
    %v204 = vadd.f32 %v95, %v184
    %v205 = vsel %vm197, %v201, -1e+30
    %v206 = vsel %vm198, %v202, -1e+30
    %v207 = vsel %vm199, %v203, -1e+30
    %v208 = vsel %vm200, %v204, -1e+30
    %s209 = sadd.s32 %s69, %s81
    %v210 = vstv %s209
    %vm211 = vcmp.lt.s32.totalorder %v210, %v27
    %vm212 = vcmp.lt.s32.totalorder %v210, %v28
    %vm213 = vcmp.lt.s32.totalorder %v210, %v29
    %vm214 = vcmp.lt.s32.totalorder %v210, %v30
    %v215 = vsel %vm211, 1, 0
    %v216 = vsel %vm212, 1, 0
    %v217 = vsel %vm213, 1, 0
    %v218 = vsel %vm214, 1, 0
    %219 = vset.pattern.permute.xlu0 0
    %220 = vperm.xlu0 %219, %v215
    %v221 = vpop.permute.xlu0 %220
    %222 = vset.pattern.permute.xlu0 0
    %223 = vperm.xlu0 %222, %v216
    %v224 = vpop.permute.xlu0 %223
    %225 = vset.pattern.permute.xlu0 0
    %226 = vperm.xlu0 %225, %v217
    %v227 = vpop.permute.xlu0 %226
    %228 = vset.pattern.permute.xlu0 0
    %229 = vperm.xlu0 %228, %v218
    %v230 = vpop.permute.xlu0 %229
    %vm231 = vcmp.eq.s32.totalorder %v221, 1
    %vm232 = vcmp.eq.s32.totalorder %v224, 1
    %vm233 = vcmp.eq.s32.totalorder %v227, 1
    %vm234 = vcmp.eq.s32.totalorder %v230, 1
    %v235 = vsel %vm231, %v205, %v86
    %v236 = vsel %vm232, %v206, %v87
    %v237 = vsel %vm233, %v207, %v88
    %v238 = vsel %vm234, %v208, %v89
  $region30: #{video_model_ctc_loss.3} parent=0 // loop_footer
    %s83 = sadd.s32 %s81, 1
  $region31: #{video_model_ctc_loss.3} parent=0 // loop_footer_branch
    %80 = sbr.rel target = $region27
  $region32: #{video_model_ctc_loss.3} parent=0 // loop_exit
    _
  %239 = vst [vmem:[#allocation2] sm:$0xff] %v86
  %240 = vst [vmem:[#allocation2 + $0x8] sm:$0xff] %v87
  %241 = vst [vmem:[#allocation2 + $0x10] sm:$0xff] %v88
  %242 = vst [vmem:[#allocation2 + $0x18] sm:$0xff] %v89
  // Predicated region
  $region33: #{video_model_ctc_loss.3} parent=0 // pred_check
    %p243 = pneg %p59
  $region34: #{video_model_ctc_loss.3} parent=0 // pred_check_branch
    %245 = sbr.rel (%p243) target = $region36
  $region35: #{video_model_ctc_loss.3} parent=0 // pred_region
    %v246 = vld [vmem:[#allocation2] sm:$0xff]
    %v247 = vld [vmem:[#allocation2 + $0x8] sm:$0xff]
    %v248 = vld [vmem:[#allocation2 + $0x10] sm:$0xff]
    %v249 = vld [vmem:[#allocation2 + $0x18] sm:$0xff]
    %v250 = vsub.s32 %v23, 1
    %v251 = vsub.s32 %v24, 1
    %v252 = vsub.s32 %v25, 1
    %v253 = vsub.s32 %v26, 1
    %254 = vset.pattern.permute.xlu0 0
    %255 = vperm.xlu0 %254, %v250
    %v256 = vpop.permute.xlu0 %255
    %257 = vset.pattern.permute.xlu0 0
    %258 = vperm.xlu0 %257, %v251
    %v259 = vpop.permute.xlu0 %258
    %260 = vset.pattern.permute.xlu0 0
    %261 = vperm.xlu0 %260, %v252
    %v262 = vpop.permute.xlu0 %261
    %263 = vset.pattern.permute.xlu0 0
    %264 = vperm.xlu0 %263, %v253
    %v265 = vpop.permute.xlu0 %264
    %vm266 = vcmp.eq.s32.totalorder %v22, %v256
    %vm267 = vcmp.eq.s32.totalorder %v22, %v259
    %vm268 = vcmp.eq.s32.totalorder %v22, %v262
    %vm269 = vcmp.eq.s32.totalorder %v22, %v265
    %v270 = vsub.s32 %v23, 2
    %v271 = vsub.s32 %v24, 2
    %v272 = vsub.s32 %v25, 2
    %v273 = vsub.s32 %v26, 2
    %274 = vset.pattern.permute.xlu0 0
    %275 = vperm.xlu0 %274, %v270
    %v276 = vpop.permute.xlu0 %275
    %277 = vset.pattern.permute.xlu0 0
    %278 = vperm.xlu0 %277, %v271
    %v279 = vpop.permute.xlu0 %278
    %280 = vset.pattern.permute.xlu0 0
    %281 = vperm.xlu0 %280, %v272
    %v282 = vpop.permute.xlu0 %281
    %283 = vset.pattern.permute.xlu0 0
    %284 = vperm.xlu0 %283, %v273
    %v285 = vpop.permute.xlu0 %284
    %vm286 = vcmp.eq.s32.totalorder %v22, %v276
    %vm287 = vcmp.eq.s32.totalorder %v22, %v279
    %vm288 = vcmp.eq.s32.totalorder %v22, %v282
    %vm289 = vcmp.eq.s32.totalorder %v22, %v285
    %vm290 = vmor %vm266, %vm286
    %vm291 = vmor %vm267, %vm287
    %vm292 = vmor %vm268, %vm288
    %vm293 = vmor %vm269, %vm289
    %v294 = vsel %vm290, %v246, -1e+30
    %v295 = vsel %vm291, %v247, -1e+30
    %v296 = vsel %vm292, %v248, -1e+30
    %v297 = vsel %vm293, %v249, -1e+30
    %298 = vmax.xlane.f32.xlu0 %v294
    %v299 = vpop.xlane.xlu0 %298
    %300 = vmax.xlane.f32.xlu0 %v295
    %v301 = vpop.xlane.xlu0 %300
    %302 = vmax.xlane.f32.xlu0 %v296
    %v303 = vpop.xlane.xlu0 %302
    %304 = vmax.xlane.f32.xlu0 %v297
    %v305 = vpop.xlane.xlu0 %304
    %v306 = vsub.f32 %v294, %v299
    %v307 = vsub.f32 %v295, %v301
    %v308 = vsub.f32 %v296, %v303
    %v309 = vsub.f32 %v297, %v305
    %v310 = vmul.f32 %v306, 1.442695
    %v311 = vpow.pop %v310
    %v312 = vmul.f32 %v307, 1.442695
    %v313 = vpow.pop %v312
    %v314 = vmul.f32 %v308, 1.442695
    %v315 = vpow.pop %v314
    %v316 = vmul.f32 %v309, 1.442695
    %v317 = vpow.pop %v316
    %318 = vadd.xlane.f32.xlu0 %v311
    %v319 = vpop.xlane.xlu0 %318
    %320 = vadd.xlane.f32.xlu0 %v313
    %v321 = vpop.xlane.xlu0 %320
    %322 = vadd.xlane.f32.xlu0 %v315
    %v323 = vpop.xlane.xlu0 %322
    %324 = vadd.xlane.f32.xlu0 %v317
    %v325 = vpop.xlane.xlu0 %324
    %v326 = vlog2.pop %v319
    %v327 = vmul.f32 %v326, 0.6931472
    %v328 = vlog2.pop %v321
    %v329 = vmul.f32 %v328, 0.6931472
    %v330 = vlog2.pop %v323
    %v331 = vmul.f32 %v330, 0.6931472
    %v332 = vlog2.pop %v325
    %v333 = vmul.f32 %v332, 0.6931472
    %v334 = vadd.f32 %v299, %v327
    %v335 = vadd.f32 %v301, %v329
    %v336 = vadd.f32 %v303, %v331
    %v337 = vadd.f32 %v305, %v333
    %v338 = vsub.f32 0.0, %v334
    %v339 = vsub.f32 0.0, %v335
    %v340 = vsub.f32 0.0, %v336
    %v341 = vsub.f32 0.0, %v337
    %342 = vst [vmem:[%s5] sm:$0xff] %v338
    %343 = vst [vmem:[%s5 + $0x8] sm:$0xff] %v339
    %344 = vst [vmem:[%s5 + $0x10] sm:$0xff] %v340
    %345 = vst [vmem:[%s5 + $0x18] sm:$0xff] %v341
  $region36: #{video_model_ctc_loss.3} parent=0 // pred_fallthru
    _
  // Predicated region
  $region37: #{video_model_ctc_loss.3} parent=0 // pred_check
    _
  $region38: #{video_model_ctc_loss.3} parent=0 // pred_check_branch
    %347 = sbr.rel (0) target = $region40
  $region39: #{video_model_ctc_loss.3} parent=0 // pred_region
    _
  $region40: #{video_model_ctc_loss.3} parent=0 // pred_fallthru
    _
  // Predicated region
  $region41: #{video_model_ctc_loss.3} parent=0 // pred_check
    _
  $region42: #{video_model_ctc_loss.3} parent=0 // pred_check_branch
    %349 = sbr.rel (0) target = $region44
  $region43: #{video_model_ctc_loss.3} parent=0 // pred_region
    _
  $region44: #{video_model_ctc_loss.3} parent=0 // pred_fallthru
    _

// kernel: video_model_ctc_loss.2
$region0: #{video_model_ctc_loss.2}
  #allocation0 [shape = 'u32[]', space=smem, size = 0x4, offset = 0x4, fixed_abs, tag = 'smem constant byte address 0x4 - core index']
  #allocation1 [shape = 'u32[144,128]{1,0:T(1,128)}', space=vmem, size = 0x12000, scoped, tag = 'internal scratch']
  %s0 = inlined_call_operand.vmem [shape: f32[32,16,32], index: 0, kind: input, shape index: {}]
  %s1 = inlined_call_operand.vmem [shape: bf16[32,32], index: 1, kind: input, shape index: {}]
  %s2 = inlined_call_operand.vmem [shape: f32[1,32], index: 2, kind: input, shape index: {}]
  %s3 = inlined_call_operand.vmem [shape: bf16[32,128], index: 3, kind: input, shape index: {}]
  %s4 = inlined_call_operand.vmem [shape: f32[1,128], index: 4, kind: input, shape index: {}]
  %s5 = inlined_call_operand.vmem [shape: bf16[32,32,128], index: 5, kind: input, shape index: {}]
  %s6 = inlined_call_operand.vmem [shape: f32[32,1,128], index: 6, kind: input, shape index: {}]
  %s7 = inlined_call_operand.vmem [shape: f32[16,32,128], index: 7, kind: output, shape index: {}]
  %s8 = sld [smem:[#allocation0]]
  $region95: #{video_model_ctc_loss.2} parent=0
    _
  %s10 = ssub.s32 1, %s8
  %s11 = scalar_select 0, %s10, %s8
  $region1: #{video_model_ctc_loss.2} parent=0
    #allocation2 [shape = 'u8[131072]{0}', space=vmem, size = 0x20000, scoped, tag = 'output window, operand 0']
    loop: start=0, step=1, limit=6
    $region2: #{video_model_ctc_loss.2} parent=1 // loop_pre_header
      _
    $region3: #{video_model_ctc_loss.2} parent=1 // loop_header
      %s13 = sphi 0, %s17
      %p14 = scmp.ge.s32.totalorder %s13, 6
      %s20 = sphi 0, %s32
      %s21 = sphi 0, %s28
      %s22 = sphi 0, %s20
      %s23 = sphi 0, %s21
      %s24 = sphi 0, %s22
      %s25 = sphi 0, %s23
      %s37 = sphi 0, %s39
      %s40 = sphi 0, %s37
      %s41 = sphi 0, %s40
      %s57 = sphi 0, %s41
      %s61 = sphi 0, %s61
      %s63 = sphi 0, %s61
      %s64 = sphi 0, %s63
      %s78 = sphi 0, %s64
      %s82 = sphi 0, %s82
      %s84 = sphi 0, %s82
      %s85 = sphi 0, %s84
      %s99 = sphi 0, %s85
      %s103 = sphi 0, %s103
      %s105 = sphi 0, %s103
      %s106 = sphi 0, %s105
      %s120 = sphi 0, %s106
      %s124 = sphi 0, %s124
      %s126 = sphi 0, %s124
      %s127 = sphi 0, %s126
      %s141 = sphi 0, %s127
      %s147 = sphi 0, %s149
      %s150 = sphi 0, %s147
      %s151 = sphi 0, %s150
      %s167 = sphi 0, %s151
      %s173 = sphi 0, %s175
      %s176 = sphi 0, %s173
      %s177 = sphi 0, %s176
      %s193 = sphi 0, %s177
      %s201 = sphi 0, %s203
      %s204 = sphi 0, %s201
      %s205 = sphi 0, %s204
      %s221 = sphi 0, %s205
    $region4: #{video_model_ctc_loss.2} parent=1 // loop_header_branch
      %16 = sbr.rel (%p14) target = $region8
    $region5: #{video_model_ctc_loss.2} parent=1 // loop_body
      %s18 = ssub.s32 %s13, 1
      %s19 = ssub.s32 %s13, 2
      %s26 = sadd.s32 1, %s21
      %p27 = scmp.ge.s32.totalorder %s26, 1
      %s28 = scalar_select %p27, 0, %s26
      %s29 = sadd.s32 1, %s20
      %s30 = scalar_select %p27, %s29, %s20
      %p31 = scmp.ge.s32.totalorder %s30, 4
      %s32 = scalar_select %p31, 0, %s30
      %s33 = ssub.s32 %s20, %s32
      %s34 = ssub.s32 %s21, %s28
      %s35 = sor.u32 %s33, %s34
      %p36 = scmp.eq.s32.totalorder %s35, 0
      %s38 = sadd.s32 %s37, 1
      %s39 = scalar_select %p36, %s37, %s38
      %p42 = pneg %p36
      %p43 = scmp.eq.s32.totalorder %s13, 3
      %p44 = por %p42, %p43
      %p45 = scmp.ne.s32.totalorder %s37, %s40
      %p46 = scmp.eq.s32.totalorder %s13, 0
      %p47 = por %p45, %p46
      %p48 = scmp.ne.s32.totalorder %s37, %s40
      %p49 = scmp.eq.s32.totalorder %s18, 3
      %p50 = por %p48, %p49
      %p51 = scmp.ne.s32.totalorder %s40, %s41
      %p52 = scmp.eq.s32.totalorder %s18, 0
      %p53 = por %p51, %p52
      %p54 = scmp.ne.s32.totalorder %s40, %s41
      %p55 = scmp.eq.s32.totalorder %s19, 3
      %p56 = por %p54, %p55
      %p58 = scmp.ne.s32.totalorder %s41, %s57
      %p59 = scmp.eq.s32.totalorder %s19, 0
      %p60 = por %p58, %p59
      %s62 = sadd.s32 %s61, 1
      %p65 = scmp.eq.s32.totalorder %s13, 3
      %p66 = scmp.ne.s32.totalorder %s61, %s63
      %p67 = scmp.eq.s32.totalorder %s13, 0
      %p68 = por %p66, %p67
      %p69 = scmp.ne.s32.totalorder %s61, %s63
      %p70 = scmp.eq.s32.totalorder %s18, 3
      %p71 = por %p69, %p70
      %p72 = scmp.ne.s32.totalorder %s63, %s64
      %p73 = scmp.eq.s32.totalorder %s18, 0
      %p74 = por %p72, %p73
      %p75 = scmp.ne.s32.totalorder %s63, %s64
      %p76 = scmp.eq.s32.totalorder %s19, 3
      %p77 = por %p75, %p76
      %p79 = scmp.ne.s32.totalorder %s64, %s78
      %p80 = scmp.eq.s32.totalorder %s19, 0
      %p81 = por %p79, %p80
      %s83 = sadd.s32 %s82, 1
      %p86 = scmp.eq.s32.totalorder %s13, 3
      %p87 = scmp.ne.s32.totalorder %s82, %s84
      %p88 = scmp.eq.s32.totalorder %s13, 0
      %p89 = por %p87, %p88
      %p90 = scmp.ne.s32.totalorder %s82, %s84
      %p91 = scmp.eq.s32.totalorder %s18, 3
      %p92 = por %p90, %p91
      %p93 = scmp.ne.s32.totalorder %s84, %s85
      %p94 = scmp.eq.s32.totalorder %s18, 0
      %p95 = por %p93, %p94
      %p96 = scmp.ne.s32.totalorder %s84, %s85
      %p97 = scmp.eq.s32.totalorder %s19, 3
      %p98 = por %p96, %p97
      %p100 = scmp.ne.s32.totalorder %s85, %s99
      %p101 = scmp.eq.s32.totalorder %s19, 0
      %p102 = por %p100, %p101
      %s104 = sadd.s32 %s103, 1
      %p107 = scmp.eq.s32.totalorder %s13, 3
      %p108 = scmp.ne.s32.totalorder %s103, %s105
      %p109 = scmp.eq.s32.totalorder %s13, 0
      %p110 = por %p108, %p109
      %p111 = scmp.ne.s32.totalorder %s103, %s105
      %p112 = scmp.eq.s32.totalorder %s18, 3
      %p113 = por %p111, %p112
      %p114 = scmp.ne.s32.totalorder %s105, %s106
      %p115 = scmp.eq.s32.totalorder %s18, 0
      %p116 = por %p114, %p115
      %p117 = scmp.ne.s32.totalorder %s105, %s106
      %p118 = scmp.eq.s32.totalorder %s19, 3
      %p119 = por %p117, %p118
      %p121 = scmp.ne.s32.totalorder %s106, %s120
      %p122 = scmp.eq.s32.totalorder %s19, 0
      %p123 = por %p121, %p122
      %s125 = sadd.s32 %s124, 1
      %p128 = scmp.eq.s32.totalorder %s13, 3
      %p129 = scmp.ne.s32.totalorder %s124, %s126
      %p130 = scmp.eq.s32.totalorder %s13, 0
      %p131 = por %p129, %p130
      %p132 = scmp.ne.s32.totalorder %s124, %s126
      %p133 = scmp.eq.s32.totalorder %s18, 3
      %p134 = por %p132, %p133
      %p135 = scmp.ne.s32.totalorder %s126, %s127
      %p136 = scmp.eq.s32.totalorder %s18, 0
      %p137 = por %p135, %p136
      %p138 = scmp.ne.s32.totalorder %s126, %s127
      %p139 = scmp.eq.s32.totalorder %s19, 3
      %p140 = por %p138, %p139
      %p142 = scmp.ne.s32.totalorder %s127, %s141
      %p143 = scmp.eq.s32.totalorder %s19, 0
      %p144 = por %p142, %p143
      %s145 = ssub.s32 %s20, %s32
      %p146 = scmp.eq.s32.totalorder %s145, 0
      %s148 = sadd.s32 %s147, 1
      %s149 = scalar_select %p146, %s147, %s148
      %p152 = pneg %p146
      %p153 = scmp.eq.s32.totalorder %s13, 3
      %p154 = por %p152, %p153
      %p155 = scmp.ne.s32.totalorder %s147, %s150
      %p156 = scmp.eq.s32.totalorder %s13, 0
      %p157 = por %p155, %p156
      %p158 = scmp.ne.s32.totalorder %s147, %s150
      %p159 = scmp.eq.s32.totalorder %s18, 3
      %p160 = por %p158, %p159
      %p161 = scmp.ne.s32.totalorder %s150, %s151
      %p162 = scmp.eq.s32.totalorder %s18, 0
      %p163 = por %p161, %p162
      %p164 = scmp.ne.s32.totalorder %s150, %s151
      %p165 = scmp.eq.s32.totalorder %s19, 3
      %p166 = por %p164, %p165
      %p168 = scmp.ne.s32.totalorder %s151, %s167
      %p169 = scmp.eq.s32.totalorder %s19, 0
      %p170 = por %p168, %p169
      %s171 = ssub.s32 %s20, %s32
      %p172 = scmp.eq.s32.totalorder %s171, 0
      %s174 = sadd.s32 %s173, 1
      %s175 = scalar_select %p172, %s173, %s174
      %p178 = pneg %p172
      %p179 = scmp.eq.s32.totalorder %s13, 3
      %p180 = por %p178, %p179
      %p181 = scmp.ne.s32.totalorder %s173, %s176
      %p182 = scmp.eq.s32.totalorder %s13, 0
      %p183 = por %p181, %p182
      %p184 = scmp.ne.s32.totalorder %s173, %s176
      %p185 = scmp.eq.s32.totalorder %s18, 3
      %p186 = por %p184, %p185
      %p187 = scmp.ne.s32.totalorder %s176, %s177
      %p188 = scmp.eq.s32.totalorder %s18, 0
      %p189 = por %p187, %p188
      %p190 = scmp.ne.s32.totalorder %s176, %s177
      %p191 = scmp.eq.s32.totalorder %s19, 3
      %p192 = por %p190, %p191
      %p194 = scmp.ne.s32.totalorder %s177, %s193
      %p195 = scmp.eq.s32.totalorder %s19, 0
      %p196 = por %p194, %p195
      %s197 = ssub.s32 %s21, %s28
      %s198 = ssub.s32 %s20, %s32
      %s199 = sor.u32 %s197, %s198
      %p200 = scmp.eq.s32.totalorder %s199, 0
      %s202 = sadd.s32 %s201, 1
      %s203 = scalar_select %p200, %s201, %s202
      %p206 = pneg %p200
      %p207 = scmp.eq.s32.totalorder %s13, 3
      %p208 = por %p206, %p207
      %p209 = scmp.ne.s32.totalorder %s201, %s204
      %p210 = scmp.eq.s32.totalorder %s13, 0
      %p211 = por %p209, %p210
      %p212 = scmp.ne.s32.totalorder %s201, %s204
      %p213 = scmp.eq.s32.totalorder %s18, 3
      %p214 = por %p212, %p213
      %p215 = scmp.ne.s32.totalorder %s204, %s205
      %p216 = scmp.eq.s32.totalorder %s18, 0
      %p217 = por %p215, %p216
      %p218 = scmp.ne.s32.totalorder %s204, %s205
      %p219 = scmp.eq.s32.totalorder %s19, 3
      %p220 = por %p218, %p219
      %p222 = scmp.ne.s32.totalorder %s205, %s221
      %p223 = scmp.eq.s32.totalorder %s19, 0
      %p224 = por %p222, %p223
      %p225 = scmp.le.s32.totalorder 1, %s13
      %p226 = scmp.lt.s32.totalorder %s13, 5
      %p227 = pnand %p225, %p226
      %p228 = pneg %p227
      // Predicated region
      $region9: #{video_model_ctc_loss.2} parent=5 // pred_check
        _
      $region10: #{video_model_ctc_loss.2} parent=5 // pred_check_branch
        %230 = sbr.rel (%p227) target = $region12
      $region11: #{video_model_ctc_loss.2} parent=5 // pred_region
        %s231 = ssub.s32 %s13, 1
        // Predicated region
        $region13: #{video_model_ctc_loss.2} parent=11 // pred_check
          %p232 = pneg %p74
        $region14: #{video_model_ctc_loss.2} parent=11 // pred_check_branch
          %234 = sbr.rel (%p232) target = $region16
        $region15: #{video_model_ctc_loss.2} parent=11 // pred_region
          _
        $region16: #{video_model_ctc_loss.2} parent=11 // pred_fallthru
          _
        // Predicated region
        $region17: #{video_model_ctc_loss.2} parent=11 // pred_check
          %p235 = pneg %p95
        $region18: #{video_model_ctc_loss.2} parent=11 // pred_check_branch
          %237 = sbr.rel (%p235) target = $region20
        $region19: #{video_model_ctc_loss.2} parent=11 // pred_region
          _
        $region20: #{video_model_ctc_loss.2} parent=11 // pred_fallthru
          _
        // Predicated region
        $region21: #{video_model_ctc_loss.2} parent=11 // pred_check
          %p238 = pneg %p116
        $region22: #{video_model_ctc_loss.2} parent=11 // pred_check_branch
          %240 = sbr.rel (%p238) target = $region24
        $region23: #{video_model_ctc_loss.2} parent=11 // pred_region
          _
        $region24: #{video_model_ctc_loss.2} parent=11 // pred_fallthru
          _
        // Predicated region
        $region25: #{video_model_ctc_loss.2} parent=11 // pred_check
          %p241 = pneg %p137
        $region26: #{video_model_ctc_loss.2} parent=11 // pred_check_branch
          %243 = sbr.rel (%p241) target = $region28
        $region27: #{video_model_ctc_loss.2} parent=11 // pred_region
          _
        $region28: #{video_model_ctc_loss.2} parent=11 // pred_fallthru
          _
      $region12: #{video_model_ctc_loss.2} parent=5 // pred_fallthru
        _
      %p244 = scmp.lt.s32.totalorder %s13, 4
      // Predicated region
      $region29: #{video_model_ctc_loss.2} parent=5 // pred_check
        %p245 = pneg %p244
      $region30: #{video_model_ctc_loss.2} parent=5 // pred_check_branch
        %247 = sbr.rel (%p245) target = $region32
      $region31: #{video_model_ctc_loss.2} parent=5 // pred_region
        // Predicated region
        $region33: #{video_model_ctc_loss.2} parent=31 // pred_check
          %p248 = pneg %p47
        $region34: #{video_model_ctc_loss.2} parent=31 // pred_check_branch
          %250 = sbr.rel (%p248) target = $region36
        $region35: #{video_model_ctc_loss.2} parent=31 // pred_region
          %s251 = smul.u32 8, %s20
          %s252 = smul.u32 2, %s21
          %p253 = scmp.lt.s32.totalorder %s251, 31
          %s254 = scalar_select %p253, %s251, 31
          %p255 = scmp.lt.s32.totalorder %s252, 1
          %s256 = scalar_select %p255, %s252, 1
          %s257 = smul.addr %s254, 2
          %s258 = sadd.s32 %s256, %s257
          %s259 = smul.addr %s258, 8
          %s260 = scalar_lea.vmem %s0, %s259
          %s261 = smul.u32 8, %s20
          %s262 = smul.u32 2, %s21
        $region36: #{video_model_ctc_loss.2} parent=31 // pred_fallthru
          _
        // Predicated region
        $region37: #{video_model_ctc_loss.2} parent=31 // pred_check
          %p263 = pneg %p157
        $region38: #{video_model_ctc_loss.2} parent=31 // pred_check_branch
          %265 = sbr.rel (%p263) target = $region40
        $region39: #{video_model_ctc_loss.2} parent=31 // pred_region
          %s266 = smul.u32 8, %s20
          %p267 = scmp.lt.s32.totalorder %s266, 31
          %s268 = scalar_select %p267, %s266, 31
          %s269 = smul.addr %s268, 4
          %s270 = smul.addr %s269, 4
          %s271 = scalar_lea.vmem %s5, %s270
          %s272 = smul.u32 8, %s20
        $region40: #{video_model_ctc_loss.2} parent=31 // pred_fallthru
          _
        // Predicated region
        $region41: #{video_model_ctc_loss.2} parent=31 // pred_check
          %p273 = pneg %p183
        $region42: #{video_model_ctc_loss.2} parent=31 // pred_check_branch
          %275 = sbr.rel (%p273) target = $region44
        $region43: #{video_model_ctc_loss.2} parent=31 // pred_region
          %s276 = smul.u32 8, %s20
          %p277 = scmp.lt.s32.totalorder %s276, 31
          %s278 = scalar_select %p277, %s276, 31
          %s279 = scalar_lea.vmem %s6, %s278
          %s280 = smul.u32 8, %s20
        $region44: #{video_model_ctc_loss.2} parent=31 // pred_fallthru
          _
      $region32: #{video_model_ctc_loss.2} parent=5 // pred_fallthru
        _
      %p281 = scmp.le.s32.totalorder 1, %s13
      %p282 = scmp.lt.s32.totalorder %s13, 5
      %p283 = pnand %p281, %p282
      %p284 = pneg %p283
      // Predicated region
      $region45: #{video_model_ctc_loss.2} parent=5 // pred_check
        _
      $region46: #{video_model_ctc_loss.2} parent=5 // pred_check_branch
        %286 = sbr.rel (%p283) target = $region48
      $region47: #{video_model_ctc_loss.2} parent=5 // pred_region
        %s287 = ssub.s32 %s13, 1
        %s288 = smul.u32 8, %s22
        %s289 = smul.u32 2, %s23
        %p290 = scmp.lt.s32.totalorder %s288, 31
        %s291 = scalar_select %p290, %s288, 31
        %p292 = scmp.lt.s32.totalorder %s289, 1
        %s293 = scalar_select %p292, %s289, 1
        %s294 = smul.addr %s291, 2
        %s295 = sadd.s32 %s293, %s294
        %s296 = smul.addr %s295, 8
        %s297 = scalar_lea.vmem %s0, %s296
        %p298 = pneg %p53
        %p299 = pneg %p50
        %p300 = pneg %p74
        %p301 = pneg %p71
        %p302 = pneg %p95
        %p303 = pneg %p92
        %p304 = pneg %p116
        %p305 = pneg %p113
        %p306 = pneg %p137
        %p307 = pneg %p134
        %s308 = smul.u32 8, %s22
        %p309 = scmp.lt.s32.totalorder %s308, 31
        %s310 = scalar_select %p309, %s308, 31
        %s311 = smul.addr %s310, 4
        %s312 = smul.addr %s311, 4
        %s313 = scalar_lea.vmem %s5, %s312
        %p314 = pneg %p163
        %p315 = pneg %p160
        %s316 = smul.u32 8, %s22
        %p317 = scmp.lt.s32.totalorder %s316, 31
        %s318 = scalar_select %p317, %s316, 31
        %s319 = scalar_lea.vmem %s6, %s318
        %p320 = pneg %p189
        %p321 = pneg %p186
        %p322 = pneg %p217
        %p323 = pneg %p214
        %s324 = sand.u32 %s204, 1
        %s325 = sand.u32 %s204, 1
        %s326 = smul.addr %s325, 128
        %s327 = scalar_lea.vmem [#allocation2], %s326
        %s328 = smul.u32 8, %s22
        %s329 = smul.u32 2, %s23
        %p330 = scmp.lt.s32.totalorder %s328, 31
        %s331 = scalar_select %p330, %s328, 31
        %p332 = scmp.lt.s32.totalorder %s329, 1
        %s333 = scalar_select %p332, %s329, 1
        %s334 = smul.addr %s331, 2
        %s335 = sadd.s32 %s333, %s334
        %s336 = smul.addr %s335, 8
        %s337 = scalar_lea.vmem %s0, %s336
        %s338 = smul.u32 8, %s22
        %s339 = smul.u32 2, %s23
        %s340 = smul.u32 8, %s22
        %p341 = scmp.lt.s32.totalorder %s340, 31
        %s342 = scalar_select %p341, %s340, 31
        %s343 = smul.addr %s342, 4
        %s344 = smul.addr %s343, 4
        %s345 = scalar_lea.vmem %s5, %s344
        %s346 = smul.u32 8, %s22
        %s347 = smul.u32 8, %s22
        %p348 = scmp.lt.s32.totalorder %s347, 31
        %s349 = scalar_select %p348, %s347, 31
        %s350 = scalar_lea.vmem %s6, %s349
        %s351 = smul.u32 8, %s22
        %s352 = smul.u32 16, %s23
        %v354 = vld [vmem:[%s337] sm:$0xff]
        %v355 = vld [vmem:[%s337 + $0x8] sm:$0xff]
        %v356 = vld [vmem:[%s337 + $0x10] sm:$0xff]
        %v357 = vld [vmem:[%s337 + $0x18] sm:$0xff]
        %v358 = vld [vmem:[%s337 + $0x20] sm:$0xff]
        %v359 = vld [vmem:[%s337 + $0x28] sm:$0xff]
        %v360 = vld [vmem:[%s337 + $0x30] sm:$0xff]
        %v361 = vld [vmem:[%s337 + $0x38] sm:$0xff]
        %v362 = vld [vmem:[%s337 + $0x40] sm:$0xff]
        %v363 = vld [vmem:[%s337 + $0x48] sm:$0xff]
        %v364 = vld [vmem:[%s337 + $0x50] sm:$0xff]
        %v365 = vld [vmem:[%s337 + $0x58] sm:$0xff]
        %v366 = vld [vmem:[%s337 + $0x60] sm:$0xff]
        %v367 = vld [vmem:[%s337 + $0x68] sm:$0xff]
        %v368 = vld [vmem:[%s337 + $0x70] sm:$0xff]
        %v369 = vld [vmem:[%s337 + $0x78] sm:$0xff]
        %v370 = vpack.c.bf16 %v355, %v354
        %v371 = vpack.c.bf16 %v357, %v356
        %v372 = vpack.c.bf16 %v359, %v358
        %v373 = vpack.c.bf16 %v361, %v360
        %v374 = vpack.c.bf16 %v363, %v362
        %v375 = vpack.c.bf16 %v365, %v364
        %v376 = vpack.c.bf16 %v367, %v366
        %v377 = vpack.c.bf16 %v369, %v368
        %v378 = vld [vmem:[%s1] sm:$0xf]
        %v379 = vld [vmem:[%s1 + $0x4] sm:$0xf]
        %v380 = vld [vmem:[%s1 + $0x8] sm:$0xf]
        %v381 = vld [vmem:[%s1 + $0xc] sm:$0xf]
        %v382 = vld [vmem:[%s2] sm:$0x1]
        %v384 = vlaneseq
        %v385 = vshrl.u32 %v384, 7
        %v386 = vsub.s32 0, %v385
        %v387 = vrot.slane %v382, %v386
        %v393 = vunpack.c.l.b16 %v378
        %v394 = vunpack.c.l.b16 %v379
        %v395 = vunpack.c.l.b16 %v380
        %v396 = vunpack.c.l.b16 %v381
        %v397 = vpack.c.b16 %v394, %v393
        %v398 = vpack.c.b16 %v396, %v395
        %vm401 = vcmask 261120
        %v403 = vsel %vm401, %v370, 0
        %v406 = vsel %vm401, %v371, 0
        %v409 = vsel %vm401, %v372, 0
        %v412 = vsel %vm401, %v373, 0
        %v415 = vsel %vm401, %v374, 0
        %v418 = vsel %vm401, %v375, 0
        %v421 = vsel %vm401, %v376, 0
        %v424 = vsel %vm401, %v377, 0
        %426 = vmatprep.subr.bf16.mxu0 0
        %427 = vmatpush1.bf16.msra.mxu0 %v397
        %428 = vmatprep.subr.bf16.mxu0 0
        %429 = vmatpush1.bf16.msra.mxu0 %v398
        %430 = vmatprep.subr.bf16.mxu0 0
        %431 = vmatpush1.bf16.msra.mxu0 0
        %432 = vmatprep.subr.bf16.mxu0 0
        %433 = vmatpush1.bf16.msra.mxu0 0
        %434 = vmatprep.subr.bf16.mxu0 0
        %435 = vmatpush1.bf16.msra.mxu0 0
        %436 = vmatprep.subr.bf16.mxu0 0
        %437 = vmatpush1.bf16.msra.mxu0 0
        %438 = vmatprep.subr.bf16.mxu0 0
        %439 = vmatpush1.bf16.msra.mxu0 0
        %440 = vmatprep.subr.bf16.mxu0 0
        %441 = vmatpush1.bf16.msra.mxu0 0
        %442 = vmatprep.subr.bf16.mxu0 0
        %443 = vmatpush1.bf16.msra.mxu0 0
        %444 = vmatprep.subr.bf16.mxu0 0
        %445 = vmatpush1.bf16.msra.mxu0 0
        %446 = vmatprep.subr.bf16.mxu0 0
        %447 = vmatpush1.bf16.msra.mxu0 0
        %448 = vmatprep.subr.bf16.mxu0 0
        %449 = vmatpush1.bf16.msra.mxu0 0
        %450 = vmatprep.subr.bf16.mxu0 0
        %451 = vmatpush1.bf16.msra.mxu0 0
        %452 = vmatprep.subr.bf16.mxu0 0
        %453 = vmatpush1.bf16.msra.mxu0 0
        %454 = vmatprep.subr.bf16.mxu0 0
        %455 = vmatpush1.bf16.msra.mxu0 0
        %456 = vmatprep.subr.bf16.mxu0 0
        %457 = vmatpush1.bf16.msra.mxu0 0
        %458 = vmatprep.mubr.bf16.mxu0 0
        %459 = vmatmul.mubr.bf16.gmra.mrb[0].mxu0 %v403
        %v460 = vpop.f32.mrb[0].mxu0
        %v461 = vadd.f32 %v387, %v460
        %v462 = vpop.f32.mrb[0].mxu0
        %v463 = vpop.f32.mrb[0].mxu0
        %v464 = vadd.f32 %v387, %v463
        %v465 = vpop.f32.mrb[0].mxu0
        %466 = vmatprep.mubr.bf16.mxu0 0
        %467 = vmatmul.mubr.bf16.gmra.mrb[0].mxu0 %v406
        %v468 = vpop.f32.mrb[0].mxu0
        %v469 = vadd.f32 %v387, %v468
        %v470 = vpop.f32.mrb[0].mxu0
        %v471 = vpop.f32.mrb[0].mxu0
        %v472 = vadd.f32 %v387, %v471
        %v473 = vpop.f32.mrb[0].mxu0
        %474 = vmatprep.mubr.bf16.mxu0 0
        %475 = vmatmul.mubr.bf16.gmra.mrb[0].mxu0 %v409
        %v476 = vpop.f32.mrb[0].mxu0
        %v477 = vadd.f32 %v387, %v476
        %v478 = vpop.f32.mrb[0].mxu0
        %v479 = vpop.f32.mrb[0].mxu0
        %v480 = vadd.f32 %v387, %v479
        %v481 = vpop.f32.mrb[0].mxu0
        %482 = vmatprep.mubr.bf16.mxu0 0
        %483 = vmatmul.mubr.bf16.gmra.mrb[0].mxu0 %v412
        %v484 = vpop.f32.mrb[0].mxu0
        %v485 = vadd.f32 %v387, %v484
        %v486 = vpop.f32.mrb[0].mxu0
        %v487 = vpop.f32.mrb[0].mxu0
        %v488 = vadd.f32 %v387, %v487
        %v489 = vpop.f32.mrb[0].mxu0
        %490 = vmatprep.mubr.bf16.mxu0 0
        %491 = vmatmul.mubr.bf16.gmra.mrb[0].mxu0 %v415
        %v492 = vpop.f32.mrb[0].mxu0
        %v493 = vadd.f32 %v387, %v492
        %v494 = vpop.f32.mrb[0].mxu0
        %v495 = vpop.f32.mrb[0].mxu0
        %v496 = vadd.f32 %v387, %v495
        %v497 = vpop.f32.mrb[0].mxu0
        %498 = vmatprep.mubr.bf16.mxu0 0
        %499 = vmatmul.mubr.bf16.gmra.mrb[0].mxu0 %v418
        %v500 = vpop.f32.mrb[0].mxu0
        %v501 = vadd.f32 %v387, %v500
        %v502 = vpop.f32.mrb[0].mxu0
        %v503 = vpop.f32.mrb[0].mxu0
        %v504 = vadd.f32 %v387, %v503
        %v505 = vpop.f32.mrb[0].mxu0
        %506 = vmatprep.mubr.bf16.mxu0 0
        %507 = vmatmul.mubr.bf16.gmra.mrb[0].mxu0 %v421
        %v508 = vpop.f32.mrb[0].mxu0
        %v509 = vadd.f32 %v387, %v508
        %v510 = vpop.f32.mrb[0].mxu0
        %v511 = vpop.f32.mrb[0].mxu0
        %v512 = vadd.f32 %v387, %v511
        %v513 = vpop.f32.mrb[0].mxu0
        %514 = vmatprep.mubr.bf16.mxu0 0
        %515 = vmatmul.mubr.bf16.gmra.mrb[0].mxu0 %v424
        %v516 = vpop.f32.mrb[0].mxu0
        %v517 = vadd.f32 %v387, %v516
        %v518 = vpop.f32.mrb[0].mxu0
        %v519 = vpop.f32.mrb[0].mxu0
        %v520 = vadd.f32 %v387, %v519
        %v521 = vpop.f32.mrb[0].mxu0
        %522 = vdwg.mxu0
        %v523 = vmax.f32 %v461, 0.0
        %v524 = vmax.f32 %v464, 0.0
        %v525 = vmax.f32 %v469, 0.0
        %v526 = vmax.f32 %v472, 0.0
        %v527 = vmax.f32 %v477, 0.0
        %v528 = vmax.f32 %v480, 0.0
        %v529 = vmax.f32 %v485, 0.0
        %v530 = vmax.f32 %v488, 0.0
        %v531 = vmax.f32 %v493, 0.0
        %v532 = vmax.f32 %v496, 0.0
        %v533 = vmax.f32 %v501, 0.0
        %v534 = vmax.f32 %v504, 0.0
        %v535 = vmax.f32 %v509, 0.0
        %v536 = vmax.f32 %v512, 0.0
        %v537 = vmax.f32 %v517, 0.0
        %v538 = vmax.f32 %v520, 0.0
        %v539 = vpack.c.bf16 %v524, %v523
        %v540 = vpack.c.bf16 %v526, %v525
        %v541 = vpack.c.bf16 %v528, %v527
        %v542 = vpack.c.bf16 %v530, %v529
        %v543 = vpack.c.bf16 %v532, %v531
        %v544 = vpack.c.bf16 %v534, %v533
        %v545 = vpack.c.bf16 %v536, %v535
        %v546 = vpack.c.bf16 %v538, %v537
        %v547 = vld [vmem:[%s3] sm:$0xf]
        %v548 = vld [vmem:[%s3 + $0x4] sm:$0xf]
        %v549 = vld [vmem:[%s3 + $0x8] sm:$0xf]
        %v550 = vld [vmem:[%s3 + $0xc] sm:$0xf]
        %v551 = vld [vmem:[%s4] sm:$0x1]
        %v553 = vlaneseq
        %v554 = vshrl.u32 %v553, 7
        %v555 = vsub.s32 0, %v554
        %v556 = vrot.slane %v551, %v555
        %v562 = vunpack.c.l.b16 %v547
        %v563 = vunpack.c.l.b16 %v548
        %v564 = vunpack.c.l.b16 %v549
        %v565 = vunpack.c.l.b16 %v550
        %v566 = vpack.c.b16 %v563, %v562
        %v567 = vpack.c.b16 %v565, %v564
        %v571 = vsel %vm401, %v539, 0
        %v574 = vsel %vm401, %v540, 0
        %v577 = vsel %vm401, %v541, 0
        %v580 = vsel %vm401, %v542, 0
        %v583 = vsel %vm401, %v543, 0
        %v586 = vsel %vm401, %v544, 0
        %v589 = vsel %vm401, %v545, 0
        %v592 = vsel %vm401, %v546, 0
        %594 = vmatprep.subr.bf16.mxu0 0
        %595 = vmatpush1.bf16.msra.mxu0 %v566
        %596 = vmatprep.subr.bf16.mxu0 0
        %597 = vmatpush1.bf16.msra.mxu0 %v567
        %598 = vmatprep.subr.bf16.mxu0 0
        %599 = vmatpush1.bf16.msra.mxu0 0
        %600 = vmatprep.subr.bf16.mxu0 0
        %601 = vmatpush1.bf16.msra.mxu0 0
        %602 = vmatprep.subr.bf16.mxu0 0
        %603 = vmatpush1.bf16.msra.mxu0 0
        %604 = vmatprep.subr.bf16.mxu0 0
        %605 = vmatpush1.bf16.msra.mxu0 0
        %606 = vmatprep.subr.bf16.mxu0 0
        %607 = vmatpush1.bf16.msra.mxu0 0
        %608 = vmatprep.subr.bf16.mxu0 0
        %609 = vmatpush1.bf16.msra.mxu0 0
        %610 = vmatprep.subr.bf16.mxu0 0
        %611 = vmatpush1.bf16.msra.mxu0 0
        %612 = vmatprep.subr.bf16.mxu0 0
        %613 = vmatpush1.bf16.msra.mxu0 0
        %614 = vmatprep.subr.bf16.mxu0 0
        %615 = vmatpush1.bf16.msra.mxu0 0
        %616 = vmatprep.subr.bf16.mxu0 0
        %617 = vmatpush1.bf16.msra.mxu0 0
        %618 = vmatprep.subr.bf16.mxu0 0
        %619 = vmatpush1.bf16.msra.mxu0 0
        %620 = vmatprep.subr.bf16.mxu0 0
        %621 = vmatpush1.bf16.msra.mxu0 0
        %622 = vmatprep.subr.bf16.mxu0 0
        %623 = vmatpush1.bf16.msra.mxu0 0
        %624 = vmatprep.subr.bf16.mxu0 0
        %625 = vmatpush1.bf16.msra.mxu0 0
        %626 = vmatprep.mubr.bf16.mxu0 0
        %627 = vmatmul.mubr.bf16.gmra.mrb[0].mxu0 %v571
        %v628 = vpop.f32.mrb[0].mxu0
        %v629 = vadd.f32 %v556, %v628
        %v630 = vpop.f32.mrb[0].mxu0
        %v631 = vpop.f32.mrb[0].mxu0
        %v632 = vadd.f32 %v556, %v631
        %v633 = vpop.f32.mrb[0].mxu0
        %634 = vmatprep.mubr.bf16.mxu0 0
        %635 = vmatmul.mubr.bf16.gmra.mrb[0].mxu0 %v574
        %v636 = vpop.f32.mrb[0].mxu0
        %v637 = vadd.f32 %v556, %v636
        %v638 = vpop.f32.mrb[0].mxu0
        %v639 = vpop.f32.mrb[0].mxu0
        %v640 = vadd.f32 %v556, %v639
        %v641 = vpop.f32.mrb[0].mxu0
        %642 = vmatprep.mubr.bf16.mxu0 0
        %643 = vmatmul.mubr.bf16.gmra.mrb[0].mxu0 %v577
        %v644 = vpop.f32.mrb[0].mxu0
        %v645 = vadd.f32 %v556, %v644
        %v646 = vpop.f32.mrb[0].mxu0
        %v647 = vpop.f32.mrb[0].mxu0
        %v648 = vadd.f32 %v556, %v647
        %v649 = vpop.f32.mrb[0].mxu0
        %650 = vmatprep.mubr.bf16.mxu0 0
        %651 = vmatmul.mubr.bf16.gmra.mrb[0].mxu0 %v580
        %v652 = vpop.f32.mrb[0].mxu0
        %v653 = vadd.f32 %v556, %v652
        %v654 = vpop.f32.mrb[0].mxu0
        %v655 = vpop.f32.mrb[0].mxu0
        %v656 = vadd.f32 %v556, %v655
        %v657 = vpop.f32.mrb[0].mxu0
        %658 = vmatprep.mubr.bf16.mxu0 0
        %659 = vmatmul.mubr.bf16.gmra.mrb[0].mxu0 %v583
        %v660 = vpop.f32.mrb[0].mxu0
        %v661 = vadd.f32 %v556, %v660
        %v662 = vpop.f32.mrb[0].mxu0
        %v663 = vpop.f32.mrb[0].mxu0
        %v664 = vadd.f32 %v556, %v663
        %v665 = vpop.f32.mrb[0].mxu0
        %666 = vmatprep.mubr.bf16.mxu0 0
        %667 = vmatmul.mubr.bf16.gmra.mrb[0].mxu0 %v586
        %v668 = vpop.f32.mrb[0].mxu0
        %v669 = vadd.f32 %v556, %v668
        %v670 = vpop.f32.mrb[0].mxu0
        %v671 = vpop.f32.mrb[0].mxu0
        %v672 = vadd.f32 %v556, %v671
        %v673 = vpop.f32.mrb[0].mxu0
        %674 = vmatprep.mubr.bf16.mxu0 0
        %675 = vmatmul.mubr.bf16.gmra.mrb[0].mxu0 %v589
        %v676 = vpop.f32.mrb[0].mxu0
        %v677 = vadd.f32 %v556, %v676
        %v678 = vpop.f32.mrb[0].mxu0
        %v679 = vpop.f32.mrb[0].mxu0
        %v680 = vadd.f32 %v556, %v679
        %v681 = vpop.f32.mrb[0].mxu0
        %682 = vmatprep.mubr.bf16.mxu0 0
        %683 = vmatmul.mubr.bf16.gmra.mrb[0].mxu0 %v592
        %v684 = vpop.f32.mrb[0].mxu0
        %v685 = vadd.f32 %v556, %v684
        %v686 = vpop.f32.mrb[0].mxu0
        %v687 = vpop.f32.mrb[0].mxu0
        %v688 = vadd.f32 %v556, %v687
        %v689 = vpop.f32.mrb[0].mxu0
        %690 = vdwg.mxu0
        %691 = vmax.xlane.f32.xlu0 %v629
        %v692 = vpop.xlane.xlu0 %691
        %693 = vmax.xlane.f32.xlu0 %v632
        %v694 = vpop.xlane.xlu0 %693
        %695 = vmax.xlane.f32.xlu0 %v637
        %v696 = vpop.xlane.xlu0 %695
        %697 = vmax.xlane.f32.xlu0 %v640
        %v698 = vpop.xlane.xlu0 %697
        %699 = vmax.xlane.f32.xlu0 %v645
        %v700 = vpop.xlane.xlu0 %699
        %701 = vmax.xlane.f32.xlu0 %v648
        %v702 = vpop.xlane.xlu0 %701
        %703 = vmax.xlane.f32.xlu0 %v653
        %v704 = vpop.xlane.xlu0 %703
        %705 = vmax.xlane.f32.xlu0 %v656
        %v706 = vpop.xlane.xlu0 %705
        %707 = vmax.xlane.f32.xlu0 %v661
        %v708 = vpop.xlane.xlu0 %707
        %709 = vmax.xlane.f32.xlu0 %v664
        %v710 = vpop.xlane.xlu0 %709
        %711 = vmax.xlane.f32.xlu0 %v669
        %v712 = vpop.xlane.xlu0 %711
        %713 = vmax.xlane.f32.xlu0 %v672
        %v714 = vpop.xlane.xlu0 %713
        %715 = vmax.xlane.f32.xlu0 %v677
        %v716 = vpop.xlane.xlu0 %715
        %717 = vmax.xlane.f32.xlu0 %v680
        %v718 = vpop.xlane.xlu0 %717
        %719 = vmax.xlane.f32.xlu0 %v685
        %v720 = vpop.xlane.xlu0 %719
        %721 = vmax.xlane.f32.xlu0 %v688
        %v722 = vpop.xlane.xlu0 %721
        %v723 = vsub.f32 %v629, %v692
        %v724 = vsub.f32 %v632, %v694
        %v725 = vsub.f32 %v637, %v696
        %v726 = vsub.f32 %v640, %v698
        %v727 = vsub.f32 %v645, %v700
        %v728 = vsub.f32 %v648, %v702
        %v729 = vsub.f32 %v653, %v704
        %v730 = vsub.f32 %v656, %v706
        %v731 = vsub.f32 %v661, %v708
        %v732 = vsub.f32 %v664, %v710
        %v733 = vsub.f32 %v669, %v712
        %v734 = vsub.f32 %v672, %v714
        %v735 = vsub.f32 %v677, %v716
        %v736 = vsub.f32 %v680, %v718
        %v737 = vsub.f32 %v685, %v720
        %v738 = vsub.f32 %v688, %v722
        %v739 = vmul.f32 %v723, 1.442695
        %v740 = vpow.pop %v739
        %v741 = vmul.f32 %v724, 1.442695
        %v742 = vpow.pop %v741
        %v743 = vmul.f32 %v725, 1.442695
        %v744 = vpow.pop %v743
        %v745 = vmul.f32 %v726, 1.442695
        %v746 = vpow.pop %v745
        %v747 = vmul.f32 %v727, 1.442695
        %v748 = vpow.pop %v747
        %v749 = vmul.f32 %v728, 1.442695
        %v750 = vpow.pop %v749
        %v751 = vmul.f32 %v729, 1.442695
        %v752 = vpow.pop %v751
        %v753 = vmul.f32 %v730, 1.442695
        %v754 = vpow.pop %v753
        %v755 = vmul.f32 %v731, 1.442695
        %v756 = vpow.pop %v755
        %v757 = vmul.f32 %v732, 1.442695
        %v758 = vpow.pop %v757
        %v759 = vmul.f32 %v733, 1.442695
        %v760 = vpow.pop %v759
        %v761 = vmul.f32 %v734, 1.442695
        %v762 = vpow.pop %v761
        %v763 = vmul.f32 %v735, 1.442695
        %v764 = vpow.pop %v763
        %v765 = vmul.f32 %v736, 1.442695
        %v766 = vpow.pop %v765
        %v767 = vmul.f32 %v737, 1.442695
        %v768 = vpow.pop %v767
        %v769 = vmul.f32 %v738, 1.442695
        %v770 = vpow.pop %v769
        %771 = vadd.xlane.f32.xlu0 %v740
        %v772 = vpop.xlane.xlu0 %771
        %773 = vadd.xlane.f32.xlu0 %v742
        %v774 = vpop.xlane.xlu0 %773
        %775 = vadd.xlane.f32.xlu0 %v744
        %v776 = vpop.xlane.xlu0 %775
        %777 = vadd.xlane.f32.xlu0 %v746
        %v778 = vpop.xlane.xlu0 %777
        %779 = vadd.xlane.f32.xlu0 %v748
        %v780 = vpop.xlane.xlu0 %779
        %781 = vadd.xlane.f32.xlu0 %v750
        %v782 = vpop.xlane.xlu0 %781
        %783 = vadd.xlane.f32.xlu0 %v752
        %v784 = vpop.xlane.xlu0 %783
        %785 = vadd.xlane.f32.xlu0 %v754
        %v786 = vpop.xlane.xlu0 %785
        %787 = vadd.xlane.f32.xlu0 %v756
        %v788 = vpop.xlane.xlu0 %787
        %789 = vadd.xlane.f32.xlu0 %v758
        %v790 = vpop.xlane.xlu0 %789
        %791 = vadd.xlane.f32.xlu0 %v760
        %v792 = vpop.xlane.xlu0 %791
        %793 = vadd.xlane.f32.xlu0 %v762
        %v794 = vpop.xlane.xlu0 %793
        %795 = vadd.xlane.f32.xlu0 %v764
        %v796 = vpop.xlane.xlu0 %795
        %797 = vadd.xlane.f32.xlu0 %v766
        %v798 = vpop.xlane.xlu0 %797
        %799 = vadd.xlane.f32.xlu0 %v768
        %v800 = vpop.xlane.xlu0 %799
        %801 = vadd.xlane.f32.xlu0 %v770
        %v802 = vpop.xlane.xlu0 %801
        %v803 = vlog2.pop %v772
        %v804 = vmul.f32 %v803, 0.6931472
        %v805 = vlog2.pop %v774
        %v806 = vmul.f32 %v805, 0.6931472
        %v807 = vlog2.pop %v776
        %v808 = vmul.f32 %v807, 0.6931472
        %v809 = vlog2.pop %v778
        %v810 = vmul.f32 %v809, 0.6931472
        %v811 = vlog2.pop %v780
        %v812 = vmul.f32 %v811, 0.6931472
        %v813 = vlog2.pop %v782
        %v814 = vmul.f32 %v813, 0.6931472
        %v815 = vlog2.pop %v784
        %v816 = vmul.f32 %v815, 0.6931472
        %v817 = vlog2.pop %v786
        %v818 = vmul.f32 %v817, 0.6931472
        %v819 = vlog2.pop %v788
        %v820 = vmul.f32 %v819, 0.6931472
        %v821 = vlog2.pop %v790
        %v822 = vmul.f32 %v821, 0.6931472
        %v823 = vlog2.pop %v792
        %v824 = vmul.f32 %v823, 0.6931472
        %v825 = vlog2.pop %v794
        %v826 = vmul.f32 %v825, 0.6931472
        %v827 = vlog2.pop %v796
        %v828 = vmul.f32 %v827, 0.6931472
        %v829 = vlog2.pop %v798
        %v830 = vmul.f32 %v829, 0.6931472
        %v831 = vlog2.pop %v800
        %v832 = vmul.f32 %v831, 0.6931472
        %v833 = vlog2.pop %v802
        %v834 = vmul.f32 %v833, 0.6931472
        %v835 = vadd.f32 %v692, %v804
        %v836 = vadd.f32 %v694, %v806
        %v837 = vadd.f32 %v696, %v808
        %v838 = vadd.f32 %v698, %v810
        %v839 = vadd.f32 %v700, %v812
        %v840 = vadd.f32 %v702, %v814
        %v841 = vadd.f32 %v704, %v816
        %v842 = vadd.f32 %v706, %v818
        %v843 = vadd.f32 %v708, %v820
        %v844 = vadd.f32 %v710, %v822
        %v845 = vadd.f32 %v712, %v824
        %v846 = vadd.f32 %v714, %v826
        %v847 = vadd.f32 %v716, %v828
        %v848 = vadd.f32 %v718, %v830
        %v849 = vadd.f32 %v720, %v832
        %v850 = vadd.f32 %v722, %v834
        %v851 = vld [vmem:[%s345] sm:$0xf]
        %v852 = vld [vmem:[%s345 + $0x4] sm:$0xf]
        %v853 = vld [vmem:[%s345 + $0x8] sm:$0xf]
        %v854 = vld [vmem:[%s345 + $0xc] sm:$0xf]
        %v855 = vld [vmem:[%s350] sm:$0x1]
        %v857 = vlaneseq
        %v858 = vshrl.u32 %v857, 7
        %v859 = vsub.s32 0, %v858
        %v860 = vrot.slane %v855, %v859
        %v866 = vunpack.c.l.b16 %v851
        %v867 = vunpack.c.l.b16 %v852
        %v868 = vunpack.c.l.b16 %v853
        %v869 = vunpack.c.l.b16 %v854
        %v870 = vpack.c.b16 %v867, %v866
        %v871 = vpack.c.b16 %v869, %v868
        %874 = vmatprep.subr.bf16.mxu0 0
        %875 = vmatpush1.bf16.msra.mxu0 %v870
        %876 = vmatprep.subr.bf16.mxu0 0
        %877 = vmatpush1.bf16.msra.mxu0 %v871
        %878 = vmatprep.subr.bf16.mxu0 0
        %879 = vmatpush1.bf16.msra.mxu0 0
        %880 = vmatprep.subr.bf16.mxu0 0
        %881 = vmatpush1.bf16.msra.mxu0 0
        %882 = vmatprep.subr.bf16.mxu0 0
        %883 = vmatpush1.bf16.msra.mxu0 0
        %884 = vmatprep.subr.bf16.mxu0 0
        %885 = vmatpush1.bf16.msra.mxu0 0
        %886 = vmatprep.subr.bf16.mxu0 0
        %887 = vmatpush1.bf16.msra.mxu0 0
        %888 = vmatprep.subr.bf16.mxu0 0
        %889 = vmatpush1.bf16.msra.mxu0 0
        %890 = vmatprep.subr.bf16.mxu0 0
        %891 = vmatpush1.bf16.msra.mxu0 0
        %892 = vmatprep.subr.bf16.mxu0 0
        %893 = vmatpush1.bf16.msra.mxu0 0
        %894 = vmatprep.subr.bf16.mxu0 0
        %895 = vmatpush1.bf16.msra.mxu0 0
        %896 = vmatprep.subr.bf16.mxu0 0
        %897 = vmatpush1.bf16.msra.mxu0 0
        %898 = vmatprep.subr.bf16.mxu0 0
        %899 = vmatpush1.bf16.msra.mxu0 0
        %900 = vmatprep.subr.bf16.mxu0 0
        %901 = vmatpush1.bf16.msra.mxu0 0
        %902 = vmatprep.subr.bf16.mxu0 0
        %903 = vmatpush1.bf16.msra.mxu0 0
        %904 = vmatprep.subr.bf16.mxu0 0
        %905 = vmatpush1.bf16.msra.mxu0 0
        %906 = vmatprep.mubr.bf16.mxu0 0
        %907 = vmatmul.mubr.bf16.gmra.mrb[0].mxu0 %v571
        %v908 = vpop.f32.mrb[0].mxu0
        %v909 = vadd.f32 %v860, %v908
        %v910 = vpop.f32.mrb[0].mxu0
        %v911 = vpop.f32.mrb[0].mxu0
        %v912 = vadd.f32 %v860, %v911
        %v913 = vpop.f32.mrb[0].mxu0
        %914 = vdwg.mxu0
        %v915 = vsub.f32 %v909, %v835
        %v916 = vsub.f32 %v912, %v836
        %v919 = vcombine.high %v915, %v915
        %v921 = vunpack.c.l.s4 1966171168
        %v922 = vunpack.c.0.s8 %v921
        %v923 = vlaneseq
        %v924 = vshrl.u32 %v923, 7
        %v925 = vsub.s32 %v922, %v924
        %v926 = vrot.slane %v915, %v925
        %v928 = vunpack.c.l.s4 1966171168
        %v929 = vunpack.c.0.s8 %v928
        %v930 = vlaneseq
        %v931 = vshrl.u32 %v930, 7
        %v932 = vsub.s32 %v929, %v931
        %v933 = vrot.slane %v919, %v932
        %v934 = vcombine.high %v926, %v926
        %v935 = vcombine.high %v933, %v933
        %v937 = vunpack.c.l.s4 1966171168
        %v938 = vunpack.c.0.s8 %v937
        %v939 = vlaneseq
        %v940 = vshrl.u32 %v939, 7
        %v941 = vsub.s32 %v938, %v940
        %v942 = vrot.slane %v926, %v941
        %v944 = vunpack.c.l.s4 1966171168
        %v945 = vunpack.c.0.s8 %v944
        %v946 = vlaneseq
        %v947 = vshrl.u32 %v946, 7
        %v948 = vsub.s32 %v945, %v947
        %v949 = vrot.slane %v933, %v948
        %v951 = vunpack.c.l.s4 1966171168
        %v952 = vunpack.c.0.s8 %v951
        %v953 = vlaneseq
        %v954 = vshrl.u32 %v953, 7
        %v955 = vsub.s32 %v952, %v954
        %v956 = vrot.slane %v934, %v955
        %v958 = vunpack.c.l.s4 1966171168
        %v959 = vunpack.c.0.s8 %v958
        %v960 = vlaneseq
        %v961 = vshrl.u32 %v960, 7
        %v962 = vsub.s32 %v959, %v961
        %v963 = vrot.slane %v935, %v962
        %v964 = vcombine.high %v942, %v942
        %v965 = vcombine.high %v949, %v949
        %v966 = vcombine.high %v956, %v956
        %v967 = vcombine.high %v963, %v963
        %v968 = vcombine.high %v916, %v916
        %v970 = vunpack.c.l.s4 1966171168
        %v971 = vunpack.c.0.s8 %v970
        %v972 = vlaneseq
        %v973 = vshrl.u32 %v972, 7
        %v974 = vsub.s32 %v971, %v973
        %v975 = vrot.slane %v916, %v974
        %v977 = vunpack.c.l.s4 1966171168
        %v978 = vunpack.c.0.s8 %v977
        %v979 = vlaneseq
        %v980 = vshrl.u32 %v979, 7
        %v981 = vsub.s32 %v978, %v980
        %v982 = vrot.slane %v968, %v981
        %v983 = vcombine.high %v975, %v975
        %v984 = vcombine.high %v982, %v982
        %v986 = vunpack.c.l.s4 1966171168
        %v987 = vunpack.c.0.s8 %v986
        %v988 = vlaneseq
        %v989 = vshrl.u32 %v988, 7
        %v990 = vsub.s32 %v987, %v989
        %v991 = vrot.slane %v975, %v990
        %v993 = vunpack.c.l.s4 1966171168
        %v994 = vunpack.c.0.s8 %v993
        %v995 = vlaneseq
        %v996 = vshrl.u32 %v995, 7
        %v997 = vsub.s32 %v994, %v996
        %v998 = vrot.slane %v982, %v997
        %v1000 = vunpack.c.l.s4 1966171168
        %v1001 = vunpack.c.0.s8 %v1000
        %v1002 = vlaneseq
        %v1003 = vshrl.u32 %v1002, 7
        %v1004 = vsub.s32 %v1001, %v1003
        %v1005 = vrot.slane %v983, %v1004
        %v1007 = vunpack.c.l.s4 1966171168
        %v1008 = vunpack.c.0.s8 %v1007
        %v1009 = vlaneseq
        %v1010 = vshrl.u32 %v1009, 7
        %v1011 = vsub.s32 %v1008, %v1010
        %v1012 = vrot.slane %v984, %v1011
        %v1013 = vcombine.high %v991, %v991
        %v1014 = vcombine.high %v998, %v998
        %v1015 = vcombine.high %v1005, %v1005
        %v1016 = vcombine.high %v1012, %v1012
        %1033 = vst [vmem:[%s327] sm:$0x1] %v942
        %1034 = vst [vmem:[%s327 + $0x8] sm:$0x1] %v956
        %1035 = vst [vmem:[%s327 + $0x10] sm:$0x1] %v964
        %1036 = vst [vmem:[%s327 + $0x18] sm:$0x1] %v966
        %1037 = vst [vmem:[%s327 + $0x20] sm:$0x1] %v949
        %1038 = vst [vmem:[%s327 + $0x28] sm:$0x1] %v963
        %1039 = vst [vmem:[%s327 + $0x30] sm:$0x1] %v965
        %1040 = vst [vmem:[%s327 + $0x38] sm:$0x1] %v967
        %1041 = vst [vmem:[%s327 + $0x40] sm:$0x1] %v991
        %1042 = vst [vmem:[%s327 + $0x48] sm:$0x1] %v1005
        %1043 = vst [vmem:[%s327 + $0x50] sm:$0x1] %v1013
        %1044 = vst [vmem:[%s327 + $0x58] sm:$0x1] %v1015
        %1045 = vst [vmem:[%s327 + $0x60] sm:$0x1] %v998
        %1046 = vst [vmem:[%s327 + $0x68] sm:$0x1] %v1012
        %1047 = vst [vmem:[%s327 + $0x70] sm:$0x1] %v1014
        %1048 = vst [vmem:[%s327 + $0x78] sm:$0x1] %v1016
        %s1049 = scalar_lea.vmem %s345, 16
        %v1050 = vld [vmem:[%s1049] sm:$0xf]
        %v1051 = vld [vmem:[%s1049 + $0x4] sm:$0xf]
        %v1052 = vld [vmem:[%s1049 + $0x8] sm:$0xf]
        %v1053 = vld [vmem:[%s1049 + $0xc] sm:$0xf]
        %s1054 = scalar_lea.vmem %s350, 1
        %v1055 = vld [vmem:[%s1054] sm:$0x1]
        %v1057 = vlaneseq
        %v1058 = vshrl.u32 %v1057, 7
        %v1059 = vsub.s32 0, %v1058
        %v1060 = vrot.slane %v1055, %v1059
        %v1066 = vunpack.c.l.b16 %v1050
        %v1067 = vunpack.c.l.b16 %v1051
        %v1068 = vunpack.c.l.b16 %v1052
        %v1069 = vunpack.c.l.b16 %v1053
        %v1070 = vpack.c.b16 %v1067, %v1066
        %v1071 = vpack.c.b16 %v1069, %v1068
        %1074 = vmatprep.subr.bf16.mxu0 0
        %1075 = vmatpush1.bf16.msra.mxu0 %v1070
        %1076 = vmatprep.subr.bf16.mxu0 0
        %1077 = vmatpush1.bf16.msra.mxu0 %v1071
        %1078 = vmatprep.subr.bf16.mxu0 0
        %1079 = vmatpush1.bf16.msra.mxu0 0
        %1080 = vmatprep.subr.bf16.mxu0 0
        %1081 = vmatpush1.bf16.msra.mxu0 0
        %1082 = vmatprep.subr.bf16.mxu0 0
        %1083 = vmatpush1.bf16.msra.mxu0 0
        %1084 = vmatprep.subr.bf16.mxu0 0
        %1085 = vmatpush1.bf16.msra.mxu0 0
        %1086 = vmatprep.subr.bf16.mxu0 0
        %1087 = vmatpush1.bf16.msra.mxu0 0
        %1088 = vmatprep.subr.bf16.mxu0 0
        %1089 = vmatpush1.bf16.msra.mxu0 0
        %1090 = vmatprep.subr.bf16.mxu0 0
        %1091 = vmatpush1.bf16.msra.mxu0 0
        %1092 = vmatprep.subr.bf16.mxu0 0
        %1093 = vmatpush1.bf16.msra.mxu0 0
        %1094 = vmatprep.subr.bf16.mxu0 0
        %1095 = vmatpush1.bf16.msra.mxu0 0
        %1096 = vmatprep.subr.bf16.mxu0 0
        %1097 = vmatpush1.bf16.msra.mxu0 0
        %1098 = vmatprep.subr.bf16.mxu0 0
        %1099 = vmatpush1.bf16.msra.mxu0 0
        %1100 = vmatprep.subr.bf16.mxu0 0
        %1101 = vmatpush1.bf16.msra.mxu0 0
        %1102 = vmatprep.subr.bf16.mxu0 0
        %1103 = vmatpush1.bf16.msra.mxu0 0
        %1104 = vmatprep.subr.bf16.mxu0 0
        %1105 = vmatpush1.bf16.msra.mxu0 0
        %1106 = vmatprep.mubr.bf16.mxu0 0
        %1107 = vmatmul.mubr.bf16.gmra.mrb[0].mxu0 %v574
        %v1108 = vpop.f32.mrb[0].mxu0
        %v1109 = vadd.f32 %v1060, %v1108
        %v1110 = vpop.f32.mrb[0].mxu0
        %v1111 = vpop.f32.mrb[0].mxu0
        %v1112 = vadd.f32 %v1060, %v1111
        %v1113 = vpop.f32.mrb[0].mxu0
        %1114 = vdwg.mxu0
        %v1115 = vsub.f32 %v1109, %v837
        %v1116 = vsub.f32 %v1112, %v838
        %v1119 = vcombine.high %v1115, %v1115
        %v1121 = vunpack.c.l.s4 1966171168
        %v1122 = vunpack.c.0.s8 %v1121
        %v1123 = vlaneseq
        %v1124 = vshrl.u32 %v1123, 7
        %v1125 = vsub.s32 %v1122, %v1124
        %v1126 = vrot.slane %v1115, %v1125
        %v1128 = vunpack.c.l.s4 1966171168
        %v1129 = vunpack.c.0.s8 %v1128
        %v1130 = vlaneseq
        %v1131 = vshrl.u32 %v1130, 7
        %v1132 = vsub.s32 %v1129, %v1131
        %v1133 = vrot.slane %v1119, %v1132
        %v1134 = vcombine.high %v1126, %v1126
        %v1135 = vcombine.high %v1133, %v1133
        %v1137 = vunpack.c.l.s4 1966171168
        %v1138 = vunpack.c.0.s8 %v1137
        %v1139 = vlaneseq
        %v1140 = vshrl.u32 %v1139, 7
        %v1141 = vsub.s32 %v1138, %v1140
        %v1142 = vrot.slane %v1126, %v1141
        %v1144 = vunpack.c.l.s4 1966171168
        %v1145 = vunpack.c.0.s8 %v1144
        %v1146 = vlaneseq
        %v1147 = vshrl.u32 %v1146, 7
        %v1148 = vsub.s32 %v1145, %v1147
        %v1149 = vrot.slane %v1133, %v1148
        %v1151 = vunpack.c.l.s4 1966171168
        %v1152 = vunpack.c.0.s8 %v1151
        %v1153 = vlaneseq
        %v1154 = vshrl.u32 %v1153, 7
        %v1155 = vsub.s32 %v1152, %v1154
        %v1156 = vrot.slane %v1134, %v1155
        %v1158 = vunpack.c.l.s4 1966171168
        %v1159 = vunpack.c.0.s8 %v1158
        %v1160 = vlaneseq
        %v1161 = vshrl.u32 %v1160, 7
        %v1162 = vsub.s32 %v1159, %v1161
        %v1163 = vrot.slane %v1135, %v1162
        %v1164 = vcombine.high %v1142, %v1142
        %v1165 = vcombine.high %v1149, %v1149
        %v1166 = vcombine.high %v1156, %v1156
        %v1167 = vcombine.high %v1163, %v1163
        %v1168 = vcombine.high %v1116, %v1116
        %v1170 = vunpack.c.l.s4 1966171168
        %v1171 = vunpack.c.0.s8 %v1170
        %v1172 = vlaneseq
        %v1173 = vshrl.u32 %v1172, 7
        %v1174 = vsub.s32 %v1171, %v1173
        %v1175 = vrot.slane %v1116, %v1174
        %v1177 = vunpack.c.l.s4 1966171168
        %v1178 = vunpack.c.0.s8 %v1177
        %v1179 = vlaneseq
        %v1180 = vshrl.u32 %v1179, 7
        %v1181 = vsub.s32 %v1178, %v1180
        %v1182 = vrot.slane %v1168, %v1181
        %v1183 = vcombine.high %v1175, %v1175
        %v1184 = vcombine.high %v1182, %v1182
        %v1186 = vunpack.c.l.s4 1966171168
        %v1187 = vunpack.c.0.s8 %v1186
        %v1188 = vlaneseq
        %v1189 = vshrl.u32 %v1188, 7
        %v1190 = vsub.s32 %v1187, %v1189
        %v1191 = vrot.slane %v1175, %v1190
        %v1193 = vunpack.c.l.s4 1966171168
        %v1194 = vunpack.c.0.s8 %v1193
        %v1195 = vlaneseq
        %v1196 = vshrl.u32 %v1195, 7
        %v1197 = vsub.s32 %v1194, %v1196
        %v1198 = vrot.slane %v1182, %v1197
        %v1200 = vunpack.c.l.s4 1966171168
        %v1201 = vunpack.c.0.s8 %v1200
        %v1202 = vlaneseq
        %v1203 = vshrl.u32 %v1202, 7
        %v1204 = vsub.s32 %v1201, %v1203
        %v1205 = vrot.slane %v1183, %v1204
        %v1207 = vunpack.c.l.s4 1966171168
        %v1208 = vunpack.c.0.s8 %v1207
        %v1209 = vlaneseq
        %v1210 = vshrl.u32 %v1209, 7
        %v1211 = vsub.s32 %v1208, %v1210
        %v1212 = vrot.slane %v1184, %v1211
        %v1213 = vcombine.high %v1191, %v1191
        %v1214 = vcombine.high %v1198, %v1198
        %v1215 = vcombine.high %v1205, %v1205
        %v1216 = vcombine.high %v1212, %v1212
        %1233 = vst [vmem:[%s327 + $0x1] sm:$0x1] %v1142
        %1234 = vst [vmem:[%s327 + $0x9] sm:$0x1] %v1156
        %1235 = vst [vmem:[%s327 + $0x11] sm:$0x1] %v1164
        %1236 = vst [vmem:[%s327 + $0x19] sm:$0x1] %v1166
        %1237 = vst [vmem:[%s327 + $0x21] sm:$0x1] %v1149
        %1238 = vst [vmem:[%s327 + $0x29] sm:$0x1] %v1163
        %1239 = vst [vmem:[%s327 + $0x31] sm:$0x1] %v1165
        %1240 = vst [vmem:[%s327 + $0x39] sm:$0x1] %v1167
        %1241 = vst [vmem:[%s327 + $0x41] sm:$0x1] %v1191
        %1242 = vst [vmem:[%s327 + $0x49] sm:$0x1] %v1205
        %1243 = vst [vmem:[%s327 + $0x51] sm:$0x1] %v1213
        %1244 = vst [vmem:[%s327 + $0x59] sm:$0x1] %v1215
        %1245 = vst [vmem:[%s327 + $0x61] sm:$0x1] %v1198
        %1246 = vst [vmem:[%s327 + $0x69] sm:$0x1] %v1212
        %1247 = vst [vmem:[%s327 + $0x71] sm:$0x1] %v1214
        %1248 = vst [vmem:[%s327 + $0x79] sm:$0x1] %v1216
        %s1249 = scalar_lea.vmem %s345, 32
        %v1250 = vld [vmem:[%s1249] sm:$0xf]
        %v1251 = vld [vmem:[%s1249 + $0x4] sm:$0xf]
        %v1252 = vld [vmem:[%s1249 + $0x8] sm:$0xf]
        %v1253 = vld [vmem:[%s1249 + $0xc] sm:$0xf]
        %s1254 = scalar_lea.vmem %s350, 2
        %v1255 = vld [vmem:[%s1254] sm:$0x1]
        %v1257 = vlaneseq
        %v1258 = vshrl.u32 %v1257, 7
        %v1259 = vsub.s32 0, %v1258
        %v1260 = vrot.slane %v1255, %v1259
        %v1266 = vunpack.c.l.b16 %v1250
        %v1267 = vunpack.c.l.b16 %v1251
        %v1268 = vunpack.c.l.b16 %v1252
        %v1269 = vunpack.c.l.b16 %v1253
        %v1270 = vpack.c.b16 %v1267, %v1266
        %v1271 = vpack.c.b16 %v1269, %v1268
        %1274 = vmatprep.subr.bf16.mxu0 0
        %1275 = vmatpush1.bf16.msra.mxu0 %v1270
        %1276 = vmatprep.subr.bf16.mxu0 0
        %1277 = vmatpush1.bf16.msra.mxu0 %v1271
        %1278 = vmatprep.subr.bf16.mxu0 0
        %1279 = vmatpush1.bf16.msra.mxu0 0
        %1280 = vmatprep.subr.bf16.mxu0 0
        %1281 = vmatpush1.bf16.msra.mxu0 0
        %1282 = vmatprep.subr.bf16.mxu0 0
        %1283 = vmatpush1.bf16.msra.mxu0 0
        %1284 = vmatprep.subr.bf16.mxu0 0
        %1285 = vmatpush1.bf16.msra.mxu0 0
        %1286 = vmatprep.subr.bf16.mxu0 0
        %1287 = vmatpush1.bf16.msra.mxu0 0
        %1288 = vmatprep.subr.bf16.mxu0 0
        %1289 = vmatpush1.bf16.msra.mxu0 0
        %1290 = vmatprep.subr.bf16.mxu0 0
        %1291 = vmatpush1.bf16.msra.mxu0 0
        %1292 = vmatprep.subr.bf16.mxu0 0
        %1293 = vmatpush1.bf16.msra.mxu0 0
        %1294 = vmatprep.subr.bf16.mxu0 0
        %1295 = vmatpush1.bf16.msra.mxu0 0
        %1296 = vmatprep.subr.bf16.mxu0 0
        %1297 = vmatpush1.bf16.msra.mxu0 0
        %1298 = vmatprep.subr.bf16.mxu0 0
        %1299 = vmatpush1.bf16.msra.mxu0 0
        %1300 = vmatprep.subr.bf16.mxu0 0
        %1301 = vmatpush1.bf16.msra.mxu0 0
        %1302 = vmatprep.subr.bf16.mxu0 0
        %1303 = vmatpush1.bf16.msra.mxu0 0
        %1304 = vmatprep.subr.bf16.mxu0 0
        %1305 = vmatpush1.bf16.msra.mxu0 0
        %1306 = vmatprep.mubr.bf16.mxu0 0
        %1307 = vmatmul.mubr.bf16.gmra.mrb[0].mxu0 %v577
        %v1308 = vpop.f32.mrb[0].mxu0
        %v1309 = vadd.f32 %v1260, %v1308
        %v1310 = vpop.f32.mrb[0].mxu0
        %v1311 = vpop.f32.mrb[0].mxu0
        %v1312 = vadd.f32 %v1260, %v1311
        %v1313 = vpop.f32.mrb[0].mxu0
        %1314 = vdwg.mxu0
        %v1315 = vsub.f32 %v1309, %v839
        %v1316 = vsub.f32 %v1312, %v840
        %v1319 = vcombine.high %v1315, %v1315
        %v1321 = vunpack.c.l.s4 1966171168
        %v1322 = vunpack.c.0.s8 %v1321
        %v1323 = vlaneseq
        %v1324 = vshrl.u32 %v1323, 7
        %v1325 = vsub.s32 %v1322, %v1324
        %v1326 = vrot.slane %v1315, %v1325
        %v1328 = vunpack.c.l.s4 1966171168
        %v1329 = vunpack.c.0.s8 %v1328
        %v1330 = vlaneseq
        %v1331 = vshrl.u32 %v1330, 7
        %v1332 = vsub.s32 %v1329, %v1331
        %v1333 = vrot.slane %v1319, %v1332
        %v1334 = vcombine.high %v1326, %v1326
        %v1335 = vcombine.high %v1333, %v1333
        %v1337 = vunpack.c.l.s4 1966171168
        %v1338 = vunpack.c.0.s8 %v1337
        %v1339 = vlaneseq
        %v1340 = vshrl.u32 %v1339, 7
        %v1341 = vsub.s32 %v1338, %v1340
        %v1342 = vrot.slane %v1326, %v1341
        %v1344 = vunpack.c.l.s4 1966171168
        %v1345 = vunpack.c.0.s8 %v1344
        %v1346 = vlaneseq
        %v1347 = vshrl.u32 %v1346, 7
        %v1348 = vsub.s32 %v1345, %v1347
        %v1349 = vrot.slane %v1333, %v1348
        %v1351 = vunpack.c.l.s4 1966171168
        %v1352 = vunpack.c.0.s8 %v1351
        %v1353 = vlaneseq
        %v1354 = vshrl.u32 %v1353, 7
        %v1355 = vsub.s32 %v1352, %v1354
        %v1356 = vrot.slane %v1334, %v1355
        %v1358 = vunpack.c.l.s4 1966171168
        %v1359 = vunpack.c.0.s8 %v1358
        %v1360 = vlaneseq
        %v1361 = vshrl.u32 %v1360, 7
        %v1362 = vsub.s32 %v1359, %v1361
        %v1363 = vrot.slane %v1335, %v1362
        %v1364 = vcombine.high %v1342, %v1342
        %v1365 = vcombine.high %v1349, %v1349
        %v1366 = vcombine.high %v1356, %v1356
        %v1367 = vcombine.high %v1363, %v1363
        %v1368 = vcombine.high %v1316, %v1316
        %v1370 = vunpack.c.l.s4 1966171168
        %v1371 = vunpack.c.0.s8 %v1370
        %v1372 = vlaneseq
        %v1373 = vshrl.u32 %v1372, 7
        %v1374 = vsub.s32 %v1371, %v1373
        %v1375 = vrot.slane %v1316, %v1374
        %v1377 = vunpack.c.l.s4 1966171168
        %v1378 = vunpack.c.0.s8 %v1377
        %v1379 = vlaneseq
        %v1380 = vshrl.u32 %v1379, 7
        %v1381 = vsub.s32 %v1378, %v1380
        %v1382 = vrot.slane %v1368, %v1381
        %v1383 = vcombine.high %v1375, %v1375
        %v1384 = vcombine.high %v1382, %v1382
        %v1386 = vunpack.c.l.s4 1966171168
        %v1387 = vunpack.c.0.s8 %v1386
        %v1388 = vlaneseq
        %v1389 = vshrl.u32 %v1388, 7
        %v1390 = vsub.s32 %v1387, %v1389
        %v1391 = vrot.slane %v1375, %v1390
        %v1393 = vunpack.c.l.s4 1966171168
        %v1394 = vunpack.c.0.s8 %v1393
        %v1395 = vlaneseq
        %v1396 = vshrl.u32 %v1395, 7
        %v1397 = vsub.s32 %v1394, %v1396
        %v1398 = vrot.slane %v1382, %v1397
        %v1400 = vunpack.c.l.s4 1966171168
        %v1401 = vunpack.c.0.s8 %v1400
        %v1402 = vlaneseq
        %v1403 = vshrl.u32 %v1402, 7
        %v1404 = vsub.s32 %v1401, %v1403
        %v1405 = vrot.slane %v1383, %v1404
        %v1407 = vunpack.c.l.s4 1966171168
        %v1408 = vunpack.c.0.s8 %v1407
        %v1409 = vlaneseq
        %v1410 = vshrl.u32 %v1409, 7
        %v1411 = vsub.s32 %v1408, %v1410
        %v1412 = vrot.slane %v1384, %v1411
        %v1413 = vcombine.high %v1391, %v1391
        %v1414 = vcombine.high %v1398, %v1398
        %v1415 = vcombine.high %v1405, %v1405
        %v1416 = vcombine.high %v1412, %v1412
        %1433 = vst [vmem:[%s327 + $0x2] sm:$0x1] %v1342
        %1434 = vst [vmem:[%s327 + $0xa] sm:$0x1] %v1356
        %1435 = vst [vmem:[%s327 + $0x12] sm:$0x1] %v1364
        %1436 = vst [vmem:[%s327 + $0x1a] sm:$0x1] %v1366
        %1437 = vst [vmem:[%s327 + $0x22] sm:$0x1] %v1349
        %1438 = vst [vmem:[%s327 + $0x2a] sm:$0x1] %v1363
        %1439 = vst [vmem:[%s327 + $0x32] sm:$0x1] %v1365
        %1440 = vst [vmem:[%s327 + $0x3a] sm:$0x1] %v1367
        %1441 = vst [vmem:[%s327 + $0x42] sm:$0x1] %v1391
        %1442 = vst [vmem:[%s327 + $0x4a] sm:$0x1] %v1405
        %1443 = vst [vmem:[%s327 + $0x52] sm:$0x1] %v1413
        %1444 = vst [vmem:[%s327 + $0x5a] sm:$0x1] %v1415
        %1445 = vst [vmem:[%s327 + $0x62] sm:$0x1] %v1398
        %1446 = vst [vmem:[%s327 + $0x6a] sm:$0x1] %v1412
        %1447 = vst [vmem:[%s327 + $0x72] sm:$0x1] %v1414
        %1448 = vst [vmem:[%s327 + $0x7a] sm:$0x1] %v1416
        %s1449 = scalar_lea.vmem %s345, 48
        %v1450 = vld [vmem:[%s1449] sm:$0xf]
        %v1451 = vld [vmem:[%s1449 + $0x4] sm:$0xf]
        %v1452 = vld [vmem:[%s1449 + $0x8] sm:$0xf]
        %v1453 = vld [vmem:[%s1449 + $0xc] sm:$0xf]
        %s1454 = scalar_lea.vmem %s350, 3
        %v1455 = vld [vmem:[%s1454] sm:$0x1]
        %v1457 = vlaneseq
        %v1458 = vshrl.u32 %v1457, 7
        %v1459 = vsub.s32 0, %v1458
        %v1460 = vrot.slane %v1455, %v1459
        %v1466 = vunpack.c.l.b16 %v1450
        %v1467 = vunpack.c.l.b16 %v1451
        %v1468 = vunpack.c.l.b16 %v1452
        %v1469 = vunpack.c.l.b16 %v1453
        %v1470 = vpack.c.b16 %v1467, %v1466
        %v1471 = vpack.c.b16 %v1469, %v1468
        %1474 = vmatprep.subr.bf16.mxu0 0
        %1475 = vmatpush1.bf16.msra.mxu0 %v1470
        %1476 = vmatprep.subr.bf16.mxu0 0
        %1477 = vmatpush1.bf16.msra.mxu0 %v1471
        %1478 = vmatprep.subr.bf16.mxu0 0
        %1479 = vmatpush1.bf16.msra.mxu0 0
        %1480 = vmatprep.subr.bf16.mxu0 0
        %1481 = vmatpush1.bf16.msra.mxu0 0
        %1482 = vmatprep.subr.bf16.mxu0 0
        %1483 = vmatpush1.bf16.msra.mxu0 0
        %1484 = vmatprep.subr.bf16.mxu0 0
        %1485 = vmatpush1.bf16.msra.mxu0 0
        %1486 = vmatprep.subr.bf16.mxu0 0
        %1487 = vmatpush1.bf16.msra.mxu0 0
        %1488 = vmatprep.subr.bf16.mxu0 0
        %1489 = vmatpush1.bf16.msra.mxu0 0
        %1490 = vmatprep.subr.bf16.mxu0 0
        %1491 = vmatpush1.bf16.msra.mxu0 0
        %1492 = vmatprep.subr.bf16.mxu0 0
        %1493 = vmatpush1.bf16.msra.mxu0 0
        %1494 = vmatprep.subr.bf16.mxu0 0
        %1495 = vmatpush1.bf16.msra.mxu0 0
        %1496 = vmatprep.subr.bf16.mxu0 0
        %1497 = vmatpush1.bf16.msra.mxu0 0
        %1498 = vmatprep.subr.bf16.mxu0 0
        %1499 = vmatpush1.bf16.msra.mxu0 0
        %1500 = vmatprep.subr.bf16.mxu0 0
        %1501 = vmatpush1.bf16.msra.mxu0 0
        %1502 = vmatprep.subr.bf16.mxu0 0
        %1503 = vmatpush1.bf16.msra.mxu0 0
        %1504 = vmatprep.subr.bf16.mxu0 0
        %1505 = vmatpush1.bf16.msra.mxu0 0
        %1506 = vmatprep.mubr.bf16.mxu0 0
        %1507 = vmatmul.mubr.bf16.gmra.mrb[0].mxu0 %v580
        %v1508 = vpop.f32.mrb[0].mxu0
        %v1509 = vadd.f32 %v1460, %v1508
        %v1510 = vpop.f32.mrb[0].mxu0
        %v1511 = vpop.f32.mrb[0].mxu0
        %v1512 = vadd.f32 %v1460, %v1511
        %v1513 = vpop.f32.mrb[0].mxu0
        %1514 = vdwg.mxu0
        %v1515 = vsub.f32 %v1509, %v841
        %v1516 = vsub.f32 %v1512, %v842
        %v1519 = vcombine.high %v1515, %v1515
        %v1521 = vunpack.c.l.s4 1966171168
        %v1522 = vunpack.c.0.s8 %v1521
        %v1523 = vlaneseq
        %v1524 = vshrl.u32 %v1523, 7
        %v1525 = vsub.s32 %v1522, %v1524
        %v1526 = vrot.slane %v1515, %v1525
        %v1528 = vunpack.c.l.s4 1966171168
        %v1529 = vunpack.c.0.s8 %v1528
        %v1530 = vlaneseq
        %v1531 = vshrl.u32 %v1530, 7
        %v1532 = vsub.s32 %v1529, %v1531
        %v1533 = vrot.slane %v1519, %v1532
        %v1534 = vcombine.high %v1526, %v1526
        %v1535 = vcombine.high %v1533, %v1533
        %v1537 = vunpack.c.l.s4 1966171168
        %v1538 = vunpack.c.0.s8 %v1537
        %v1539 = vlaneseq
        %v1540 = vshrl.u32 %v1539, 7
        %v1541 = vsub.s32 %v1538, %v1540
        %v1542 = vrot.slane %v1526, %v1541
        %v1544 = vunpack.c.l.s4 1966171168
        %v1545 = vunpack.c.0.s8 %v1544
        %v1546 = vlaneseq
        %v1547 = vshrl.u32 %v1546, 7
        %v1548 = vsub.s32 %v1545, %v1547
        %v1549 = vrot.slane %v1533, %v1548
        %v1551 = vunpack.c.l.s4 1966171168
        %v1552 = vunpack.c.0.s8 %v1551
        %v1553 = vlaneseq
        %v1554 = vshrl.u32 %v1553, 7
        %v1555 = vsub.s32 %v1552, %v1554
        %v1556 = vrot.slane %v1534, %v1555
        %v1558 = vunpack.c.l.s4 1966171168
        %v1559 = vunpack.c.0.s8 %v1558
        %v1560 = vlaneseq
        %v1561 = vshrl.u32 %v1560, 7
        %v1562 = vsub.s32 %v1559, %v1561
        %v1563 = vrot.slane %v1535, %v1562
        %v1564 = vcombine.high %v1542, %v1542
        %v1565 = vcombine.high %v1549, %v1549
        %v1566 = vcombine.high %v1556, %v1556
        %v1567 = vcombine.high %v1563, %v1563
        %v1568 = vcombine.high %v1516, %v1516
        %v1570 = vunpack.c.l.s4 1966171168
        %v1571 = vunpack.c.0.s8 %v1570
        %v1572 = vlaneseq
        %v1573 = vshrl.u32 %v1572, 7
        %v1574 = vsub.s32 %v1571, %v1573
        %v1575 = vrot.slane %v1516, %v1574
        %v1577 = vunpack.c.l.s4 1966171168
        %v1578 = vunpack.c.0.s8 %v1577
        %v1579 = vlaneseq
        %v1580 = vshrl.u32 %v1579, 7
        %v1581 = vsub.s32 %v1578, %v1580
        %v1582 = vrot.slane %v1568, %v1581
        %v1583 = vcombine.high %v1575, %v1575
        %v1584 = vcombine.high %v1582, %v1582
        %v1586 = vunpack.c.l.s4 1966171168
        %v1587 = vunpack.c.0.s8 %v1586
        %v1588 = vlaneseq
        %v1589 = vshrl.u32 %v1588, 7
        %v1590 = vsub.s32 %v1587, %v1589
        %v1591 = vrot.slane %v1575, %v1590
        %v1593 = vunpack.c.l.s4 1966171168
        %v1594 = vunpack.c.0.s8 %v1593
        %v1595 = vlaneseq
        %v1596 = vshrl.u32 %v1595, 7
        %v1597 = vsub.s32 %v1594, %v1596
        %v1598 = vrot.slane %v1582, %v1597
        %v1600 = vunpack.c.l.s4 1966171168
        %v1601 = vunpack.c.0.s8 %v1600
        %v1602 = vlaneseq
        %v1603 = vshrl.u32 %v1602, 7
        %v1604 = vsub.s32 %v1601, %v1603
        %v1605 = vrot.slane %v1583, %v1604
        %v1607 = vunpack.c.l.s4 1966171168
        %v1608 = vunpack.c.0.s8 %v1607
        %v1609 = vlaneseq
        %v1610 = vshrl.u32 %v1609, 7
        %v1611 = vsub.s32 %v1608, %v1610
        %v1612 = vrot.slane %v1584, %v1611
        %v1613 = vcombine.high %v1591, %v1591
        %v1614 = vcombine.high %v1598, %v1598
        %v1615 = vcombine.high %v1605, %v1605
        %v1616 = vcombine.high %v1612, %v1612
        %1633 = vst [vmem:[%s327 + $0x3] sm:$0x1] %v1542
        %1634 = vst [vmem:[%s327 + $0xb] sm:$0x1] %v1556
        %1635 = vst [vmem:[%s327 + $0x13] sm:$0x1] %v1564
        %1636 = vst [vmem:[%s327 + $0x1b] sm:$0x1] %v1566
        %1637 = vst [vmem:[%s327 + $0x23] sm:$0x1] %v1549
        %1638 = vst [vmem:[%s327 + $0x2b] sm:$0x1] %v1563
        %1639 = vst [vmem:[%s327 + $0x33] sm:$0x1] %v1565
        %1640 = vst [vmem:[%s327 + $0x3b] sm:$0x1] %v1567
        %1641 = vst [vmem:[%s327 + $0x43] sm:$0x1] %v1591
        %1642 = vst [vmem:[%s327 + $0x4b] sm:$0x1] %v1605
        %1643 = vst [vmem:[%s327 + $0x53] sm:$0x1] %v1613
        %1644 = vst [vmem:[%s327 + $0x5b] sm:$0x1] %v1615
        %1645 = vst [vmem:[%s327 + $0x63] sm:$0x1] %v1598
        %1646 = vst [vmem:[%s327 + $0x6b] sm:$0x1] %v1612
        %1647 = vst [vmem:[%s327 + $0x73] sm:$0x1] %v1614
        %1648 = vst [vmem:[%s327 + $0x7b] sm:$0x1] %v1616
        %s1649 = scalar_lea.vmem %s345, 64
        %v1650 = vld [vmem:[%s1649] sm:$0xf]
        %v1651 = vld [vmem:[%s1649 + $0x4] sm:$0xf]
        %v1652 = vld [vmem:[%s1649 + $0x8] sm:$0xf]
        %v1653 = vld [vmem:[%s1649 + $0xc] sm:$0xf]
        %s1654 = scalar_lea.vmem %s350, 4
        %v1655 = vld [vmem:[%s1654] sm:$0x1]
        %v1657 = vlaneseq
        %v1658 = vshrl.u32 %v1657, 7
        %v1659 = vsub.s32 0, %v1658
        %v1660 = vrot.slane %v1655, %v1659
        %v1666 = vunpack.c.l.b16 %v1650
        %v1667 = vunpack.c.l.b16 %v1651
        %v1668 = vunpack.c.l.b16 %v1652
        %v1669 = vunpack.c.l.b16 %v1653
        %v1670 = vpack.c.b16 %v1667, %v1666
        %v1671 = vpack.c.b16 %v1669, %v1668
        %1674 = vmatprep.subr.bf16.mxu0 0
        %1675 = vmatpush1.bf16.msra.mxu0 %v1670
        %1676 = vmatprep.subr.bf16.mxu0 0
        %1677 = vmatpush1.bf16.msra.mxu0 %v1671
        %1678 = vmatprep.subr.bf16.mxu0 0
        %1679 = vmatpush1.bf16.msra.mxu0 0
        %1680 = vmatprep.subr.bf16.mxu0 0
        %1681 = vmatpush1.bf16.msra.mxu0 0
        %1682 = vmatprep.subr.bf16.mxu0 0
        %1683 = vmatpush1.bf16.msra.mxu0 0
        %1684 = vmatprep.subr.bf16.mxu0 0
        %1685 = vmatpush1.bf16.msra.mxu0 0
        %1686 = vmatprep.subr.bf16.mxu0 0
        %1687 = vmatpush1.bf16.msra.mxu0 0
        %1688 = vmatprep.subr.bf16.mxu0 0
        %1689 = vmatpush1.bf16.msra.mxu0 0
        %1690 = vmatprep.subr.bf16.mxu0 0
        %1691 = vmatpush1.bf16.msra.mxu0 0
        %1692 = vmatprep.subr.bf16.mxu0 0
        %1693 = vmatpush1.bf16.msra.mxu0 0
        %1694 = vmatprep.subr.bf16.mxu0 0
        %1695 = vmatpush1.bf16.msra.mxu0 0
        %1696 = vmatprep.subr.bf16.mxu0 0
        %1697 = vmatpush1.bf16.msra.mxu0 0
        %1698 = vmatprep.subr.bf16.mxu0 0
        %1699 = vmatpush1.bf16.msra.mxu0 0
        %1700 = vmatprep.subr.bf16.mxu0 0
        %1701 = vmatpush1.bf16.msra.mxu0 0
        %1702 = vmatprep.subr.bf16.mxu0 0
        %1703 = vmatpush1.bf16.msra.mxu0 0
        %1704 = vmatprep.subr.bf16.mxu0 0
        %1705 = vmatpush1.bf16.msra.mxu0 0
        %1706 = vmatprep.mubr.bf16.mxu0 0
        %1707 = vmatmul.mubr.bf16.gmra.mrb[0].mxu0 %v583
        %v1708 = vpop.f32.mrb[0].mxu0
        %v1709 = vadd.f32 %v1660, %v1708
        %v1710 = vpop.f32.mrb[0].mxu0
        %v1711 = vpop.f32.mrb[0].mxu0
        %v1712 = vadd.f32 %v1660, %v1711
        %v1713 = vpop.f32.mrb[0].mxu0
        %1714 = vdwg.mxu0
        %v1715 = vsub.f32 %v1709, %v843
        %v1716 = vsub.f32 %v1712, %v844
        %v1719 = vcombine.high %v1715, %v1715
        %v1721 = vunpack.c.l.s4 1966171168
        %v1722 = vunpack.c.0.s8 %v1721
        %v1723 = vlaneseq
        %v1724 = vshrl.u32 %v1723, 7
        %v1725 = vsub.s32 %v1722, %v1724
        %v1726 = vrot.slane %v1715, %v1725
        %v1728 = vunpack.c.l.s4 1966171168
        %v1729 = vunpack.c.0.s8 %v1728
        %v1730 = vlaneseq
        %v1731 = vshrl.u32 %v1730, 7
        %v1732 = vsub.s32 %v1729, %v1731
        %v1733 = vrot.slane %v1719, %v1732
        %v1734 = vcombine.high %v1726, %v1726
        %v1735 = vcombine.high %v1733, %v1733
        %v1737 = vunpack.c.l.s4 1966171168
        %v1738 = vunpack.c.0.s8 %v1737
        %v1739 = vlaneseq
        %v1740 = vshrl.u32 %v1739, 7
        %v1741 = vsub.s32 %v1738, %v1740
        %v1742 = vrot.slane %v1726, %v1741
        %v1744 = vunpack.c.l.s4 1966171168
        %v1745 = vunpack.c.0.s8 %v1744
        %v1746 = vlaneseq
        %v1747 = vshrl.u32 %v1746, 7
        %v1748 = vsub.s32 %v1745, %v1747
        %v1749 = vrot.slane %v1733, %v1748
        %v1751 = vunpack.c.l.s4 1966171168
        %v1752 = vunpack.c.0.s8 %v1751
        %v1753 = vlaneseq
        %v1754 = vshrl.u32 %v1753, 7
        %v1755 = vsub.s32 %v1752, %v1754
        %v1756 = vrot.slane %v1734, %v1755
        %v1758 = vunpack.c.l.s4 1966171168
        %v1759 = vunpack.c.0.s8 %v1758
        %v1760 = vlaneseq
        %v1761 = vshrl.u32 %v1760, 7
        %v1762 = vsub.s32 %v1759, %v1761
        %v1763 = vrot.slane %v1735, %v1762
        %v1764 = vcombine.high %v1742, %v1742
        %v1765 = vcombine.high %v1749, %v1749
        %v1766 = vcombine.high %v1756, %v1756
        %v1767 = vcombine.high %v1763, %v1763
        %v1768 = vcombine.high %v1716, %v1716
        %v1770 = vunpack.c.l.s4 1966171168
        %v1771 = vunpack.c.0.s8 %v1770
        %v1772 = vlaneseq
        %v1773 = vshrl.u32 %v1772, 7
        %v1774 = vsub.s32 %v1771, %v1773
        %v1775 = vrot.slane %v1716, %v1774
        %v1777 = vunpack.c.l.s4 1966171168
        %v1778 = vunpack.c.0.s8 %v1777
        %v1779 = vlaneseq
        %v1780 = vshrl.u32 %v1779, 7
        %v1781 = vsub.s32 %v1778, %v1780
        %v1782 = vrot.slane %v1768, %v1781
        %v1783 = vcombine.high %v1775, %v1775
        %v1784 = vcombine.high %v1782, %v1782
        %v1786 = vunpack.c.l.s4 1966171168
        %v1787 = vunpack.c.0.s8 %v1786
        %v1788 = vlaneseq
        %v1789 = vshrl.u32 %v1788, 7
        %v1790 = vsub.s32 %v1787, %v1789
        %v1791 = vrot.slane %v1775, %v1790
        %v1793 = vunpack.c.l.s4 1966171168
        %v1794 = vunpack.c.0.s8 %v1793
        %v1795 = vlaneseq
        %v1796 = vshrl.u32 %v1795, 7
        %v1797 = vsub.s32 %v1794, %v1796
        %v1798 = vrot.slane %v1782, %v1797
        %v1800 = vunpack.c.l.s4 1966171168
        %v1801 = vunpack.c.0.s8 %v1800
        %v1802 = vlaneseq
        %v1803 = vshrl.u32 %v1802, 7
        %v1804 = vsub.s32 %v1801, %v1803
        %v1805 = vrot.slane %v1783, %v1804
        %v1807 = vunpack.c.l.s4 1966171168
        %v1808 = vunpack.c.0.s8 %v1807
        %v1809 = vlaneseq
        %v1810 = vshrl.u32 %v1809, 7
        %v1811 = vsub.s32 %v1808, %v1810
        %v1812 = vrot.slane %v1784, %v1811
        %v1813 = vcombine.high %v1791, %v1791
        %v1814 = vcombine.high %v1798, %v1798
        %v1815 = vcombine.high %v1805, %v1805
        %v1816 = vcombine.high %v1812, %v1812
        %1833 = vst [vmem:[%s327 + $0x4] sm:$0x1] %v1742
        %1834 = vst [vmem:[%s327 + $0xc] sm:$0x1] %v1756
        %1835 = vst [vmem:[%s327 + $0x14] sm:$0x1] %v1764
        %1836 = vst [vmem:[%s327 + $0x1c] sm:$0x1] %v1766
        %1837 = vst [vmem:[%s327 + $0x24] sm:$0x1] %v1749
        %1838 = vst [vmem:[%s327 + $0x2c] sm:$0x1] %v1763
        %1839 = vst [vmem:[%s327 + $0x34] sm:$0x1] %v1765
        %1840 = vst [vmem:[%s327 + $0x3c] sm:$0x1] %v1767
        %1841 = vst [vmem:[%s327 + $0x44] sm:$0x1] %v1791
        %1842 = vst [vmem:[%s327 + $0x4c] sm:$0x1] %v1805
        %1843 = vst [vmem:[%s327 + $0x54] sm:$0x1] %v1813
        %1844 = vst [vmem:[%s327 + $0x5c] sm:$0x1] %v1815
        %1845 = vst [vmem:[%s327 + $0x64] sm:$0x1] %v1798
        %1846 = vst [vmem:[%s327 + $0x6c] sm:$0x1] %v1812
        %1847 = vst [vmem:[%s327 + $0x74] sm:$0x1] %v1814
        %1848 = vst [vmem:[%s327 + $0x7c] sm:$0x1] %v1816
        %s1849 = scalar_lea.vmem %s345, 80
        %v1850 = vld [vmem:[%s1849] sm:$0xf]
        %v1851 = vld [vmem:[%s1849 + $0x4] sm:$0xf]
        %v1852 = vld [vmem:[%s1849 + $0x8] sm:$0xf]
        %v1853 = vld [vmem:[%s1849 + $0xc] sm:$0xf]
        %s1854 = scalar_lea.vmem %s350, 5
        %v1855 = vld [vmem:[%s1854] sm:$0x1]
        %v1857 = vlaneseq
        %v1858 = vshrl.u32 %v1857, 7
        %v1859 = vsub.s32 0, %v1858
        %v1860 = vrot.slane %v1855, %v1859
        %v1866 = vunpack.c.l.b16 %v1850
        %v1867 = vunpack.c.l.b16 %v1851
        %v1868 = vunpack.c.l.b16 %v1852
        %v1869 = vunpack.c.l.b16 %v1853
        %v1870 = vpack.c.b16 %v1867, %v1866
        %v1871 = vpack.c.b16 %v1869, %v1868
        %1874 = vmatprep.subr.bf16.mxu0 0
        %1875 = vmatpush1.bf16.msra.mxu0 %v1870
        %1876 = vmatprep.subr.bf16.mxu0 0
        %1877 = vmatpush1.bf16.msra.mxu0 %v1871
        %1878 = vmatprep.subr.bf16.mxu0 0
        %1879 = vmatpush1.bf16.msra.mxu0 0
        %1880 = vmatprep.subr.bf16.mxu0 0
        %1881 = vmatpush1.bf16.msra.mxu0 0
        %1882 = vmatprep.subr.bf16.mxu0 0
        %1883 = vmatpush1.bf16.msra.mxu0 0
        %1884 = vmatprep.subr.bf16.mxu0 0
        %1885 = vmatpush1.bf16.msra.mxu0 0
        %1886 = vmatprep.subr.bf16.mxu0 0
        %1887 = vmatpush1.bf16.msra.mxu0 0
        %1888 = vmatprep.subr.bf16.mxu0 0
        %1889 = vmatpush1.bf16.msra.mxu0 0
        %1890 = vmatprep.subr.bf16.mxu0 0
        %1891 = vmatpush1.bf16.msra.mxu0 0
        %1892 = vmatprep.subr.bf16.mxu0 0
        %1893 = vmatpush1.bf16.msra.mxu0 0
        %1894 = vmatprep.subr.bf16.mxu0 0
        %1895 = vmatpush1.bf16.msra.mxu0 0
        %1896 = vmatprep.subr.bf16.mxu0 0
        %1897 = vmatpush1.bf16.msra.mxu0 0
        %1898 = vmatprep.subr.bf16.mxu0 0
        %1899 = vmatpush1.bf16.msra.mxu0 0
        %1900 = vmatprep.subr.bf16.mxu0 0
        %1901 = vmatpush1.bf16.msra.mxu0 0
        %1902 = vmatprep.subr.bf16.mxu0 0
        %1903 = vmatpush1.bf16.msra.mxu0 0
        %1904 = vmatprep.subr.bf16.mxu0 0
        %1905 = vmatpush1.bf16.msra.mxu0 0
        %1906 = vmatprep.mubr.bf16.mxu0 0
        %1907 = vmatmul.mubr.bf16.gmra.mrb[0].mxu0 %v586
        %v1908 = vpop.f32.mrb[0].mxu0
        %v1909 = vadd.f32 %v1860, %v1908
        %v1910 = vpop.f32.mrb[0].mxu0
        %v1911 = vpop.f32.mrb[0].mxu0
        %v1912 = vadd.f32 %v1860, %v1911
        %v1913 = vpop.f32.mrb[0].mxu0
        %1914 = vdwg.mxu0
        %v1915 = vsub.f32 %v1909, %v845
        %v1916 = vsub.f32 %v1912, %v846
        %v1919 = vcombine.high %v1915, %v1915
        %v1921 = vunpack.c.l.s4 1966171168
        %v1922 = vunpack.c.0.s8 %v1921
        %v1923 = vlaneseq
        %v1924 = vshrl.u32 %v1923, 7
        %v1925 = vsub.s32 %v1922, %v1924
        %v1926 = vrot.slane %v1915, %v1925
        %v1928 = vunpack.c.l.s4 1966171168
        %v1929 = vunpack.c.0.s8 %v1928
        %v1930 = vlaneseq
        %v1931 = vshrl.u32 %v1930, 7
        %v1932 = vsub.s32 %v1929, %v1931
        %v1933 = vrot.slane %v1919, %v1932
        %v1934 = vcombine.high %v1926, %v1926
        %v1935 = vcombine.high %v1933, %v1933
        %v1937 = vunpack.c.l.s4 1966171168
        %v1938 = vunpack.c.0.s8 %v1937
        %v1939 = vlaneseq
        %v1940 = vshrl.u32 %v1939, 7
        %v1941 = vsub.s32 %v1938, %v1940
        %v1942 = vrot.slane %v1926, %v1941
        %v1944 = vunpack.c.l.s4 1966171168
        %v1945 = vunpack.c.0.s8 %v1944
        %v1946 = vlaneseq
        %v1947 = vshrl.u32 %v1946, 7
        %v1948 = vsub.s32 %v1945, %v1947
        %v1949 = vrot.slane %v1933, %v1948
        %v1951 = vunpack.c.l.s4 1966171168
        %v1952 = vunpack.c.0.s8 %v1951
        %v1953 = vlaneseq
        %v1954 = vshrl.u32 %v1953, 7
        %v1955 = vsub.s32 %v1952, %v1954
        %v1956 = vrot.slane %v1934, %v1955
        %v1958 = vunpack.c.l.s4 1966171168
        %v1959 = vunpack.c.0.s8 %v1958
        %v1960 = vlaneseq
        %v1961 = vshrl.u32 %v1960, 7
        %v1962 = vsub.s32 %v1959, %v1961
        %v1963 = vrot.slane %v1935, %v1962
        %v1964 = vcombine.high %v1942, %v1942
        %v1965 = vcombine.high %v1949, %v1949
        %v1966 = vcombine.high %v1956, %v1956
        %v1967 = vcombine.high %v1963, %v1963
        %v1968 = vcombine.high %v1916, %v1916
        %v1970 = vunpack.c.l.s4 1966171168
        %v1971 = vunpack.c.0.s8 %v1970
        %v1972 = vlaneseq
        %v1973 = vshrl.u32 %v1972, 7
        %v1974 = vsub.s32 %v1971, %v1973
        %v1975 = vrot.slane %v1916, %v1974
        %v1977 = vunpack.c.l.s4 1966171168
        %v1978 = vunpack.c.0.s8 %v1977
        %v1979 = vlaneseq
        %v1980 = vshrl.u32 %v1979, 7
        %v1981 = vsub.s32 %v1978, %v1980
        %v1982 = vrot.slane %v1968, %v1981
        %v1983 = vcombine.high %v1975, %v1975
        %v1984 = vcombine.high %v1982, %v1982
        %v1986 = vunpack.c.l.s4 1966171168
        %v1987 = vunpack.c.0.s8 %v1986
        %v1988 = vlaneseq
        %v1989 = vshrl.u32 %v1988, 7
        %v1990 = vsub.s32 %v1987, %v1989
        %v1991 = vrot.slane %v1975, %v1990
        %v1993 = vunpack.c.l.s4 1966171168
        %v1994 = vunpack.c.0.s8 %v1993
        %v1995 = vlaneseq
        %v1996 = vshrl.u32 %v1995, 7
        %v1997 = vsub.s32 %v1994, %v1996
        %v1998 = vrot.slane %v1982, %v1997
        %v2000 = vunpack.c.l.s4 1966171168
        %v2001 = vunpack.c.0.s8 %v2000
        %v2002 = vlaneseq
        %v2003 = vshrl.u32 %v2002, 7
        %v2004 = vsub.s32 %v2001, %v2003
        %v2005 = vrot.slane %v1983, %v2004
        %v2007 = vunpack.c.l.s4 1966171168
        %v2008 = vunpack.c.0.s8 %v2007
        %v2009 = vlaneseq
        %v2010 = vshrl.u32 %v2009, 7
        %v2011 = vsub.s32 %v2008, %v2010
        %v2012 = vrot.slane %v1984, %v2011
        %v2013 = vcombine.high %v1991, %v1991
        %v2014 = vcombine.high %v1998, %v1998
        %v2015 = vcombine.high %v2005, %v2005
        %v2016 = vcombine.high %v2012, %v2012
        %2033 = vst [vmem:[%s327 + $0x5] sm:$0x1] %v1942
        %2034 = vst [vmem:[%s327 + $0xd] sm:$0x1] %v1956
        %2035 = vst [vmem:[%s327 + $0x15] sm:$0x1] %v1964
        %2036 = vst [vmem:[%s327 + $0x1d] sm:$0x1] %v1966
        %2037 = vst [vmem:[%s327 + $0x25] sm:$0x1] %v1949
        %2038 = vst [vmem:[%s327 + $0x2d] sm:$0x1] %v1963
        %2039 = vst [vmem:[%s327 + $0x35] sm:$0x1] %v1965
        %2040 = vst [vmem:[%s327 + $0x3d] sm:$0x1] %v1967
        %2041 = vst [vmem:[%s327 + $0x45] sm:$0x1] %v1991
        %2042 = vst [vmem:[%s327 + $0x4d] sm:$0x1] %v2005
        %2043 = vst [vmem:[%s327 + $0x55] sm:$0x1] %v2013
        %2044 = vst [vmem:[%s327 + $0x5d] sm:$0x1] %v2015
        %2045 = vst [vmem:[%s327 + $0x65] sm:$0x1] %v1998
        %2046 = vst [vmem:[%s327 + $0x6d] sm:$0x1] %v2012
        %2047 = vst [vmem:[%s327 + $0x75] sm:$0x1] %v2014
        %2048 = vst [vmem:[%s327 + $0x7d] sm:$0x1] %v2016
        %s2049 = scalar_lea.vmem %s345, 96
        %v2050 = vld [vmem:[%s2049] sm:$0xf]
        %v2051 = vld [vmem:[%s2049 + $0x4] sm:$0xf]
        %v2052 = vld [vmem:[%s2049 + $0x8] sm:$0xf]
        %v2053 = vld [vmem:[%s2049 + $0xc] sm:$0xf]
        %s2054 = scalar_lea.vmem %s350, 6
        %v2055 = vld [vmem:[%s2054] sm:$0x1]
        %v2057 = vlaneseq
        %v2058 = vshrl.u32 %v2057, 7
        %v2059 = vsub.s32 0, %v2058
        %v2060 = vrot.slane %v2055, %v2059
        %v2066 = vunpack.c.l.b16 %v2050
        %v2067 = vunpack.c.l.b16 %v2051
        %v2068 = vunpack.c.l.b16 %v2052
        %v2069 = vunpack.c.l.b16 %v2053
        %v2070 = vpack.c.b16 %v2067, %v2066
        %v2071 = vpack.c.b16 %v2069, %v2068
        %2074 = vmatprep.subr.bf16.mxu0 0
        %2075 = vmatpush1.bf16.msra.mxu0 %v2070
        %2076 = vmatprep.subr.bf16.mxu0 0
        %2077 = vmatpush1.bf16.msra.mxu0 %v2071
        %2078 = vmatprep.subr.bf16.mxu0 0
        %2079 = vmatpush1.bf16.msra.mxu0 0
        %2080 = vmatprep.subr.bf16.mxu0 0
        %2081 = vmatpush1.bf16.msra.mxu0 0
        %2082 = vmatprep.subr.bf16.mxu0 0
        %2083 = vmatpush1.bf16.msra.mxu0 0
        %2084 = vmatprep.subr.bf16.mxu0 0
        %2085 = vmatpush1.bf16.msra.mxu0 0
        %2086 = vmatprep.subr.bf16.mxu0 0
        %2087 = vmatpush1.bf16.msra.mxu0 0
        %2088 = vmatprep.subr.bf16.mxu0 0
        %2089 = vmatpush1.bf16.msra.mxu0 0
        %2090 = vmatprep.subr.bf16.mxu0 0
        %2091 = vmatpush1.bf16.msra.mxu0 0
        %2092 = vmatprep.subr.bf16.mxu0 0
        %2093 = vmatpush1.bf16.msra.mxu0 0
        %2094 = vmatprep.subr.bf16.mxu0 0
        %2095 = vmatpush1.bf16.msra.mxu0 0
        %2096 = vmatprep.subr.bf16.mxu0 0
        %2097 = vmatpush1.bf16.msra.mxu0 0
        %2098 = vmatprep.subr.bf16.mxu0 0
        %2099 = vmatpush1.bf16.msra.mxu0 0
        %2100 = vmatprep.subr.bf16.mxu0 0
        %2101 = vmatpush1.bf16.msra.mxu0 0
        %2102 = vmatprep.subr.bf16.mxu0 0
        %2103 = vmatpush1.bf16.msra.mxu0 0
        %2104 = vmatprep.subr.bf16.mxu0 0
        %2105 = vmatpush1.bf16.msra.mxu0 0
        %2106 = vmatprep.mubr.bf16.mxu0 0
        %2107 = vmatmul.mubr.bf16.gmra.mrb[0].mxu0 %v589
        %v2108 = vpop.f32.mrb[0].mxu0
        %v2109 = vadd.f32 %v2060, %v2108
        %v2110 = vpop.f32.mrb[0].mxu0
        %v2111 = vpop.f32.mrb[0].mxu0
        %v2112 = vadd.f32 %v2060, %v2111
        %v2113 = vpop.f32.mrb[0].mxu0
        %2114 = vdwg.mxu0
        %v2115 = vsub.f32 %v2109, %v847
        %v2116 = vsub.f32 %v2112, %v848
        %v2119 = vcombine.high %v2115, %v2115
        %v2121 = vunpack.c.l.s4 1966171168
        %v2122 = vunpack.c.0.s8 %v2121
        %v2123 = vlaneseq
        %v2124 = vshrl.u32 %v2123, 7
        %v2125 = vsub.s32 %v2122, %v2124
        %v2126 = vrot.slane %v2115, %v2125
        %v2128 = vunpack.c.l.s4 1966171168
        %v2129 = vunpack.c.0.s8 %v2128
        %v2130 = vlaneseq
        %v2131 = vshrl.u32 %v2130, 7
        %v2132 = vsub.s32 %v2129, %v2131
        %v2133 = vrot.slane %v2119, %v2132
        %v2134 = vcombine.high %v2126, %v2126
        %v2135 = vcombine.high %v2133, %v2133
        %v2137 = vunpack.c.l.s4 1966171168
        %v2138 = vunpack.c.0.s8 %v2137
        %v2139 = vlaneseq
        %v2140 = vshrl.u32 %v2139, 7
        %v2141 = vsub.s32 %v2138, %v2140
        %v2142 = vrot.slane %v2126, %v2141
        %v2144 = vunpack.c.l.s4 1966171168
        %v2145 = vunpack.c.0.s8 %v2144
        %v2146 = vlaneseq
        %v2147 = vshrl.u32 %v2146, 7
        %v2148 = vsub.s32 %v2145, %v2147
        %v2149 = vrot.slane %v2133, %v2148
        %v2151 = vunpack.c.l.s4 1966171168
        %v2152 = vunpack.c.0.s8 %v2151
        %v2153 = vlaneseq
        %v2154 = vshrl.u32 %v2153, 7
        %v2155 = vsub.s32 %v2152, %v2154
        %v2156 = vrot.slane %v2134, %v2155
        %v2158 = vunpack.c.l.s4 1966171168
        %v2159 = vunpack.c.0.s8 %v2158
        %v2160 = vlaneseq
        %v2161 = vshrl.u32 %v2160, 7
        %v2162 = vsub.s32 %v2159, %v2161
        %v2163 = vrot.slane %v2135, %v2162
        %v2164 = vcombine.high %v2142, %v2142
        %v2165 = vcombine.high %v2149, %v2149
        %v2166 = vcombine.high %v2156, %v2156
        %v2167 = vcombine.high %v2163, %v2163
        %v2168 = vcombine.high %v2116, %v2116
        %v2170 = vunpack.c.l.s4 1966171168
        %v2171 = vunpack.c.0.s8 %v2170
        %v2172 = vlaneseq
        %v2173 = vshrl.u32 %v2172, 7
        %v2174 = vsub.s32 %v2171, %v2173
        %v2175 = vrot.slane %v2116, %v2174
        %v2177 = vunpack.c.l.s4 1966171168
        %v2178 = vunpack.c.0.s8 %v2177
        %v2179 = vlaneseq
        %v2180 = vshrl.u32 %v2179, 7
        %v2181 = vsub.s32 %v2178, %v2180
        %v2182 = vrot.slane %v2168, %v2181
        %v2183 = vcombine.high %v2175, %v2175
        %v2184 = vcombine.high %v2182, %v2182
        %v2186 = vunpack.c.l.s4 1966171168
        %v2187 = vunpack.c.0.s8 %v2186
        %v2188 = vlaneseq
        %v2189 = vshrl.u32 %v2188, 7
        %v2190 = vsub.s32 %v2187, %v2189
        %v2191 = vrot.slane %v2175, %v2190
        %v2193 = vunpack.c.l.s4 1966171168
        %v2194 = vunpack.c.0.s8 %v2193
        %v2195 = vlaneseq
        %v2196 = vshrl.u32 %v2195, 7
        %v2197 = vsub.s32 %v2194, %v2196
        %v2198 = vrot.slane %v2182, %v2197
        %v2200 = vunpack.c.l.s4 1966171168
        %v2201 = vunpack.c.0.s8 %v2200
        %v2202 = vlaneseq
        %v2203 = vshrl.u32 %v2202, 7
        %v2204 = vsub.s32 %v2201, %v2203
        %v2205 = vrot.slane %v2183, %v2204
        %v2207 = vunpack.c.l.s4 1966171168
        %v2208 = vunpack.c.0.s8 %v2207
        %v2209 = vlaneseq
        %v2210 = vshrl.u32 %v2209, 7
        %v2211 = vsub.s32 %v2208, %v2210
        %v2212 = vrot.slane %v2184, %v2211
        %v2213 = vcombine.high %v2191, %v2191
        %v2214 = vcombine.high %v2198, %v2198
        %v2215 = vcombine.high %v2205, %v2205
        %v2216 = vcombine.high %v2212, %v2212
        %2233 = vst [vmem:[%s327 + $0x6] sm:$0x1] %v2142
        %2234 = vst [vmem:[%s327 + $0xe] sm:$0x1] %v2156
        %2235 = vst [vmem:[%s327 + $0x16] sm:$0x1] %v2164
        %2236 = vst [vmem:[%s327 + $0x1e] sm:$0x1] %v2166
        %2237 = vst [vmem:[%s327 + $0x26] sm:$0x1] %v2149
        %2238 = vst [vmem:[%s327 + $0x2e] sm:$0x1] %v2163
        %2239 = vst [vmem:[%s327 + $0x36] sm:$0x1] %v2165
        %2240 = vst [vmem:[%s327 + $0x3e] sm:$0x1] %v2167
        %2241 = vst [vmem:[%s327 + $0x46] sm:$0x1] %v2191
        %2242 = vst [vmem:[%s327 + $0x4e] sm:$0x1] %v2205
        %2243 = vst [vmem:[%s327 + $0x56] sm:$0x1] %v2213
        %2244 = vst [vmem:[%s327 + $0x5e] sm:$0x1] %v2215
        %2245 = vst [vmem:[%s327 + $0x66] sm:$0x1] %v2198
        %2246 = vst [vmem:[%s327 + $0x6e] sm:$0x1] %v2212
        %2247 = vst [vmem:[%s327 + $0x76] sm:$0x1] %v2214
        %2248 = vst [vmem:[%s327 + $0x7e] sm:$0x1] %v2216
        %s2249 = scalar_lea.vmem %s345, 112
        %v2250 = vld [vmem:[%s2249] sm:$0xf]
        %v2251 = vld [vmem:[%s2249 + $0x4] sm:$0xf]
        %v2252 = vld [vmem:[%s2249 + $0x8] sm:$0xf]
        %v2253 = vld [vmem:[%s2249 + $0xc] sm:$0xf]
        %s2254 = scalar_lea.vmem %s350, 7
        %v2255 = vld [vmem:[%s2254] sm:$0x1]
        %v2257 = vlaneseq
        %v2258 = vshrl.u32 %v2257, 7
        %v2259 = vsub.s32 0, %v2258
        %v2260 = vrot.slane %v2255, %v2259
        %v2266 = vunpack.c.l.b16 %v2250
        %v2267 = vunpack.c.l.b16 %v2251
        %v2268 = vunpack.c.l.b16 %v2252
        %v2269 = vunpack.c.l.b16 %v2253
        %v2270 = vpack.c.b16 %v2267, %v2266
        %v2271 = vpack.c.b16 %v2269, %v2268
        %2274 = vmatprep.subr.bf16.mxu0 0
        %2275 = vmatpush1.bf16.msra.mxu0 %v2270
        %2276 = vmatprep.subr.bf16.mxu0 0
        %2277 = vmatpush1.bf16.msra.mxu0 %v2271
        %2278 = vmatprep.subr.bf16.mxu0 0
        %2279 = vmatpush1.bf16.msra.mxu0 0
        %2280 = vmatprep.subr.bf16.mxu0 0
        %2281 = vmatpush1.bf16.msra.mxu0 0
        %2282 = vmatprep.subr.bf16.mxu0 0
        %2283 = vmatpush1.bf16.msra.mxu0 0
        %2284 = vmatprep.subr.bf16.mxu0 0
        %2285 = vmatpush1.bf16.msra.mxu0 0
        %2286 = vmatprep.subr.bf16.mxu0 0
        %2287 = vmatpush1.bf16.msra.mxu0 0
        %2288 = vmatprep.subr.bf16.mxu0 0
        %2289 = vmatpush1.bf16.msra.mxu0 0
        %2290 = vmatprep.subr.bf16.mxu0 0
        %2291 = vmatpush1.bf16.msra.mxu0 0
        %2292 = vmatprep.subr.bf16.mxu0 0
        %2293 = vmatpush1.bf16.msra.mxu0 0
        %2294 = vmatprep.subr.bf16.mxu0 0
        %2295 = vmatpush1.bf16.msra.mxu0 0
        %2296 = vmatprep.subr.bf16.mxu0 0
        %2297 = vmatpush1.bf16.msra.mxu0 0
        %2298 = vmatprep.subr.bf16.mxu0 0
        %2299 = vmatpush1.bf16.msra.mxu0 0
        %2300 = vmatprep.subr.bf16.mxu0 0
        %2301 = vmatpush1.bf16.msra.mxu0 0
        %2302 = vmatprep.subr.bf16.mxu0 0
        %2303 = vmatpush1.bf16.msra.mxu0 0
        %2304 = vmatprep.subr.bf16.mxu0 0
        %2305 = vmatpush1.bf16.msra.mxu0 0
        %2306 = vmatprep.mubr.bf16.mxu0 0
        %2307 = vmatmul.mubr.bf16.gmra.mrb[0].mxu0 %v592
        %v2308 = vpop.f32.mrb[0].mxu0
        %v2309 = vadd.f32 %v2260, %v2308
        %v2310 = vpop.f32.mrb[0].mxu0
        %v2311 = vpop.f32.mrb[0].mxu0
        %v2312 = vadd.f32 %v2260, %v2311
        %v2313 = vpop.f32.mrb[0].mxu0
        %2314 = vdwg.mxu0
        %v2315 = vsub.f32 %v2309, %v849
        %v2316 = vsub.f32 %v2312, %v850
        %v2319 = vcombine.high %v2315, %v2315
        %v2321 = vunpack.c.l.s4 1966171168
        %v2322 = vunpack.c.0.s8 %v2321
        %v2323 = vlaneseq
        %v2324 = vshrl.u32 %v2323, 7
        %v2325 = vsub.s32 %v2322, %v2324
        %v2326 = vrot.slane %v2315, %v2325
        %v2328 = vunpack.c.l.s4 1966171168
        %v2329 = vunpack.c.0.s8 %v2328
        %v2330 = vlaneseq
        %v2331 = vshrl.u32 %v2330, 7
        %v2332 = vsub.s32 %v2329, %v2331
        %v2333 = vrot.slane %v2319, %v2332
        %v2334 = vcombine.high %v2326, %v2326
        %v2335 = vcombine.high %v2333, %v2333
        %v2337 = vunpack.c.l.s4 1966171168
        %v2338 = vunpack.c.0.s8 %v2337
        %v2339 = vlaneseq
        %v2340 = vshrl.u32 %v2339, 7
        %v2341 = vsub.s32 %v2338, %v2340
        %v2342 = vrot.slane %v2326, %v2341
        %v2344 = vunpack.c.l.s4 1966171168
        %v2345 = vunpack.c.0.s8 %v2344
        %v2346 = vlaneseq
        %v2347 = vshrl.u32 %v2346, 7
        %v2348 = vsub.s32 %v2345, %v2347
        %v2349 = vrot.slane %v2333, %v2348
        %v2351 = vunpack.c.l.s4 1966171168
        %v2352 = vunpack.c.0.s8 %v2351
        %v2353 = vlaneseq
        %v2354 = vshrl.u32 %v2353, 7
        %v2355 = vsub.s32 %v2352, %v2354
        %v2356 = vrot.slane %v2334, %v2355
        %v2358 = vunpack.c.l.s4 1966171168
        %v2359 = vunpack.c.0.s8 %v2358
        %v2360 = vlaneseq
        %v2361 = vshrl.u32 %v2360, 7
        %v2362 = vsub.s32 %v2359, %v2361
        %v2363 = vrot.slane %v2335, %v2362
        %v2364 = vcombine.high %v2342, %v2342
        %v2365 = vcombine.high %v2349, %v2349
        %v2366 = vcombine.high %v2356, %v2356
        %v2367 = vcombine.high %v2363, %v2363
        %v2368 = vcombine.high %v2316, %v2316
        %v2370 = vunpack.c.l.s4 1966171168
        %v2371 = vunpack.c.0.s8 %v2370
        %v2372 = vlaneseq
        %v2373 = vshrl.u32 %v2372, 7
        %v2374 = vsub.s32 %v2371, %v2373
        %v2375 = vrot.slane %v2316, %v2374
        %v2377 = vunpack.c.l.s4 1966171168
        %v2378 = vunpack.c.0.s8 %v2377
        %v2379 = vlaneseq
        %v2380 = vshrl.u32 %v2379, 7
        %v2381 = vsub.s32 %v2378, %v2380
        %v2382 = vrot.slane %v2368, %v2381
        %v2383 = vcombine.high %v2375, %v2375
        %v2384 = vcombine.high %v2382, %v2382
        %v2386 = vunpack.c.l.s4 1966171168
        %v2387 = vunpack.c.0.s8 %v2386
        %v2388 = vlaneseq
        %v2389 = vshrl.u32 %v2388, 7
        %v2390 = vsub.s32 %v2387, %v2389
        %v2391 = vrot.slane %v2375, %v2390
        %v2393 = vunpack.c.l.s4 1966171168
        %v2394 = vunpack.c.0.s8 %v2393
        %v2395 = vlaneseq
        %v2396 = vshrl.u32 %v2395, 7
        %v2397 = vsub.s32 %v2394, %v2396
        %v2398 = vrot.slane %v2382, %v2397
        %v2400 = vunpack.c.l.s4 1966171168
        %v2401 = vunpack.c.0.s8 %v2400
        %v2402 = vlaneseq
        %v2403 = vshrl.u32 %v2402, 7
        %v2404 = vsub.s32 %v2401, %v2403
        %v2405 = vrot.slane %v2383, %v2404
        %v2407 = vunpack.c.l.s4 1966171168
        %v2408 = vunpack.c.0.s8 %v2407
        %v2409 = vlaneseq
        %v2410 = vshrl.u32 %v2409, 7
        %v2411 = vsub.s32 %v2408, %v2410
        %v2412 = vrot.slane %v2384, %v2411
        %v2413 = vcombine.high %v2391, %v2391
        %v2414 = vcombine.high %v2398, %v2398
        %v2415 = vcombine.high %v2405, %v2405
        %v2416 = vcombine.high %v2412, %v2412
        %2433 = vst [vmem:[%s327 + $0x7] sm:$0x1] %v2342
        %2434 = vst [vmem:[%s327 + $0xf] sm:$0x1] %v2356
        %2435 = vst [vmem:[%s327 + $0x17] sm:$0x1] %v2364
        %2436 = vst [vmem:[%s327 + $0x1f] sm:$0x1] %v2366
        %2437 = vst [vmem:[%s327 + $0x27] sm:$0x1] %v2349
        %2438 = vst [vmem:[%s327 + $0x2f] sm:$0x1] %v2363
        %2439 = vst [vmem:[%s327 + $0x37] sm:$0x1] %v2365
        %2440 = vst [vmem:[%s327 + $0x3f] sm:$0x1] %v2367
        %2441 = vst [vmem:[%s327 + $0x47] sm:$0x1] %v2391
        %2442 = vst [vmem:[%s327 + $0x4f] sm:$0x1] %v2405
        %2443 = vst [vmem:[%s327 + $0x57] sm:$0x1] %v2413
        %2444 = vst [vmem:[%s327 + $0x5f] sm:$0x1] %v2415
        %2445 = vst [vmem:[%s327 + $0x67] sm:$0x1] %v2398
        %2446 = vst [vmem:[%s327 + $0x6f] sm:$0x1] %v2412
        %2447 = vst [vmem:[%s327 + $0x77] sm:$0x1] %v2414
        %2448 = vst [vmem:[%s327 + $0x7f] sm:$0x1] %v2416
        %s2449 = sand.u32 %s204, 1
        %s2450 = sand.u32 %s204, 1
        %s2451 = smul.addr %s2450, 128
        %s2452 = scalar_lea.vmem [#allocation2], %s2451
        // Predicated region
        $region49: #{video_model_ctc_loss.2} parent=47 // pred_check
          %p2453 = pneg %p214
        $region50: #{video_model_ctc_loss.2} parent=47 // pred_check_branch
          %2455 = sbr.rel (%p2453) target = $region52
        $region51: #{video_model_ctc_loss.2} parent=47 // pred_region
          %s2456 = smul.u32 16, %s23
          %s2457 = smul.addr %s2456, 4
          %s2458 = sadd.s32 %s22, %s2457
          %s2459 = smul.addr %s2458, 8
          %s2460 = scalar_lea.vmem %s7, %s2459
          // Predicated region
          $region53: #{video_model_ctc_loss.2} parent=51 // pred_check
            _
          $region54: #{video_model_ctc_loss.2} parent=51 // pred_check_branch
            %2462 = sbr.rel (0) target = $region56
          $region55: #{video_model_ctc_loss.2} parent=51 // pred_region
            // Predicated region
            $region57: #{video_model_ctc_loss.2} parent=55 // pred_check
              _
            $region58: #{video_model_ctc_loss.2} parent=55 // pred_check_branch
              %2464 = sbr.rel (0) target = $region60
            $region59: #{video_model_ctc_loss.2} parent=55 // pred_region
              // Predicated region
              $region72: #{video_model_ctc_loss.2} parent=59 // pred_check
                _
              $region73: #{video_model_ctc_loss.2} parent=59 // pred_check_branch
                %2509 = sbr.rel (0) target = $region75
              $region74: #{video_model_ctc_loss.2} parent=59 // pred_region
                loop: start=0, step=1, limit=1
                $region76: #{video_model_ctc_loss.2} parent=74 // loop_pre_header
                  _
                $region77: #{video_model_ctc_loss.2} parent=74 // loop_header
                  %s2511 = sphi 0, %s2515
                  %p2512 = scmp.ge.s32.totalorder %s2511, 1
                  %s2516 = sphi %s2452, %s2452
                  %s2517 = sphi %s2460, %s2460
                $region78: #{video_model_ctc_loss.2} parent=74 // loop_header_branch
                  %2514 = sbr.rel (%p2512) target = $region82
                $region79: #{video_model_ctc_loss.2} parent=74 // loop_body
                  %v2518 = vld [vmem:[%s2516] sm:$0xff]
                  %2519 = vst [vmem:[%s2517] sm:$0xff] %v2518
                  %v2520 = vld [vmem:[%s2516 + $0x8] sm:$0xff]
                  %2521 = vst [vmem:[%s2517 + $0x20] sm:$0xff] %v2520
                  %v2522 = vld [vmem:[%s2516 + $0x10] sm:$0xff]
                  %2523 = vst [vmem:[%s2517 + $0x40] sm:$0xff] %v2522
                  %v2524 = vld [vmem:[%s2516 + $0x18] sm:$0xff]
                  %2525 = vst [vmem:[%s2517 + $0x60] sm:$0xff] %v2524
                  %v2526 = vld [vmem:[%s2516 + $0x20] sm:$0xff]
                  %2527 = vst [vmem:[%s2517 + $0x80] sm:$0xff] %v2526
                  %v2528 = vld [vmem:[%s2516 + $0x28] sm:$0xff]
                  %2529 = vst [vmem:[%s2517 + $0xa0] sm:$0xff] %v2528
                  %v2530 = vld [vmem:[%s2516 + $0x30] sm:$0xff]
                  %2531 = vst [vmem:[%s2517 + $0xc0] sm:$0xff] %v2530
                  %v2532 = vld [vmem:[%s2516 + $0x38] sm:$0xff]
                  %2533 = vst [vmem:[%s2517 + $0xe0] sm:$0xff] %v2532
                  %v2534 = vld [vmem:[%s2516 + $0x40] sm:$0xff]
                  %2535 = vst [vmem:[%s2517 + $0x100] sm:$0xff] %v2534
                  %v2536 = vld [vmem:[%s2516 + $0x48] sm:$0xff]
                  %2537 = vst [vmem:[%s2517 + $0x120] sm:$0xff] %v2536
                  %v2538 = vld [vmem:[%s2516 + $0x50] sm:$0xff]
                  %2539 = vst [vmem:[%s2517 + $0x140] sm:$0xff] %v2538
                  %v2540 = vld [vmem:[%s2516 + $0x58] sm:$0xff]
                  %2541 = vst [vmem:[%s2517 + $0x160] sm:$0xff] %v2540
                  %v2542 = vld [vmem:[%s2516 + $0x60] sm:$0xff]
                  %2543 = vst [vmem:[%s2517 + $0x180] sm:$0xff] %v2542
                  %v2544 = vld [vmem:[%s2516 + $0x68] sm:$0xff]
                  %2545 = vst [vmem:[%s2517 + $0x1a0] sm:$0xff] %v2544
                  %v2546 = vld [vmem:[%s2516 + $0x70] sm:$0xff]
                  %2547 = vst [vmem:[%s2517 + $0x1c0] sm:$0xff] %v2546
                  %v2548 = vld [vmem:[%s2516 + $0x78] sm:$0xff]
                  %2549 = vst [vmem:[%s2517 + $0x1e0] sm:$0xff] %v2548
                $region80: #{video_model_ctc_loss.2} parent=74 // loop_footer
                  %s2515 = sadd.s32 1, %s2511
                $region81: #{video_model_ctc_loss.2} parent=74 // loop_footer_branch
                  %2510 = sbr.rel target = $region77
                $region82: #{video_model_ctc_loss.2} parent=74 // loop_exit
                  _
              $region75: #{video_model_ctc_loss.2} parent=59 // pred_fallthru
                _
              // Predicated region
              $region83: #{video_model_ctc_loss.2} parent=59 // pred_check
                _
              $region84: #{video_model_ctc_loss.2} parent=59 // pred_check_branch
                %2551 = sbr.rel target = $region86
              $region85: #{video_model_ctc_loss.2} parent=59 // pred_region
                _
              $region86: #{video_model_ctc_loss.2} parent=59 // pred_fallthru
                _
            $region60: #{video_model_ctc_loss.2} parent=55 // pred_fallthru
              _
            // Predicated region
            $region61: #{video_model_ctc_loss.2} parent=55 // pred_check
              _
            $region62: #{video_model_ctc_loss.2} parent=55 // pred_check_branch
              %2466 = sbr.rel target = $region64
            $region63: #{video_model_ctc_loss.2} parent=55 // pred_region
              loop: start=0, step=1, limit=1
              $region65: #{video_model_ctc_loss.2} parent=63 // loop_pre_header
                _
              $region66: #{video_model_ctc_loss.2} parent=63 // loop_header
                %s2469 = sphi 0, %s2473
                %p2470 = scmp.ge.s32.totalorder %s2469, 1
                %s2474 = sphi %s2452, %s2452
                %s2475 = sphi %s2460, %s2460
              $region67: #{video_model_ctc_loss.2} parent=63 // loop_header_branch
                %2472 = sbr.rel (%p2470) target = $region71
              $region68: #{video_model_ctc_loss.2} parent=63 // loop_body
                %v2476 = vld [vmem:[%s2474] sm:$0xff]
                %2477 = vst [vmem:[%s2475] sm:$0xff] %v2476
                %v2478 = vld [vmem:[%s2474 + $0x8] sm:$0xff]
                %2479 = vst [vmem:[%s2475 + $0x20] sm:$0xff] %v2478
                %v2480 = vld [vmem:[%s2474 + $0x10] sm:$0xff]
                %2481 = vst [vmem:[%s2475 + $0x40] sm:$0xff] %v2480
                %v2482 = vld [vmem:[%s2474 + $0x18] sm:$0xff]
                %2483 = vst [vmem:[%s2475 + $0x60] sm:$0xff] %v2482
                %v2484 = vld [vmem:[%s2474 + $0x20] sm:$0xff]
                %2485 = vst [vmem:[%s2475 + $0x80] sm:$0xff] %v2484
                %v2486 = vld [vmem:[%s2474 + $0x28] sm:$0xff]
                %2487 = vst [vmem:[%s2475 + $0xa0] sm:$0xff] %v2486
                %v2488 = vld [vmem:[%s2474 + $0x30] sm:$0xff]
                %2489 = vst [vmem:[%s2475 + $0xc0] sm:$0xff] %v2488
                %v2490 = vld [vmem:[%s2474 + $0x38] sm:$0xff]
                %2491 = vst [vmem:[%s2475 + $0xe0] sm:$0xff] %v2490
                %v2492 = vld [vmem:[%s2474 + $0x40] sm:$0xff]
                %2493 = vst [vmem:[%s2475 + $0x100] sm:$0xff] %v2492
                %v2494 = vld [vmem:[%s2474 + $0x48] sm:$0xff]
                %2495 = vst [vmem:[%s2475 + $0x120] sm:$0xff] %v2494
                %v2496 = vld [vmem:[%s2474 + $0x50] sm:$0xff]
                %2497 = vst [vmem:[%s2475 + $0x140] sm:$0xff] %v2496
                %v2498 = vld [vmem:[%s2474 + $0x58] sm:$0xff]
                %2499 = vst [vmem:[%s2475 + $0x160] sm:$0xff] %v2498
                %v2500 = vld [vmem:[%s2474 + $0x60] sm:$0xff]
                %2501 = vst [vmem:[%s2475 + $0x180] sm:$0xff] %v2500
                %v2502 = vld [vmem:[%s2474 + $0x68] sm:$0xff]
                %2503 = vst [vmem:[%s2475 + $0x1a0] sm:$0xff] %v2502
                %v2504 = vld [vmem:[%s2474 + $0x70] sm:$0xff]
                %2505 = vst [vmem:[%s2475 + $0x1c0] sm:$0xff] %v2504
                %v2506 = vld [vmem:[%s2474 + $0x78] sm:$0xff]
                %2507 = vst [vmem:[%s2475 + $0x1e0] sm:$0xff] %v2506
              $region69: #{video_model_ctc_loss.2} parent=63 // loop_footer
                %s2473 = sadd.s32 1, %s2469
              $region70: #{video_model_ctc_loss.2} parent=63 // loop_footer_branch
                %2468 = sbr.rel target = $region66
              $region71: #{video_model_ctc_loss.2} parent=63 // loop_exit
                _
            $region64: #{video_model_ctc_loss.2} parent=55 // pred_fallthru
              _
          $region56: #{video_model_ctc_loss.2} parent=51 // pred_fallthru
            _
          %2552 = vnop
        $region52: #{video_model_ctc_loss.2} parent=47 // pred_fallthru
          _
      $region48: #{video_model_ctc_loss.2} parent=5 // pred_fallthru
        _
      %p2553 = scmp.le.s32.totalorder 2, %s13
      // Predicated region
      $region87: #{video_model_ctc_loss.2} parent=5 // pred_check
        %p2554 = pneg %p2553
      $region88: #{video_model_ctc_loss.2} parent=5 // pred_check_branch
        %2556 = sbr.rel (%p2554) target = $region90
      $region89: #{video_model_ctc_loss.2} parent=5 // pred_region
        %s2557 = ssub.s32 %s13, 2
        // Predicated region
        $region91: #{video_model_ctc_loss.2} parent=89 // pred_check
          %p2558 = pneg %p220
        $region92: #{video_model_ctc_loss.2} parent=89 // pred_check_branch
          %2560 = sbr.rel (%p2558) target = $region94
        $region93: #{video_model_ctc_loss.2} parent=89 // pred_region
          %s2561 = sand.u32 %s205, 1
          %s2562 = sand.u32 %s205, 1
          %s2563 = smul.addr %s2562, 128
          %s2564 = scalar_lea.vmem [#allocation2], %s2563
        $region94: #{video_model_ctc_loss.2} parent=89 // pred_fallthru
          _
      $region90: #{video_model_ctc_loss.2} parent=5 // pred_fallthru
        _
    $region6: #{video_model_ctc_loss.2} parent=1 // loop_footer
      %s17 = sadd.s32 1, %s13
    $region7: #{video_model_ctc_loss.2} parent=1 // loop_footer_branch
      %12 = sbr.rel target = $region3
    $region8: #{video_model_ctc_loss.2} parent=1 // loop_exit
      _

</llo_original>
